<compile_context>
chip_gen: v6e
topology: v6e:2x2x1
jax: 0.10.0
libtpu: 0.0.40
codegen_flags: <defaults>
</compile_context>

<pallas_src>
import functools

import numpy as np
import jax
import jax.numpy as jnp
from jax.experimental import pallas as pl
from jax.experimental.pallas import tpu as pltpu


def _round_up(x, m):
    return (x + m - 1) // m * m


# ----------------------------------------------------------------------------
# Pallas kernel: one grid step = one chunk of TT timesteps, BOTH directions.
# ----------------------------------------------------------------------------
def _bilstm_chunk_kernel(len_ref, gf_ref, gb_ref, whh_ref, of_ref, ob_ref,
                         hf_sc, cf_sc, hb_sc, cb_sc, *, tt, n_chunks, hp):
    """grid = (n_chunks,), sequential ("arbitrary").

    The forward direction reads gate/output chunk i; the backward direction
    reads chunk n_chunks-1-i (and positions within a chunk in reverse), so no
    data reversal is ever materialized.  The two directions are independent
    recurrences interleaved inside each step to hide MXU/EUP latency.

    Refs:
      len_ref : (Bp, Hp)        int32  lengths broadcast along lanes
      gf_ref  : (tt, Bp, 4*Hp)  bf16   fwd chunk of x @ W_ih + b (gate-fused)
      gb_ref  : (tt, Bp, 4*Hp)  bf16   bwd chunk (reversed chunk order)
      whh_ref : (2, Hp, 4*Hp)   bf16   recurrent weights, VMEM-resident
      of_ref  : (tt, Bp, Hp)    f32    fwd outputs
      ob_ref  : (tt, Bp, Hp)    f32    bwd outputs
      h*/c*_sc: (Bp, Hp)        f32    per-direction state, persists over grid
    """
    i = pl.program_id(0)

    @pl.when(i == 0)
    def _():
        hf_sc[...] = jnp.zeros_like(hf_sc)
        cf_sc[...] = jnp.zeros_like(cf_sc)
        hb_sc[...] = jnp.zeros_like(hb_sc)
        cb_sc[...] = jnp.zeros_like(cb_sc)

    base_f = i * tt
    base_b = (n_chunks - 1 - i) * tt
    lengths = len_ref[...]                      # (Bp, Hp) int32

    def one_dir(d, g_ref, j, pos, o_ref, h_sc, c_sc):
        # bf16 streamed gates upcast to f32; h @ W_hh in bf16 on the MXU,
        # f32 accumulation; all elementwise math in f32.
        gates = g_ref[j].astype(jnp.float32) + jnp.dot(
            h_sc[...].astype(jnp.bfloat16), whh_ref[d],
            preferred_element_type=jnp.float32)          # (Bp, 4*Hp) f32
        i_g = jax.nn.sigmoid(gates[:, 0 * hp:1 * hp])
        f_g = jax.nn.sigmoid(gates[:, 1 * hp:2 * hp])
        g_g = jnp.tanh(gates[:, 2 * hp:3 * hp])
        o_g = jax.nn.sigmoid(gates[:, 3 * hp:4 * hp])
        c_new = f_g * c_sc[...] + i_g * g_g
        h_new = o_g * jnp.tanh(c_new)
        valid = lengths > pos                             # (Bp, Hp) bool
        c_sc[...] = jnp.where(valid, c_new, c_sc[...])
        h_sc[...] = jnp.where(valid, h_new, h_sc[...])
        o_ref[j] = jnp.where(valid, h_new, 0.0).astype(o_ref.dtype)

    def step(k, carry):
        # Forward: position k within chunk; backward: position tt-1-k.
        one_dir(0, gf_ref, k, base_f + k, of_ref, hf_sc, cf_sc)
        kb = tt - 1 - k
        one_dir(1, gb_ref, kb, base_b + kb, ob_ref, hb_sc, cb_sc)
        return carry

    # NOTE: at large Bp*Hp the live (Bp, 4*Hp) f32 gates of both directions may
    # exceed 64 vregs; if spills show in the bundle dump, drop unroll or strip
    # the activation math by sublane groups.
    jax.lax.fori_loop(0, tt, step, 0, unroll=True)


# ----------------------------------------------------------------------------
# Wrapper: one bidirectional LSTM layer over a padded (T, B, Din) batch.
# ----------------------------------------------------------------------------
def bilstm_layer_pallas(x_tbd, lengths, p, chunk_t=16):
    T, B, Din = x_tbd.shape
    H = p["whh"].shape[1]

    Hp = _round_up(H, 128)        # lane-aligned hidden
    Bp = _round_up(B, 8)          # sublane-aligned batch
    TT = min(chunk_t, T)          # timesteps per grid step
    Tp = _round_up(T, TT)
    G = Tp // TT
    pad_h = Hp - H

    # Gate-fused, hidden-padded weights (gate order i, f, g, o); each gate
    # block sits at offset k*Hp along the fused 4*Hp axis.  Zero padding is
    # self-consistent: padded hidden units stay exactly 0 through the LSTM.
    wih = jnp.pad(p["wih"].reshape(2, Din, 4, H),
                  ((0, 0), (0, 0), (0, 0), (0, pad_h))).reshape(2, Din, 4 * Hp)
    whh = jnp.pad(p["whh"].reshape(2, H, 4, H),
                  ((0, 0), (0, pad_h), (0, 0), (0, pad_h))).reshape(2, Hp, 4 * Hp)
    bias = jnp.pad(p["b"].reshape(2, 4, H),
                   ((0, 0), (0, 0), (0, pad_h))).reshape(2, 4 * Hp)

    # Pad the (small) input BEFORE the projection so the gates tensor is born
    # in its padded shape (no full-size pad round trip on the largest tensor).
    x_pad = jnp.pad(x_tbd, ((0, Tp - T), (0, Bp - B), (0, 0))).astype(jnp.bfloat16)
    wih_bf = wih.astype(jnp.bfloat16)

    # Hoisted input projection: one lane-dense GEMM per direction over all
    # timesteps (bf16 MXU operands, f32 accumulation), bias folded, then
    # streamed to the kernel in bf16 (halves the dominant HBM traffic).
    g_f = (jnp.einsum("tbd,dg->tbg", x_pad, wih_bf[0],
                      preferred_element_type=jnp.float32)
           + bias[0]).astype(jnp.bfloat16)
    g_b = (jnp.einsum("tbd,dg->tbg", x_pad, wih_bf[1],
                      preferred_element_type=jnp.float32)
           + bias[1]).astype(jnp.bfloat16)

    # Lengths broadcast along lanes so the in-kernel validity mask is a plain
    # full-width vector compare (padded batch rows get length 0 -> inert).
    len_b = jnp.broadcast_to(lengths.astype(jnp.int32)[:, None], (B, Hp))
    len_b = jnp.pad(len_b, ((0, Bp - B), (0, 0)))

    whh_bf = whh.astype(jnp.bfloat16)

    kernel = functools.partial(_bilstm_chunk_kernel, tt=TT, n_chunks=G, hp=Hp)

    # Explicit VMEM budget: gate + output double buffers, resident W_hh,
    # lengths, per-direction state scratch.
    vmem_bytes = (2 * 2 * TT * Bp * 4 * Hp * 2     # fwd+bwd gate chunks (bf16)
                  + 2 * 2 * TT * Bp * Hp * 4       # fwd+bwd out chunks (f32)
                  + 2 * Hp * 4 * Hp * 2            # resident W_hh (bf16)
                  + 2 * Bp * Hp * 4                # lengths (int32)
                  + 4 * Bp * Hp * 4)               # h/c scratch (f32)
    vmem_limit = int(min(max(2 * vmem_bytes, 32 << 20), 56 << 20))

    out_f, out_b = pl.pallas_call(
        kernel,
        out_shape=(jax.ShapeDtypeStruct((Tp, Bp, Hp), jnp.float32),
                   jax.ShapeDtypeStruct((Tp, Bp, Hp), jnp.float32)),
        grid=(G,),
        in_specs=[
            pl.BlockSpec((Bp, Hp), lambda i: (0, 0)),                 # lengths
            pl.BlockSpec((TT, Bp, 4 * Hp), lambda i: (i, 0, 0)),      # gates fwd
            pl.BlockSpec((TT, Bp, 4 * Hp),
                         lambda i: (G - 1 - i, 0, 0)),                # gates bwd
            pl.BlockSpec(memory_space=pltpu.MemorySpace.VMEM),        # W_hh
        ],
        out_specs=(
            pl.BlockSpec((TT, Bp, Hp), lambda i: (i, 0, 0)),          # out fwd
            pl.BlockSpec((TT, Bp, Hp), lambda i: (G - 1 - i, 0, 0)),  # out bwd
        ),
        scratch_shapes=[pltpu.VMEM((Bp, Hp), jnp.float32),   # h fwd
                        pltpu.VMEM((Bp, Hp), jnp.float32),   # c fwd
                        pltpu.VMEM((Bp, Hp), jnp.float32),   # h bwd
                        pltpu.VMEM((Bp, Hp), jnp.float32)],  # c bwd
        compiler_params=pltpu.CompilerParams(
            dimension_semantics=("arbitrary",),
            vmem_limit_bytes=vmem_limit),
    )(len_b, g_f, g_b, whh_bf)

    return jnp.concatenate([out_f[:T, :B, :H], out_b[:T, :B, :H]], axis=-1)


# ----------------------------------------------------------------------------
# Pure-JAX reference layer (lax.scan) with IDENTICAL numerics: bf16 MXU
# operands, f32 accumulation, bf16-rounded precomputed gates.
# ----------------------------------------------------------------------------
def bilstm_layer_ref(x_tbd, lengths, p, chunk_t=16):
    del chunk_t
    T, B, Din = x_tbd.shape
    H = p["whh"].shape[1]
    outs = []
    for d in range(2):
        wih = p["wih"][d].astype(jnp.bfloat16)     # (Din, 4H)
        whh = p["whh"][d].astype(jnp.bfloat16)     # (H, 4H)
        bias = p["b"][d]                           # (4H,)
        gates = (jnp.dot(x_tbd.astype(jnp.bfloat16).reshape(T * B, Din), wih,
                         preferred_element_type=jnp.float32
                         ).reshape(T, B, 4 * H) + bias).astype(jnp.bfloat16)
        order = jnp.arange(T) if d == 0 else jnp.arange(T - 1, -1, -1)

        def step(carry, t):
            h, c = carry
            g = gates[t].astype(jnp.float32) + jnp.dot(
                h.astype(jnp.bfloat16), whh, preferred_element_type=jnp.float32)
            i_g = jax.nn.sigmoid(g[:, :H])
            f_g = jax.nn.sigmoid(g[:, H:2 * H])
            g_g = jnp.tanh(g[:, 2 * H:3 * H])
            o_g = jax.nn.sigmoid(g[:, 3 * H:])
            c_new = f_g * c + i_g * g_g
            h_new = o_g * jnp.tanh(c_new)
            valid = (lengths > t)[:, None]
            c = jnp.where(valid, c_new, c)
            h = jnp.where(valid, h_new, h)
            return (h, c), jnp.where(valid, h_new, 0.0)

        init = (jnp.zeros((B, H), jnp.float32), jnp.zeros((B, H), jnp.float32))
        _, out_d = jax.lax.scan(step, init, order)
        if d == 1:
            out_d = out_d[::-1]
        outs.append(out_d)
    return jnp.concatenate(outs, axis=-1)


# ----------------------------------------------------------------------------
# Full MTLSTM forward.
# ----------------------------------------------------------------------------
def mtlstm_forward(params, x_idx, x_mask, use_pallas=True):
    # lengths: number of valid tokens; mask == 0 marks valid (as in the module)
    lengths = jnp.sum((x_mask == 0).astype(jnp.int32), axis=1)   # (B,)
    emb = jnp.take(params["embedding"], x_idx, axis=0)           # (B, T, D)
    x = jnp.transpose(emb, (1, 0, 2)).astype(jnp.float32)        # (T, B, D)
    layer = bilstm_layer_pallas if use_pallas else bilstm_layer_ref
    out1 = layer(x, lengths, params["rnn1"])                     # (T, B, 2H)
    out2 = layer(out1, lengths, params["rnn2"])                  # (T, B, 2H)
    # batch-first, like pad_packed_sequence(..., batch_first=True)
    return jnp.transpose(out1, (1, 0, 2)), jnp.transpose(out2, (1, 0, 2))


# ----------------------------------------------------------------------------
# Deterministic synthetic parameters (stand-in for the torch.load of CoVe).
# TODO(synk): real CoVe weights come from torch.load(opt['MTLSTM_path']); here
# the parameters are synthetic with the same structure at scaled-down dims.
# ----------------------------------------------------------------------------
def init_params(key, vocab_size, emb_dim, hidden):
    ks = jax.random.split(key, 3)

    def w(k, shape):
        return (0.1 * jax.random.normal(k, shape)).astype(jnp.float32)

    emb = w(ks[0], (vocab_size, emb_dim))
    emb = emb.at[0].set(0.0)   # padding_idx = 0

    def lstm_p(k, in_dim):
        k1, k2, k3 = jax.random.split(k, 3)
        return {
            "wih": w(k1, (2, in_dim, 4 * hidden)),   # direction-major, gate-fused
            "whh": w(k2, (2, hidden, 4 * hidden)),
            "b":   w(k3, (2, 4 * hidden)),           # bias_ih + bias_hh folded
        }

    return {"embedding": emb,
            "rnn1": lstm_p(ks[1], emb_dim),
            "rnn2": lstm_p(ks[2], 2 * hidden)}


if __name__ == "__main__":
    # Scaled-down stand-in for CoVe dims (300-d GloVe/hidden, 600-d output).
    B, T, V, D, H = 2, 8, 50, 64, 64

    key = jax.random.PRNGKey(0)
    pk, ik = jax.random.split(key)
    params = init_params(pk, V, D, H)

    # max length == T so torch's unpack would pad back to T positions.
    lengths_np = np.array([T, 5], dtype=np.int32)
    x_mask_np = np.ones((B, T), dtype=np.int32)
    for bi in range(B):
        x_mask_np[bi, : lengths_np[bi]] = 0
    x_idx_np = np.asarray(jax.random.randint(ik, (B, T), 1, V))
    x_idx_np = np.where(x_mask_np == 0, x_idx_np, 0)   # pads -> padding idx

    x_idx = jnp.asarray(x_idx_np, dtype=jnp.int32)
    x_mask = jnp.asarray(x_mask_np, dtype=jnp.int32)

    fwd = jax.jit(functools.partial(mtlstm_forward, params))
    out1, out2 = fwd(x_idx, x_mask)
    jax.block_until_ready((out1, out2))
    assert out1.shape == (B, T, 2 * H) and out2.shape == (B, T, 2 * H)

    # Sanity check against a pure-JAX lax.scan reference with identical
    # bf16-MXU / f32-elementwise / bf16-gates numerics.
    ref_fwd = jax.jit(functools.partial(mtlstm_forward, params,
                                        use_pallas=False))
    ref1, ref2 = ref_fwd(x_idx, x_mask)
    np.testing.assert_allclose(np.asarray(out1), np.asarray(ref1),
                               rtol=2e-3, atol=2e-3)
    np.testing.assert_allclose(np.asarray(out2), np.asarray(ref2),
                               rtol=2e-3, atol=2e-3)

    print("KERNEL_OK")
</pallas_src>

<mosaic_0001>
module attributes {stable_mosaic.version = 11 : i64} {
  func.func @_bilstm_chunk_kernel(%arg0: i32, %arg1: memref<8x128xi32, #tpu.memory_space<vmem>>, %arg2: memref<8x8x512xbf16, #tpu.memory_space<vmem>>, %arg3: memref<8x8x512xbf16, #tpu.memory_space<vmem>>, %arg4: memref<2x128x512xbf16, #tpu.memory_space<vmem>>, %arg5: memref<8x8x128xf32, #tpu.memory_space<vmem>>, %arg6: memref<8x8x128xf32, #tpu.memory_space<vmem>>, %arg7: memref<8x128xf32, #tpu.memory_space<vmem>>, %arg8: memref<8x128xf32, #tpu.memory_space<vmem>>, %arg9: memref<8x128xf32, #tpu.memory_space<vmem>>, %arg10: memref<8x128xf32, #tpu.memory_space<vmem>>) attributes {dimension_semantics = [#tpu.dimension_semantics<arbitrary>], iteration_bounds = array<i64: 1>, scalar_prefetch = 0 : i64, scratch_operands = 4 : i64, tpu.core_type = #tpu.core_type<tc>, window_params = [{pipeline_mode = #tpu.pipeline_mode<synchronous>, transform_indices = @transform_0, window_bounds = array<i64: 8, 128>}, {transform_indices = @transform_1, window_bounds = array<i64: 8, 8, 512>}, {transform_indices = @transform_2, window_bounds = array<i64: 8, 8, 512>}, {pipeline_mode = #tpu.pipeline_mode<synchronous>, transform_indices = @transform_3, window_bounds = array<i64: 2, 128, 512>}, {transform_indices = @transform_4, window_bounds = array<i64: 8, 8, 128>}, {transform_indices = @transform_5, window_bounds = array<i64: 8, 8, 128>}]} {
    %c0_i32 = arith.constant 0 : i32
    %0 = arith.cmpi eq, %arg0, %c0_i32 : i32
    %1 = arith.extui %0 : i1 to i32
    %c0_i32_0 = arith.constant 0 : i32
    %2 = arith.cmpi ne, %1, %c0_i32_0 : i32
    scf.if %2 {
      %cst_396 = arith.constant 0.000000e+00 : f32
      %831 = vector.broadcast %cst_396 : f32 to vector<8x128xf32>
      %c0_397 = arith.constant 0 : index
      %c0_398 = arith.constant 0 : index
      %832 = vector.load %arg7[%c0_397, %c0_398] : memref<8x128xf32, #tpu.memory_space<vmem>>, vector<8x128xf32>
      tpu.vector_store %arg7[%c0_397, %c0_398], %831 {strides = array<i32>} : memref<8x128xf32, #tpu.memory_space<vmem>>, vector<8x128xf32>,
      %cst_399 = arith.constant 0.000000e+00 : f32
      %833 = vector.broadcast %cst_399 : f32 to vector<8x128xf32>
      %c0_400 = arith.constant 0 : index
      %c0_401 = arith.constant 0 : index
      %834 = vector.load %arg8[%c0_400, %c0_401] : memref<8x128xf32, #tpu.memory_space<vmem>>, vector<8x128xf32>
      tpu.vector_store %arg8[%c0_400, %c0_401], %833 {strides = array<i32>} : memref<8x128xf32, #tpu.memory_space<vmem>>, vector<8x128xf32>,
      %cst_402 = arith.constant 0.000000e+00 : f32
      %835 = vector.broadcast %cst_402 : f32 to vector<8x128xf32>
      %c0_403 = arith.constant 0 : index
      %c0_404 = arith.constant 0 : index
      %836 = vector.load %arg9[%c0_403, %c0_404] : memref<8x128xf32, #tpu.memory_space<vmem>>, vector<8x128xf32>
      tpu.vector_store %arg9[%c0_403, %c0_404], %835 {strides = array<i32>} : memref<8x128xf32, #tpu.memory_space<vmem>>, vector<8x128xf32>,
      %cst_405 = arith.constant 0.000000e+00 : f32
      %837 = vector.broadcast %cst_405 : f32 to vector<8x128xf32>
      %c0_406 = arith.constant 0 : index
      %c0_407 = arith.constant 0 : index
      %838 = vector.load %arg10[%c0_406, %c0_407] : memref<8x128xf32, #tpu.memory_space<vmem>>, vector<8x128xf32>
      tpu.vector_store %arg10[%c0_406, %c0_407], %837 {strides = array<i32>} : memref<8x128xf32, #tpu.memory_space<vmem>>, vector<8x128xf32>,
    } else {
    }
    %c8_i32 = arith.constant 8 : i32
    %3 = arith.muli %arg0, %c8_i32 : i32
    %c0_i32_1 = arith.constant 0 : i32
    %4 = arith.subi %c0_i32_1, %arg0 : i32
    %c8_i32_2 = arith.constant 8 : i32
    %5 = arith.muli %4, %c8_i32_2 : i32
    %c0 = arith.constant 0 : index
    %c0_3 = arith.constant 0 : index
    %6 = vector.load %arg1[%c0, %c0_3] : memref<8x128xi32, #tpu.memory_space<vmem>>, vector<8x128xi32>
    %c0_i32_4 = arith.constant 0 : i32
    %7 = arith.addi %3, %c0_i32_4 : i32
    %8 = arith.index_cast %c0_i32_4 : i32 to index
    %c0_5 = arith.constant 0 : index
    %c0_6 = arith.constant 0 : index
    %9 = vector.load %arg2[%8, %c0_5, %c0_6] : memref<8x8x512xbf16, #tpu.memory_space<vmem>>, vector<1x8x512xbf16>
    %10 = vector.shape_cast %9 : vector<1x8x512xbf16> to vector<8x512xbf16>
    %11 = arith.extf %10 : vector<8x512xbf16> to vector<8x512xf32>
    %c0_7 = arith.constant 0 : index
    %c0_8 = arith.constant 0 : index
    %12 = vector.load %arg7[%c0_7, %c0_8] : memref<8x128xf32, #tpu.memory_space<vmem>>, vector<8x128xf32>
    %13 = arith.truncf %12 : vector<8x128xf32> to vector<8x128xbf16>
    %c0_9 = arith.constant 0 : index
    %c0_10 = arith.constant 0 : index
    %c0_11 = arith.constant 0 : index
    %14 = vector.load %arg4[%c0_9, %c0_10, %c0_11] : memref<2x128x512xbf16, #tpu.memory_space<vmem>>, vector<1x128x512xbf16>
    %15 = vector.shape_cast %14 : vector<1x128x512xbf16> to vector<128x512xbf16>
    %cst = arith.constant dense<0.000000e+00> : vector<8x512xf32>
    %16 = tpu.matmul %13, %15, %cst {dimension_numbers = #tpu.dot_dimension_numbers<[1], [0], [0], [1], [0, 0, 1, 1], [], []>} : vector<8x128xbf16>, vector<128x512xbf16>, vector<8x512xf32> -> vector<8x512xf32>
    %17 = arith.addf %11, %16 : vector<8x512xf32>
    %18 = vector.extract_strided_slice %17 {offsets = [0, 0], sizes = [8, 128], strides = [1, 1]} : vector<8x512xf32> to vector<8x128xf32>
    %19 = arith.negf %18 : vector<8x128xf32>
    %20 = math.exp %19 : vector<8x128xf32>
    %cst_12 = arith.constant 1.000000e+00 : f32
    %21 = vector.broadcast %cst_12 : f32 to vector<8x128xf32>
    %22 = arith.addf %21, %20 : vector<8x128xf32>
    %23 = arith.divf %21, %22 : vector<8x128xf32>
    %24 = vector.extract_strided_slice %17 {offsets = [0, 128], sizes = [8, 128], strides = [1, 1]} : vector<8x512xf32> to vector<8x128xf32>
    %25 = arith.negf %24 : vector<8x128xf32>
    %26 = math.exp %25 : vector<8x128xf32>
    %cst_13 = arith.constant 1.000000e+00 : f32
    %27 = vector.broadcast %cst_13 : f32 to vector<8x128xf32>
    %28 = arith.addf %27, %26 : vector<8x128xf32>
    %29 = arith.divf %27, %28 : vector<8x128xf32>
    %30 = vector.extract_strided_slice %17 {offsets = [0, 256], sizes = [8, 128], strides = [1, 1]} : vector<8x512xf32> to vector<8x128xf32>
    %31 = math.tanh %30 : vector<8x128xf32>
    %32 = vector.extract_strided_slice %17 {offsets = [0, 384], sizes = [8, 128], strides = [1, 1]} : vector<8x512xf32> to vector<8x128xf32>
    %33 = arith.negf %32 : vector<8x128xf32>
    %34 = math.exp %33 : vector<8x128xf32>
    %cst_14 = arith.constant 1.000000e+00 : f32
    %35 = vector.broadcast %cst_14 : f32 to vector<8x128xf32>
    %36 = arith.addf %35, %34 : vector<8x128xf32>
    %37 = arith.divf %35, %36 : vector<8x128xf32>
    %c0_15 = arith.constant 0 : index
    %c0_16 = arith.constant 0 : index
    %38 = vector.load %arg8[%c0_15, %c0_16] : memref<8x128xf32, #tpu.memory_space<vmem>>, vector<8x128xf32>
    %39 = arith.mulf %29, %38 : vector<8x128xf32>
    %40 = arith.mulf %23, %31 : vector<8x128xf32>
    %41 = arith.addf %39, %40 : vector<8x128xf32>
    %42 = math.tanh %41 : vector<8x128xf32>
    %43 = arith.mulf %37, %42 : vector<8x128xf32>
    %44 = vector.broadcast %7 : i32 to vector<8x128xi32>
    %45 = arith.cmpi sgt, %6, %44 : vector<8x128xi32>
    %c0_17 = arith.constant 0 : index
    %c0_18 = arith.constant 0 : index
    %46 = vector.load %arg8[%c0_17, %c0_18] : memref<8x128xf32, #tpu.memory_space<vmem>>, vector<8x128xf32>
    %47 = arith.select %45, %41, %46 : vector<8x128xi1>, vector<8x128xf32>
    %c0_19 = arith.constant 0 : index
    %c0_20 = arith.constant 0 : index
    %48 = vector.load %arg8[%c0_19, %c0_20] : memref<8x128xf32, #tpu.memory_space<vmem>>, vector<8x128xf32>
    tpu.vector_store %arg8[%c0_19, %c0_20], %47 {strides = array<i32>} : memref<8x128xf32, #tpu.memory_space<vmem>>, vector<8x128xf32>,
    %c0_21 = arith.constant 0 : index
    %c0_22 = arith.constant 0 : index
    %49 = vector.load %arg7[%c0_21, %c0_22] : memref<8x128xf32, #tpu.memory_space<vmem>>, vector<8x128xf32>
    %50 = arith.select %45, %43, %49 : vector<8x128xi1>, vector<8x128xf32>
    %c0_23 = arith.constant 0 : index
    %c0_24 = arith.constant 0 : index
    %51 = vector.load %arg7[%c0_23, %c0_24] : memref<8x128xf32, #tpu.memory_space<vmem>>, vector<8x128xf32>
    tpu.vector_store %arg7[%c0_23, %c0_24], %50 {strides = array<i32>} : memref<8x128xf32, #tpu.memory_space<vmem>>, vector<8x128xf32>,
    %cst_25 = arith.constant 0.000000e+00 : f32
    %52 = vector.broadcast %cst_25 : f32 to vector<8x128xf32>
    %53 = arith.select %45, %43, %52 : vector<8x128xi1>, vector<8x128xf32>
    %54 = arith.index_cast %c0_i32_4 : i32 to index
    %c0_26 = arith.constant 0 : index
    %c0_27 = arith.constant 0 : index
    %55 = vector.load %arg5[%54, %c0_26, %c0_27] : memref<8x8x128xf32, #tpu.memory_space<vmem>>, vector<1x8x128xf32>
    %56 = vector.shape_cast %55 : vector<1x8x128xf32> to vector<8x128xf32>
    %57 = vector.shape_cast %53 : vector<8x128xf32> to vector<1x8x128xf32>
    tpu.vector_store %arg5[%54, %c0_26, %c0_27], %57 {strides = array<i32>} : memref<8x8x128xf32, #tpu.memory_space<vmem>>, vector<1x8x128xf32>,
    %c7_i32 = arith.constant 7 : i32
    %58 = arith.subi %c7_i32, %c0_i32_4 : i32
    %59 = arith.addi %5, %58 : i32
    %60 = arith.index_cast %58 : i32 to index
    %c0_28 = arith.constant 0 : index
    %c0_29 = arith.constant 0 : index
    %61 = vector.load %arg3[%60, %c0_28, %c0_29] : memref<8x8x512xbf16, #tpu.memory_space<vmem>>, vector<1x8x512xbf16>
    %62 = vector.shape_cast %61 : vector<1x8x512xbf16> to vector<8x512xbf16>
    %63 = arith.extf %62 : vector<8x512xbf16> to vector<8x512xf32>
    %c0_30 = arith.constant 0 : index
    %c0_31 = arith.constant 0 : index
    %64 = vector.load %arg9[%c0_30, %c0_31] : memref<8x128xf32, #tpu.memory_space<vmem>>, vector<8x128xf32>
    %65 = arith.truncf %64 : vector<8x128xf32> to vector<8x128xbf16>
    %c1 = arith.constant 1 : index
    %c0_32 = arith.constant 0 : index
    %c0_33 = arith.constant 0 : index
    %66 = vector.load %arg4[%c1, %c0_32, %c0_33] : memref<2x128x512xbf16, #tpu.memory_space<vmem>>, vector<1x128x512xbf16>
    %67 = vector.shape_cast %66 : vector<1x128x512xbf16> to vector<128x512xbf16>
    %cst_34 = arith.constant dense<0.000000e+00> : vector<8x512xf32>
    %68 = tpu.matmul %65, %67, %cst_34 {dimension_numbers = #tpu.dot_dimension_numbers<[1], [0], [0], [1], [0, 0, 1, 1], [], []>} : vector<8x128xbf16>, vector<128x512xbf16>, vector<8x512xf32> -> vector<8x512xf32>
    %69 = arith.addf %63, %68 : vector<8x512xf32>
    %70 = vector.extract_strided_slice %69 {offsets = [0, 0], sizes = [8, 128], strides = [1, 1]} : vector<8x512xf32> to vector<8x128xf32>
    %71 = arith.negf %70 : vector<8x128xf32>
    %72 = math.exp %71 : vector<8x128xf32>
    %cst_35 = arith.constant 1.000000e+00 : f32
    %73 = vector.broadcast %cst_35 : f32 to vector<8x128xf32>
    %74 = arith.addf %73, %72 : vector<8x128xf32>
    %75 = arith.divf %73, %74 : vector<8x128xf32>
    %76 = vector.extract_strided_slice %69 {offsets = [0, 128], sizes = [8, 128], strides = [1, 1]} : vector<8x512xf32> to vector<8x128xf32>
    %77 = arith.negf %76 : vector<8x128xf32>
    %78 = math.exp %77 : vector<8x128xf32>
    %cst_36 = arith.constant 1.000000e+00 : f32
    %79 = vector.broadcast %cst_36 : f32 to vector<8x128xf32>
    %80 = arith.addf %79, %78 : vector<8x128xf32>
    %81 = arith.divf %79, %80 : vector<8x128xf32>
    %82 = vector.extract_strided_slice %69 {offsets = [0, 256], sizes = [8, 128], strides = [1, 1]} : vector<8x512xf32> to vector<8x128xf32>
    %83 = math.tanh %82 : vector<8x128xf32>
    %84 = vector.extract_strided_slice %69 {offsets = [0, 384], sizes = [8, 128], strides = [1, 1]} : vector<8x512xf32> to vector<8x128xf32>
    %85 = arith.negf %84 : vector<8x128xf32>
    %86 = math.exp %85 : vector<8x128xf32>
    %cst_37 = arith.constant 1.000000e+00 : f32
    %87 = vector.broadcast %cst_37 : f32 to vector<8x128xf32>
    %88 = arith.addf %87, %86 : vector<8x128xf32>
    %89 = arith.divf %87, %88 : vector<8x128xf32>
    %c0_38 = arith.constant 0 : index
    %c0_39 = arith.constant 0 : index
    %90 = vector.load %arg10[%c0_38, %c0_39] : memref<8x128xf32, #tpu.memory_space<vmem>>, vector<8x128xf32>
    %91 = arith.mulf %81, %90 : vector<8x128xf32>
    %92 = arith.mulf %75, %83 : vector<8x128xf32>
    %93 = arith.addf %91, %92 : vector<8x128xf32>
    %94 = math.tanh %93 : vector<8x128xf32>
    %95 = arith.mulf %89, %94 : vector<8x128xf32>
    %96 = vector.broadcast %59 : i32 to vector<8x128xi32>
    %97 = arith.cmpi sgt, %6, %96 : vector<8x128xi32>
    %c0_40 = arith.constant 0 : index
    %c0_41 = arith.constant 0 : index
    %98 = vector.load %arg10[%c0_40, %c0_41] : memref<8x128xf32, #tpu.memory_space<vmem>>, vector<8x128xf32>
    %99 = arith.select %97, %93, %98 : vector<8x128xi1>, vector<8x128xf32>
    %c0_42 = arith.constant 0 : index
    %c0_43 = arith.constant 0 : index
    %100 = vector.load %arg10[%c0_42, %c0_43] : memref<8x128xf32, #tpu.memory_space<vmem>>, vector<8x128xf32>
    tpu.vector_store %arg10[%c0_42, %c0_43], %99 {strides = array<i32>} : memref<8x128xf32, #tpu.memory_space<vmem>>, vector<8x128xf32>,
    %c0_44 = arith.constant 0 : index
    %c0_45 = arith.constant 0 : index
    %101 = vector.load %arg9[%c0_44, %c0_45] : memref<8x128xf32, #tpu.memory_space<vmem>>, vector<8x128xf32>
    %102 = arith.select %97, %95, %101 : vector<8x128xi1>, vector<8x128xf32>
    %c0_46 = arith.constant 0 : index
    %c0_47 = arith.constant 0 : index
    %103 = vector.load %arg9[%c0_46, %c0_47] : memref<8x128xf32, #tpu.memory_space<vmem>>, vector<8x128xf32>
    tpu.vector_store %arg9[%c0_46, %c0_47], %102 {strides = array<i32>} : memref<8x128xf32, #tpu.memory_space<vmem>>, vector<8x128xf32>,
    %cst_48 = arith.constant 0.000000e+00 : f32
    %104 = vector.broadcast %cst_48 : f32 to vector<8x128xf32>
    %105 = arith.select %97, %95, %104 : vector<8x128xi1>, vector<8x128xf32>
    %106 = arith.index_cast %58 : i32 to index
    %c0_49 = arith.constant 0 : index
    %c0_50 = arith.constant 0 : index
    %107 = vector.load %arg6[%106, %c0_49, %c0_50] : memref<8x8x128xf32, #tpu.memory_space<vmem>>, vector<1x8x128xf32>
    %108 = vector.shape_cast %107 : vector<1x8x128xf32> to vector<8x128xf32>
    %109 = vector.shape_cast %105 : vector<8x128xf32> to vector<1x8x128xf32>
    tpu.vector_store %arg6[%106, %c0_49, %c0_50], %109 {strides = array<i32>} : memref<8x8x128xf32, #tpu.memory_space<vmem>>, vector<1x8x128xf32>,
    %c1_i32 = arith.constant 1 : i32
    %110 = arith.addi %3, %c1_i32 : i32
    %111 = arith.index_cast %c1_i32 : i32 to index
    %c0_51 = arith.constant 0 : index
    %c0_52 = arith.constant 0 : index
    %112 = vector.load %arg2[%111, %c0_51, %c0_52] : memref<8x8x512xbf16, #tpu.memory_space<vmem>>, vector<1x8x512xbf16>
    %113 = vector.shape_cast %112 : vector<1x8x512xbf16> to vector<8x512xbf16>
    %114 = arith.extf %113 : vector<8x512xbf16> to vector<8x512xf32>
    %c0_53 = arith.constant 0 : index
    %c0_54 = arith.constant 0 : index
    %115 = vector.load %arg7[%c0_53, %c0_54] : memref<8x128xf32, #tpu.memory_space<vmem>>, vector<8x128xf32>
    %116 = arith.truncf %115 : vector<8x128xf32> to vector<8x128xbf16>
    %c0_55 = arith.constant 0 : index
    %c0_56 = arith.constant 0 : index
    %c0_57 = arith.constant 0 : index
    %117 = vector.load %arg4[%c0_55, %c0_56, %c0_57] : memref<2x128x512xbf16, #tpu.memory_space<vmem>>, vector<1x128x512xbf16>
    %118 = vector.shape_cast %117 : vector<1x128x512xbf16> to vector<128x512xbf16>
    %cst_58 = arith.constant dense<0.000000e+00> : vector<8x512xf32>
    %119 = tpu.matmul %116, %118, %cst_58 {dimension_numbers = #tpu.dot_dimension_numbers<[1], [0], [0], [1], [0, 0, 1, 1], [], []>} : vector<8x128xbf16>, vector<128x512xbf16>, vector<8x512xf32> -> vector<8x512xf32>
    %120 = arith.addf %114, %119 : vector<8x512xf32>
    %121 = vector.extract_strided_slice %120 {offsets = [0, 0], sizes = [8, 128], strides = [1, 1]} : vector<8x512xf32> to vector<8x128xf32>
    %122 = arith.negf %121 : vector<8x128xf32>
    %123 = math.exp %122 : vector<8x128xf32>
    %cst_59 = arith.constant 1.000000e+00 : f32
    %124 = vector.broadcast %cst_59 : f32 to vector<8x128xf32>
    %125 = arith.addf %124, %123 : vector<8x128xf32>
    %126 = arith.divf %124, %125 : vector<8x128xf32>
    %127 = vector.extract_strided_slice %120 {offsets = [0, 128], sizes = [8, 128], strides = [1, 1]} : vector<8x512xf32> to vector<8x128xf32>
    %128 = arith.negf %127 : vector<8x128xf32>
    %129 = math.exp %128 : vector<8x128xf32>
    %cst_60 = arith.constant 1.000000e+00 : f32
    %130 = vector.broadcast %cst_60 : f32 to vector<8x128xf32>
    %131 = arith.addf %130, %129 : vector<8x128xf32>
    %132 = arith.divf %130, %131 : vector<8x128xf32>
    %133 = vector.extract_strided_slice %120 {offsets = [0, 256], sizes = [8, 128], strides = [1, 1]} : vector<8x512xf32> to vector<8x128xf32>
    %134 = math.tanh %133 : vector<8x128xf32>
    %135 = vector.extract_strided_slice %120 {offsets = [0, 384], sizes = [8, 128], strides = [1, 1]} : vector<8x512xf32> to vector<8x128xf32>
    %136 = arith.negf %135 : vector<8x128xf32>
    %137 = math.exp %136 : vector<8x128xf32>
    %cst_61 = arith.constant 1.000000e+00 : f32
    %138 = vector.broadcast %cst_61 : f32 to vector<8x128xf32>
    %139 = arith.addf %138, %137 : vector<8x128xf32>
    %140 = arith.divf %138, %139 : vector<8x128xf32>
    %c0_62 = arith.constant 0 : index
    %c0_63 = arith.constant 0 : index
    %141 = vector.load %arg8[%c0_62, %c0_63] : memref<8x128xf32, #tpu.memory_space<vmem>>, vector<8x128xf32>
    %142 = arith.mulf %132, %141 : vector<8x128xf32>
    %143 = arith.mulf %126, %134 : vector<8x128xf32>
    %144 = arith.addf %142, %143 : vector<8x128xf32>
    %145 = math.tanh %144 : vector<8x128xf32>
    %146 = arith.mulf %140, %145 : vector<8x128xf32>
    %147 = vector.broadcast %110 : i32 to vector<8x128xi32>
    %148 = arith.cmpi sgt, %6, %147 : vector<8x128xi32>
    %c0_64 = arith.constant 0 : index
    %c0_65 = arith.constant 0 : index
    %149 = vector.load %arg8[%c0_64, %c0_65] : memref<8x128xf32, #tpu.memory_space<vmem>>, vector<8x128xf32>
    %150 = arith.select %148, %144, %149 : vector<8x128xi1>, vector<8x128xf32>
    %c0_66 = arith.constant 0 : index
    %c0_67 = arith.constant 0 : index
    %151 = vector.load %arg8[%c0_66, %c0_67] : memref<8x128xf32, #tpu.memory_space<vmem>>, vector<8x128xf32>
    tpu.vector_store %arg8[%c0_66, %c0_67], %150 {strides = array<i32>} : memref<8x128xf32, #tpu.memory_space<vmem>>, vector<8x128xf32>,
    %c0_68 = arith.constant 0 : index
    %c0_69 = arith.constant 0 : index
    %152 = vector.load %arg7[%c0_68, %c0_69] : memref<8x128xf32, #tpu.memory_space<vmem>>, vector<8x128xf32>
    %153 = arith.select %148, %146, %152 : vector<8x128xi1>, vector<8x128xf32>
    %c0_70 = arith.constant 0 : index
    %c0_71 = arith.constant 0 : index
    %154 = vector.load %arg7[%c0_70, %c0_71] : memref<8x128xf32, #tpu.memory_space<vmem>>, vector<8x128xf32>
    tpu.vector_store %arg7[%c0_70, %c0_71], %153 {strides = array<i32>} : memref<8x128xf32, #tpu.memory_space<vmem>>, vector<8x128xf32>,
    %cst_72 = arith.constant 0.000000e+00 : f32
    %155 = vector.broadcast %cst_72 : f32 to vector<8x128xf32>
    %156 = arith.select %148, %146, %155 : vector<8x128xi1>, vector<8x128xf32>
    %157 = arith.index_cast %c1_i32 : i32 to index
    %c0_73 = arith.constant 0 : index
    %c0_74 = arith.constant 0 : index
    %158 = vector.load %arg5[%157, %c0_73, %c0_74] : memref<8x8x128xf32, #tpu.memory_space<vmem>>, vector<1x8x128xf32>
    %159 = vector.shape_cast %158 : vector<1x8x128xf32> to vector<8x128xf32>
    %160 = vector.shape_cast %156 : vector<8x128xf32> to vector<1x8x128xf32>
    tpu.vector_store %arg5[%157, %c0_73, %c0_74], %160 {strides = array<i32>} : memref<8x8x128xf32, #tpu.memory_space<vmem>>, vector<1x8x128xf32>,
    %c7_i32_75 = arith.constant 7 : i32
    %161 = arith.subi %c7_i32_75, %c1_i32 : i32
    %162 = arith.addi %5, %161 : i32
    %163 = arith.index_cast %161 : i32 to index
    %c0_76 = arith.constant 0 : index
    %c0_77 = arith.constant 0 : index
    %164 = vector.load %arg3[%163, %c0_76, %c0_77] : memref<8x8x512xbf16, #tpu.memory_space<vmem>>, vector<1x8x512xbf16>
    %165 = vector.shape_cast %164 : vector<1x8x512xbf16> to vector<8x512xbf16>
    %166 = arith.extf %165 : vector<8x512xbf16> to vector<8x512xf32>
    %c0_78 = arith.constant 0 : index
    %c0_79 = arith.constant 0 : index
    %167 = vector.load %arg9[%c0_78, %c0_79] : memref<8x128xf32, #tpu.memory_space<vmem>>, vector<8x128xf32>
    %168 = arith.truncf %167 : vector<8x128xf32> to vector<8x128xbf16>
    %c1_80 = arith.constant 1 : index
    %c0_81 = arith.constant 0 : index
    %c0_82 = arith.constant 0 : index
    %169 = vector.load %arg4[%c1_80, %c0_81, %c0_82] : memref<2x128x512xbf16, #tpu.memory_space<vmem>>, vector<1x128x512xbf16>
    %170 = vector.shape_cast %169 : vector<1x128x512xbf16> to vector<128x512xbf16>
    %cst_83 = arith.constant dense<0.000000e+00> : vector<8x512xf32>
    %171 = tpu.matmul %168, %170, %cst_83 {dimension_numbers = #tpu.dot_dimension_numbers<[1], [0], [0], [1], [0, 0, 1, 1], [], []>} : vector<8x128xbf16>, vector<128x512xbf16>, vector<8x512xf32> -> vector<8x512xf32>
    %172 = arith.addf %166, %171 : vector<8x512xf32>
    %173 = vector.extract_strided_slice %172 {offsets = [0, 0], sizes = [8, 128], strides = [1, 1]} : vector<8x512xf32> to vector<8x128xf32>
    %174 = arith.negf %173 : vector<8x128xf32>
    %175 = math.exp %174 : vector<8x128xf32>
    %cst_84 = arith.constant 1.000000e+00 : f32
    %176 = vector.broadcast %cst_84 : f32 to vector<8x128xf32>
    %177 = arith.addf %176, %175 : vector<8x128xf32>
    %178 = arith.divf %176, %177 : vector<8x128xf32>
    %179 = vector.extract_strided_slice %172 {offsets = [0, 128], sizes = [8, 128], strides = [1, 1]} : vector<8x512xf32> to vector<8x128xf32>
    %180 = arith.negf %179 : vector<8x128xf32>
    %181 = math.exp %180 : vector<8x128xf32>
    %cst_85 = arith.constant 1.000000e+00 : f32
    %182 = vector.broadcast %cst_85 : f32 to vector<8x128xf32>
    %183 = arith.addf %182, %181 : vector<8x128xf32>
    %184 = arith.divf %182, %183 : vector<8x128xf32>
    %185 = vector.extract_strided_slice %172 {offsets = [0, 256], sizes = [8, 128], strides = [1, 1]} : vector<8x512xf32> to vector<8x128xf32>
    %186 = math.tanh %185 : vector<8x128xf32>
    %187 = vector.extract_strided_slice %172 {offsets = [0, 384], sizes = [8, 128], strides = [1, 1]} : vector<8x512xf32> to vector<8x128xf32>
    %188 = arith.negf %187 : vector<8x128xf32>
    %189 = math.exp %188 : vector<8x128xf32>
    %cst_86 = arith.constant 1.000000e+00 : f32
    %190 = vector.broadcast %cst_86 : f32 to vector<8x128xf32>
    %191 = arith.addf %190, %189 : vector<8x128xf32>
    %192 = arith.divf %190, %191 : vector<8x128xf32>
    %c0_87 = arith.constant 0 : index
    %c0_88 = arith.constant 0 : index
    %193 = vector.load %arg10[%c0_87, %c0_88] : memref<8x128xf32, #tpu.memory_space<vmem>>, vector<8x128xf32>
    %194 = arith.mulf %184, %193 : vector<8x128xf32>
    %195 = arith.mulf %178, %186 : vector<8x128xf32>
    %196 = arith.addf %194, %195 : vector<8x128xf32>
    %197 = math.tanh %196 : vector<8x128xf32>
    %198 = arith.mulf %192, %197 : vector<8x128xf32>
    %199 = vector.broadcast %162 : i32 to vector<8x128xi32>
    %200 = arith.cmpi sgt, %6, %199 : vector<8x128xi32>
    %c0_89 = arith.constant 0 : index
    %c0_90 = arith.constant 0 : index
    %201 = vector.load %arg10[%c0_89, %c0_90] : memref<8x128xf32, #tpu.memory_space<vmem>>, vector<8x128xf32>
    %202 = arith.select %200, %196, %201 : vector<8x128xi1>, vector<8x128xf32>
    %c0_91 = arith.constant 0 : index
    %c0_92 = arith.constant 0 : index
    %203 = vector.load %arg10[%c0_91, %c0_92] : memref<8x128xf32, #tpu.memory_space<vmem>>, vector<8x128xf32>
    tpu.vector_store %arg10[%c0_91, %c0_92], %202 {strides = array<i32>} : memref<8x128xf32, #tpu.memory_space<vmem>>, vector<8x128xf32>,
    %c0_93 = arith.constant 0 : index
    %c0_94 = arith.constant 0 : index
    %204 = vector.load %arg9[%c0_93, %c0_94] : memref<8x128xf32, #tpu.memory_space<vmem>>, vector<8x128xf32>
    %205 = arith.select %200, %198, %204 : vector<8x128xi1>, vector<8x128xf32>
    %c0_95 = arith.constant 0 : index
    %c0_96 = arith.constant 0 : index
    %206 = vector.load %arg9[%c0_95, %c0_96] : memref<8x128xf32, #tpu.memory_space<vmem>>, vector<8x128xf32>
    tpu.vector_store %arg9[%c0_95, %c0_96], %205 {strides = array<i32>} : memref<8x128xf32, #tpu.memory_space<vmem>>, vector<8x128xf32>,
    %cst_97 = arith.constant 0.000000e+00 : f32
    %207 = vector.broadcast %cst_97 : f32 to vector<8x128xf32>
    %208 = arith.select %200, %198, %207 : vector<8x128xi1>, vector<8x128xf32>
    %209 = arith.index_cast %161 : i32 to index
    %c0_98 = arith.constant 0 : index
    %c0_99 = arith.constant 0 : index
    %210 = vector.load %arg6[%209, %c0_98, %c0_99] : memref<8x8x128xf32, #tpu.memory_space<vmem>>, vector<1x8x128xf32>
    %211 = vector.shape_cast %210 : vector<1x8x128xf32> to vector<8x128xf32>
    %212 = vector.shape_cast %208 : vector<8x128xf32> to vector<1x8x128xf32>
    tpu.vector_store %arg6[%209, %c0_98, %c0_99], %212 {strides = array<i32>} : memref<8x8x128xf32, #tpu.memory_space<vmem>>, vector<1x8x128xf32>,
    %c2_i32 = arith.constant 2 : i32
    %213 = arith.addi %3, %c2_i32 : i32
    %214 = arith.index_cast %c2_i32 : i32 to index
    %c0_100 = arith.constant 0 : index
    %c0_101 = arith.constant 0 : index
    %215 = vector.load %arg2[%214, %c0_100, %c0_101] : memref<8x8x512xbf16, #tpu.memory_space<vmem>>, vector<1x8x512xbf16>
    %216 = vector.shape_cast %215 : vector<1x8x512xbf16> to vector<8x512xbf16>
    %217 = arith.extf %216 : vector<8x512xbf16> to vector<8x512xf32>
    %c0_102 = arith.constant 0 : index
    %c0_103 = arith.constant 0 : index
    %218 = vector.load %arg7[%c0_102, %c0_103] : memref<8x128xf32, #tpu.memory_space<vmem>>, vector<8x128xf32>
    %219 = arith.truncf %218 : vector<8x128xf32> to vector<8x128xbf16>
    %c0_104 = arith.constant 0 : index
    %c0_105 = arith.constant 0 : index
    %c0_106 = arith.constant 0 : index
    %220 = vector.load %arg4[%c0_104, %c0_105, %c0_106] : memref<2x128x512xbf16, #tpu.memory_space<vmem>>, vector<1x128x512xbf16>
    %221 = vector.shape_cast %220 : vector<1x128x512xbf16> to vector<128x512xbf16>
    %cst_107 = arith.constant dense<0.000000e+00> : vector<8x512xf32>
    %222 = tpu.matmul %219, %221, %cst_107 {dimension_numbers = #tpu.dot_dimension_numbers<[1], [0], [0], [1], [0, 0, 1, 1], [], []>} : vector<8x128xbf16>, vector<128x512xbf16>, vector<8x512xf32> -> vector<8x512xf32>
    %223 = arith.addf %217, %222 : vector<8x512xf32>
    %224 = vector.extract_strided_slice %223 {offsets = [0, 0], sizes = [8, 128], strides = [1, 1]} : vector<8x512xf32> to vector<8x128xf32>
    %225 = arith.negf %224 : vector<8x128xf32>
    %226 = math.exp %225 : vector<8x128xf32>
    %cst_108 = arith.constant 1.000000e+00 : f32
    %227 = vector.broadcast %cst_108 : f32 to vector<8x128xf32>
    %228 = arith.addf %227, %226 : vector<8x128xf32>
    %229 = arith.divf %227, %228 : vector<8x128xf32>
    %230 = vector.extract_strided_slice %223 {offsets = [0, 128], sizes = [8, 128], strides = [1, 1]} : vector<8x512xf32> to vector<8x128xf32>
    %231 = arith.negf %230 : vector<8x128xf32>
    %232 = math.exp %231 : vector<8x128xf32>
    %cst_109 = arith.constant 1.000000e+00 : f32
    %233 = vector.broadcast %cst_109 : f32 to vector<8x128xf32>
    %234 = arith.addf %233, %232 : vector<8x128xf32>
    %235 = arith.divf %233, %234 : vector<8x128xf32>
    %236 = vector.extract_strided_slice %223 {offsets = [0, 256], sizes = [8, 128], strides = [1, 1]} : vector<8x512xf32> to vector<8x128xf32>
    %237 = math.tanh %236 : vector<8x128xf32>
    %238 = vector.extract_strided_slice %223 {offsets = [0, 384], sizes = [8, 128], strides = [1, 1]} : vector<8x512xf32> to vector<8x128xf32>
    %239 = arith.negf %238 : vector<8x128xf32>
    %240 = math.exp %239 : vector<8x128xf32>
    %cst_110 = arith.constant 1.000000e+00 : f32
    %241 = vector.broadcast %cst_110 : f32 to vector<8x128xf32>
    %242 = arith.addf %241, %240 : vector<8x128xf32>
    %243 = arith.divf %241, %242 : vector<8x128xf32>
    %c0_111 = arith.constant 0 : index
    %c0_112 = arith.constant 0 : index
    %244 = vector.load %arg8[%c0_111, %c0_112] : memref<8x128xf32, #tpu.memory_space<vmem>>, vector<8x128xf32>
    %245 = arith.mulf %235, %244 : vector<8x128xf32>
    %246 = arith.mulf %229, %237 : vector<8x128xf32>
    %247 = arith.addf %245, %246 : vector<8x128xf32>
    %248 = math.tanh %247 : vector<8x128xf32>
    %249 = arith.mulf %243, %248 : vector<8x128xf32>
    %250 = vector.broadcast %213 : i32 to vector<8x128xi32>
    %251 = arith.cmpi sgt, %6, %250 : vector<8x128xi32>
    %c0_113 = arith.constant 0 : index
    %c0_114 = arith.constant 0 : index
    %252 = vector.load %arg8[%c0_113, %c0_114] : memref<8x128xf32, #tpu.memory_space<vmem>>, vector<8x128xf32>
    %253 = arith.select %251, %247, %252 : vector<8x128xi1>, vector<8x128xf32>
    %c0_115 = arith.constant 0 : index
    %c0_116 = arith.constant 0 : index
    %254 = vector.load %arg8[%c0_115, %c0_116] : memref<8x128xf32, #tpu.memory_space<vmem>>, vector<8x128xf32>
    tpu.vector_store %arg8[%c0_115, %c0_116], %253 {strides = array<i32>} : memref<8x128xf32, #tpu.memory_space<vmem>>, vector<8x128xf32>,
    %c0_117 = arith.constant 0 : index
    %c0_118 = arith.constant 0 : index
    %255 = vector.load %arg7[%c0_117, %c0_118] : memref<8x128xf32, #tpu.memory_space<vmem>>, vector<8x128xf32>
    %256 = arith.select %251, %249, %255 : vector<8x128xi1>, vector<8x128xf32>
    %c0_119 = arith.constant 0 : index
    %c0_120 = arith.constant 0 : index
    %257 = vector.load %arg7[%c0_119, %c0_120] : memref<8x128xf32, #tpu.memory_space<vmem>>, vector<8x128xf32>
    tpu.vector_store %arg7[%c0_119, %c0_120], %256 {strides = array<i32>} : memref<8x128xf32, #tpu.memory_space<vmem>>, vector<8x128xf32>,
    %cst_121 = arith.constant 0.000000e+00 : f32
    %258 = vector.broadcast %cst_121 : f32 to vector<8x128xf32>
    %259 = arith.select %251, %249, %258 : vector<8x128xi1>, vector<8x128xf32>
    %260 = arith.index_cast %c2_i32 : i32 to index
    %c0_122 = arith.constant 0 : index
    %c0_123 = arith.constant 0 : index
    %261 = vector.load %arg5[%260, %c0_122, %c0_123] : memref<8x8x128xf32, #tpu.memory_space<vmem>>, vector<1x8x128xf32>
    %262 = vector.shape_cast %261 : vector<1x8x128xf32> to vector<8x128xf32>
    %263 = vector.shape_cast %259 : vector<8x128xf32> to vector<1x8x128xf32>
    tpu.vector_store %arg5[%260, %c0_122, %c0_123], %263 {strides = array<i32>} : memref<8x8x128xf32, #tpu.memory_space<vmem>>, vector<1x8x128xf32>,
    %c7_i32_124 = arith.constant 7 : i32
    %264 = arith.subi %c7_i32_124, %c2_i32 : i32
    %265 = arith.addi %5, %264 : i32
    %266 = arith.index_cast %264 : i32 to index
    %c0_125 = arith.constant 0 : index
    %c0_126 = arith.constant 0 : index
    %267 = vector.load %arg3[%266, %c0_125, %c0_126] : memref<8x8x512xbf16, #tpu.memory_space<vmem>>, vector<1x8x512xbf16>
    %268 = vector.shape_cast %267 : vector<1x8x512xbf16> to vector<8x512xbf16>
    %269 = arith.extf %268 : vector<8x512xbf16> to vector<8x512xf32>
    %c0_127 = arith.constant 0 : index
    %c0_128 = arith.constant 0 : index
    %270 = vector.load %arg9[%c0_127, %c0_128] : memref<8x128xf32, #tpu.memory_space<vmem>>, vector<8x128xf32>
    %271 = arith.truncf %270 : vector<8x128xf32> to vector<8x128xbf16>
    %c1_129 = arith.constant 1 : index
    %c0_130 = arith.constant 0 : index
    %c0_131 = arith.constant 0 : index
    %272 = vector.load %arg4[%c1_129, %c0_130, %c0_131] : memref<2x128x512xbf16, #tpu.memory_space<vmem>>, vector<1x128x512xbf16>
    %273 = vector.shape_cast %272 : vector<1x128x512xbf16> to vector<128x512xbf16>
    %cst_132 = arith.constant dense<0.000000e+00> : vector<8x512xf32>
    %274 = tpu.matmul %271, %273, %cst_132 {dimension_numbers = #tpu.dot_dimension_numbers<[1], [0], [0], [1], [0, 0, 1, 1], [], []>} : vector<8x128xbf16>, vector<128x512xbf16>, vector<8x512xf32> -> vector<8x512xf32>
    %275 = arith.addf %269, %274 : vector<8x512xf32>
    %276 = vector.extract_strided_slice %275 {offsets = [0, 0], sizes = [8, 128], strides = [1, 1]} : vector<8x512xf32> to vector<8x128xf32>
    %277 = arith.negf %276 : vector<8x128xf32>
    %278 = math.exp %277 : vector<8x128xf32>
    %cst_133 = arith.constant 1.000000e+00 : f32
    %279 = vector.broadcast %cst_133 : f32 to vector<8x128xf32>
    %280 = arith.addf %279, %278 : vector<8x128xf32>
    %281 = arith.divf %279, %280 : vector<8x128xf32>
    %282 = vector.extract_strided_slice %275 {offsets = [0, 128], sizes = [8, 128], strides = [1, 1]} : vector<8x512xf32> to vector<8x128xf32>
    %283 = arith.negf %282 : vector<8x128xf32>
    %284 = math.exp %283 : vector<8x128xf32>
    %cst_134 = arith.constant 1.000000e+00 : f32
    %285 = vector.broadcast %cst_134 : f32 to vector<8x128xf32>
    %286 = arith.addf %285, %284 : vector<8x128xf32>
    %287 = arith.divf %285, %286 : vector<8x128xf32>
    %288 = vector.extract_strided_slice %275 {offsets = [0, 256], sizes = [8, 128], strides = [1, 1]} : vector<8x512xf32> to vector<8x128xf32>
    %289 = math.tanh %288 : vector<8x128xf32>
    %290 = vector.extract_strided_slice %275 {offsets = [0, 384], sizes = [8, 128], strides = [1, 1]} : vector<8x512xf32> to vector<8x128xf32>
    %291 = arith.negf %290 : vector<8x128xf32>
    %292 = math.exp %291 : vector<8x128xf32>
    %cst_135 = arith.constant 1.000000e+00 : f32
    %293 = vector.broadcast %cst_135 : f32 to vector<8x128xf32>
    %294 = arith.addf %293, %292 : vector<8x128xf32>
    %295 = arith.divf %293, %294 : vector<8x128xf32>
    %c0_136 = arith.constant 0 : index
    %c0_137 = arith.constant 0 : index
    %296 = vector.load %arg10[%c0_136, %c0_137] : memref<8x128xf32, #tpu.memory_space<vmem>>, vector<8x128xf32>
    %297 = arith.mulf %287, %296 : vector<8x128xf32>
    %298 = arith.mulf %281, %289 : vector<8x128xf32>
    %299 = arith.addf %297, %298 : vector<8x128xf32>
    %300 = math.tanh %299 : vector<8x128xf32>
    %301 = arith.mulf %295, %300 : vector<8x128xf32>
    %302 = vector.broadcast %265 : i32 to vector<8x128xi32>
    %303 = arith.cmpi sgt, %6, %302 : vector<8x128xi32>
    %c0_138 = arith.constant 0 : index
    %c0_139 = arith.constant 0 : index
    %304 = vector.load %arg10[%c0_138, %c0_139] : memref<8x128xf32, #tpu.memory_space<vmem>>, vector<8x128xf32>
    %305 = arith.select %303, %299, %304 : vector<8x128xi1>, vector<8x128xf32>
    %c0_140 = arith.constant 0 : index
    %c0_141 = arith.constant 0 : index
    %306 = vector.load %arg10[%c0_140, %c0_141] : memref<8x128xf32, #tpu.memory_space<vmem>>, vector<8x128xf32>
    tpu.vector_store %arg10[%c0_140, %c0_141], %305 {strides = array<i32>} : memref<8x128xf32, #tpu.memory_space<vmem>>, vector<8x128xf32>,
    %c0_142 = arith.constant 0 : index
    %c0_143 = arith.constant 0 : index
    %307 = vector.load %arg9[%c0_142, %c0_143] : memref<8x128xf32, #tpu.memory_space<vmem>>, vector<8x128xf32>
    %308 = arith.select %303, %301, %307 : vector<8x128xi1>, vector<8x128xf32>
    %c0_144 = arith.constant 0 : index
    %c0_145 = arith.constant 0 : index
    %309 = vector.load %arg9[%c0_144, %c0_145] : memref<8x128xf32, #tpu.memory_space<vmem>>, vector<8x128xf32>
    tpu.vector_store %arg9[%c0_144, %c0_145], %308 {strides = array<i32>} : memref<8x128xf32, #tpu.memory_space<vmem>>, vector<8x128xf32>,
    %cst_146 = arith.constant 0.000000e+00 : f32
    %310 = vector.broadcast %cst_146 : f32 to vector<8x128xf32>
    %311 = arith.select %303, %301, %310 : vector<8x128xi1>, vector<8x128xf32>
    %312 = arith.index_cast %264 : i32 to index
    %c0_147 = arith.constant 0 : index
    %c0_148 = arith.constant 0 : index
    %313 = vector.load %arg6[%312, %c0_147, %c0_148] : memref<8x8x128xf32, #tpu.memory_space<vmem>>, vector<1x8x128xf32>
    %314 = vector.shape_cast %313 : vector<1x8x128xf32> to vector<8x128xf32>
    %315 = vector.shape_cast %311 : vector<8x128xf32> to vector<1x8x128xf32>
    tpu.vector_store %arg6[%312, %c0_147, %c0_148], %315 {strides = array<i32>} : memref<8x8x128xf32, #tpu.memory_space<vmem>>, vector<1x8x128xf32>,
    %c3_i32 = arith.constant 3 : i32
    %316 = arith.addi %3, %c3_i32 : i32
    %317 = arith.index_cast %c3_i32 : i32 to index
    %c0_149 = arith.constant 0 : index
    %c0_150 = arith.constant 0 : index
    %318 = vector.load %arg2[%317, %c0_149, %c0_150] : memref<8x8x512xbf16, #tpu.memory_space<vmem>>, vector<1x8x512xbf16>
    %319 = vector.shape_cast %318 : vector<1x8x512xbf16> to vector<8x512xbf16>
    %320 = arith.extf %319 : vector<8x512xbf16> to vector<8x512xf32>
    %c0_151 = arith.constant 0 : index
    %c0_152 = arith.constant 0 : index
    %321 = vector.load %arg7[%c0_151, %c0_152] : memref<8x128xf32, #tpu.memory_space<vmem>>, vector<8x128xf32>
    %322 = arith.truncf %321 : vector<8x128xf32> to vector<8x128xbf16>
    %c0_153 = arith.constant 0 : index
    %c0_154 = arith.constant 0 : index
    %c0_155 = arith.constant 0 : index
    %323 = vector.load %arg4[%c0_153, %c0_154, %c0_155] : memref<2x128x512xbf16, #tpu.memory_space<vmem>>, vector<1x128x512xbf16>
    %324 = vector.shape_cast %323 : vector<1x128x512xbf16> to vector<128x512xbf16>
    %cst_156 = arith.constant dense<0.000000e+00> : vector<8x512xf32>
    %325 = tpu.matmul %322, %324, %cst_156 {dimension_numbers = #tpu.dot_dimension_numbers<[1], [0], [0], [1], [0, 0, 1, 1], [], []>} : vector<8x128xbf16>, vector<128x512xbf16>, vector<8x512xf32> -> vector<8x512xf32>
    %326 = arith.addf %320, %325 : vector<8x512xf32>
    %327 = vector.extract_strided_slice %326 {offsets = [0, 0], sizes = [8, 128], strides = [1, 1]} : vector<8x512xf32> to vector<8x128xf32>
    %328 = arith.negf %327 : vector<8x128xf32>
    %329 = math.exp %328 : vector<8x128xf32>
    %cst_157 = arith.constant 1.000000e+00 : f32
    %330 = vector.broadcast %cst_157 : f32 to vector<8x128xf32>
    %331 = arith.addf %330, %329 : vector<8x128xf32>
    %332 = arith.divf %330, %331 : vector<8x128xf32>
    %333 = vector.extract_strided_slice %326 {offsets = [0, 128], sizes = [8, 128], strides = [1, 1]} : vector<8x512xf32> to vector<8x128xf32>
    %334 = arith.negf %333 : vector<8x128xf32>
    %335 = math.exp %334 : vector<8x128xf32>
    %cst_158 = arith.constant 1.000000e+00 : f32
    %336 = vector.broadcast %cst_158 : f32 to vector<8x128xf32>
    %337 = arith.addf %336, %335 : vector<8x128xf32>
    %338 = arith.divf %336, %337 : vector<8x128xf32>
    %339 = vector.extract_strided_slice %326 {offsets = [0, 256], sizes = [8, 128], strides = [1, 1]} : vector<8x512xf32> to vector<8x128xf32>
    %340 = math.tanh %339 : vector<8x128xf32>
    %341 = vector.extract_strided_slice %326 {offsets = [0, 384], sizes = [8, 128], strides = [1, 1]} : vector<8x512xf32> to vector<8x128xf32>
    %342 = arith.negf %341 : vector<8x128xf32>
    %343 = math.exp %342 : vector<8x128xf32>
    %cst_159 = arith.constant 1.000000e+00 : f32
    %344 = vector.broadcast %cst_159 : f32 to vector<8x128xf32>
    %345 = arith.addf %344, %343 : vector<8x128xf32>
    %346 = arith.divf %344, %345 : vector<8x128xf32>
    %c0_160 = arith.constant 0 : index
    %c0_161 = arith.constant 0 : index
    %347 = vector.load %arg8[%c0_160, %c0_161] : memref<8x128xf32, #tpu.memory_space<vmem>>, vector<8x128xf32>
    %348 = arith.mulf %338, %347 : vector<8x128xf32>
    %349 = arith.mulf %332, %340 : vector<8x128xf32>
    %350 = arith.addf %348, %349 : vector<8x128xf32>
    %351 = math.tanh %350 : vector<8x128xf32>
    %352 = arith.mulf %346, %351 : vector<8x128xf32>
    %353 = vector.broadcast %316 : i32 to vector<8x128xi32>
    %354 = arith.cmpi sgt, %6, %353 : vector<8x128xi32>
    %c0_162 = arith.constant 0 : index
    %c0_163 = arith.constant 0 : index
    %355 = vector.load %arg8[%c0_162, %c0_163] : memref<8x128xf32, #tpu.memory_space<vmem>>, vector<8x128xf32>
    %356 = arith.select %354, %350, %355 : vector<8x128xi1>, vector<8x128xf32>
    %c0_164 = arith.constant 0 : index
    %c0_165 = arith.constant 0 : index
    %357 = vector.load %arg8[%c0_164, %c0_165] : memref<8x128xf32, #tpu.memory_space<vmem>>, vector<8x128xf32>
    tpu.vector_store %arg8[%c0_164, %c0_165], %356 {strides = array<i32>} : memref<8x128xf32, #tpu.memory_space<vmem>>, vector<8x128xf32>,
    %c0_166 = arith.constant 0 : index
    %c0_167 = arith.constant 0 : index
    %358 = vector.load %arg7[%c0_166, %c0_167] : memref<8x128xf32, #tpu.memory_space<vmem>>, vector<8x128xf32>
    %359 = arith.select %354, %352, %358 : vector<8x128xi1>, vector<8x128xf32>
    %c0_168 = arith.constant 0 : index
    %c0_169 = arith.constant 0 : index
    %360 = vector.load %arg7[%c0_168, %c0_169] : memref<8x128xf32, #tpu.memory_space<vmem>>, vector<8x128xf32>
    tpu.vector_store %arg7[%c0_168, %c0_169], %359 {strides = array<i32>} : memref<8x128xf32, #tpu.memory_space<vmem>>, vector<8x128xf32>,
    %cst_170 = arith.constant 0.000000e+00 : f32
    %361 = vector.broadcast %cst_170 : f32 to vector<8x128xf32>
    %362 = arith.select %354, %352, %361 : vector<8x128xi1>, vector<8x128xf32>
    %363 = arith.index_cast %c3_i32 : i32 to index
    %c0_171 = arith.constant 0 : index
    %c0_172 = arith.constant 0 : index
    %364 = vector.load %arg5[%363, %c0_171, %c0_172] : memref<8x8x128xf32, #tpu.memory_space<vmem>>, vector<1x8x128xf32>
    %365 = vector.shape_cast %364 : vector<1x8x128xf32> to vector<8x128xf32>
    %366 = vector.shape_cast %362 : vector<8x128xf32> to vector<1x8x128xf32>
    tpu.vector_store %arg5[%363, %c0_171, %c0_172], %366 {strides = array<i32>} : memref<8x8x128xf32, #tpu.memory_space<vmem>>, vector<1x8x128xf32>,
    %c7_i32_173 = arith.constant 7 : i32
    %367 = arith.subi %c7_i32_173, %c3_i32 : i32
    %368 = arith.addi %5, %367 : i32
    %369 = arith.index_cast %367 : i32 to index
    %c0_174 = arith.constant 0 : index
    %c0_175 = arith.constant 0 : index
    %370 = vector.load %arg3[%369, %c0_174, %c0_175] : memref<8x8x512xbf16, #tpu.memory_space<vmem>>, vector<1x8x512xbf16>
    %371 = vector.shape_cast %370 : vector<1x8x512xbf16> to vector<8x512xbf16>
    %372 = arith.extf %371 : vector<8x512xbf16> to vector<8x512xf32>
    %c0_176 = arith.constant 0 : index
    %c0_177 = arith.constant 0 : index
    %373 = vector.load %arg9[%c0_176, %c0_177] : memref<8x128xf32, #tpu.memory_space<vmem>>, vector<8x128xf32>
    %374 = arith.truncf %373 : vector<8x128xf32> to vector<8x128xbf16>
    %c1_178 = arith.constant 1 : index
    %c0_179 = arith.constant 0 : index
    %c0_180 = arith.constant 0 : index
    %375 = vector.load %arg4[%c1_178, %c0_179, %c0_180] : memref<2x128x512xbf16, #tpu.memory_space<vmem>>, vector<1x128x512xbf16>
    %376 = vector.shape_cast %375 : vector<1x128x512xbf16> to vector<128x512xbf16>
    %cst_181 = arith.constant dense<0.000000e+00> : vector<8x512xf32>
    %377 = tpu.matmul %374, %376, %cst_181 {dimension_numbers = #tpu.dot_dimension_numbers<[1], [0], [0], [1], [0, 0, 1, 1], [], []>} : vector<8x128xbf16>, vector<128x512xbf16>, vector<8x512xf32> -> vector<8x512xf32>
    %378 = arith.addf %372, %377 : vector<8x512xf32>
    %379 = vector.extract_strided_slice %378 {offsets = [0, 0], sizes = [8, 128], strides = [1, 1]} : vector<8x512xf32> to vector<8x128xf32>
    %380 = arith.negf %379 : vector<8x128xf32>
    %381 = math.exp %380 : vector<8x128xf32>
    %cst_182 = arith.constant 1.000000e+00 : f32
    %382 = vector.broadcast %cst_182 : f32 to vector<8x128xf32>
    %383 = arith.addf %382, %381 : vector<8x128xf32>
    %384 = arith.divf %382, %383 : vector<8x128xf32>
    %385 = vector.extract_strided_slice %378 {offsets = [0, 128], sizes = [8, 128], strides = [1, 1]} : vector<8x512xf32> to vector<8x128xf32>
    %386 = arith.negf %385 : vector<8x128xf32>
    %387 = math.exp %386 : vector<8x128xf32>
    %cst_183 = arith.constant 1.000000e+00 : f32
    %388 = vector.broadcast %cst_183 : f32 to vector<8x128xf32>
    %389 = arith.addf %388, %387 : vector<8x128xf32>
    %390 = arith.divf %388, %389 : vector<8x128xf32>
    %391 = vector.extract_strided_slice %378 {offsets = [0, 256], sizes = [8, 128], strides = [1, 1]} : vector<8x512xf32> to vector<8x128xf32>
    %392 = math.tanh %391 : vector<8x128xf32>
    %393 = vector.extract_strided_slice %378 {offsets = [0, 384], sizes = [8, 128], strides = [1, 1]} : vector<8x512xf32> to vector<8x128xf32>
    %394 = arith.negf %393 : vector<8x128xf32>
    %395 = math.exp %394 : vector<8x128xf32>
    %cst_184 = arith.constant 1.000000e+00 : f32
    %396 = vector.broadcast %cst_184 : f32 to vector<8x128xf32>
    %397 = arith.addf %396, %395 : vector<8x128xf32>
    %398 = arith.divf %396, %397 : vector<8x128xf32>
    %c0_185 = arith.constant 0 : index
    %c0_186 = arith.constant 0 : index
    %399 = vector.load %arg10[%c0_185, %c0_186] : memref<8x128xf32, #tpu.memory_space<vmem>>, vector<8x128xf32>
    %400 = arith.mulf %390, %399 : vector<8x128xf32>
    %401 = arith.mulf %384, %392 : vector<8x128xf32>
    %402 = arith.addf %400, %401 : vector<8x128xf32>
    %403 = math.tanh %402 : vector<8x128xf32>
    %404 = arith.mulf %398, %403 : vector<8x128xf32>
    %405 = vector.broadcast %368 : i32 to vector<8x128xi32>
    %406 = arith.cmpi sgt, %6, %405 : vector<8x128xi32>
    %c0_187 = arith.constant 0 : index
    %c0_188 = arith.constant 0 : index
    %407 = vector.load %arg10[%c0_187, %c0_188] : memref<8x128xf32, #tpu.memory_space<vmem>>, vector<8x128xf32>
    %408 = arith.select %406, %402, %407 : vector<8x128xi1>, vector<8x128xf32>
    %c0_189 = arith.constant 0 : index
    %c0_190 = arith.constant 0 : index
    %409 = vector.load %arg10[%c0_189, %c0_190] : memref<8x128xf32, #tpu.memory_space<vmem>>, vector<8x128xf32>
    tpu.vector_store %arg10[%c0_189, %c0_190], %408 {strides = array<i32>} : memref<8x128xf32, #tpu.memory_space<vmem>>, vector<8x128xf32>,
    %c0_191 = arith.constant 0 : index
    %c0_192 = arith.constant 0 : index
    %410 = vector.load %arg9[%c0_191, %c0_192] : memref<8x128xf32, #tpu.memory_space<vmem>>, vector<8x128xf32>
    %411 = arith.select %406, %404, %410 : vector<8x128xi1>, vector<8x128xf32>
    %c0_193 = arith.constant 0 : index
    %c0_194 = arith.constant 0 : index
    %412 = vector.load %arg9[%c0_193, %c0_194] : memref<8x128xf32, #tpu.memory_space<vmem>>, vector<8x128xf32>
    tpu.vector_store %arg9[%c0_193, %c0_194], %411 {strides = array<i32>} : memref<8x128xf32, #tpu.memory_space<vmem>>, vector<8x128xf32>,
    %cst_195 = arith.constant 0.000000e+00 : f32
    %413 = vector.broadcast %cst_195 : f32 to vector<8x128xf32>
    %414 = arith.select %406, %404, %413 : vector<8x128xi1>, vector<8x128xf32>
    %415 = arith.index_cast %367 : i32 to index
    %c0_196 = arith.constant 0 : index
    %c0_197 = arith.constant 0 : index
    %416 = vector.load %arg6[%415, %c0_196, %c0_197] : memref<8x8x128xf32, #tpu.memory_space<vmem>>, vector<1x8x128xf32>
    %417 = vector.shape_cast %416 : vector<1x8x128xf32> to vector<8x128xf32>
    %418 = vector.shape_cast %414 : vector<8x128xf32> to vector<1x8x128xf32>
    tpu.vector_store %arg6[%415, %c0_196, %c0_197], %418 {strides = array<i32>} : memref<8x8x128xf32, #tpu.memory_space<vmem>>, vector<1x8x128xf32>,
    %c4_i32 = arith.constant 4 : i32
    %419 = arith.addi %3, %c4_i32 : i32
    %420 = arith.index_cast %c4_i32 : i32 to index
    %c0_198 = arith.constant 0 : index
    %c0_199 = arith.constant 0 : index
    %421 = vector.load %arg2[%420, %c0_198, %c0_199] : memref<8x8x512xbf16, #tpu.memory_space<vmem>>, vector<1x8x512xbf16>
    %422 = vector.shape_cast %421 : vector<1x8x512xbf16> to vector<8x512xbf16>
    %423 = arith.extf %422 : vector<8x512xbf16> to vector<8x512xf32>
    %c0_200 = arith.constant 0 : index
    %c0_201 = arith.constant 0 : index
    %424 = vector.load %arg7[%c0_200, %c0_201] : memref<8x128xf32, #tpu.memory_space<vmem>>, vector<8x128xf32>
    %425 = arith.truncf %424 : vector<8x128xf32> to vector<8x128xbf16>
    %c0_202 = arith.constant 0 : index
    %c0_203 = arith.constant 0 : index
    %c0_204 = arith.constant 0 : index
    %426 = vector.load %arg4[%c0_202, %c0_203, %c0_204] : memref<2x128x512xbf16, #tpu.memory_space<vmem>>, vector<1x128x512xbf16>
    %427 = vector.shape_cast %426 : vector<1x128x512xbf16> to vector<128x512xbf16>
    %cst_205 = arith.constant dense<0.000000e+00> : vector<8x512xf32>
    %428 = tpu.matmul %425, %427, %cst_205 {dimension_numbers = #tpu.dot_dimension_numbers<[1], [0], [0], [1], [0, 0, 1, 1], [], []>} : vector<8x128xbf16>, vector<128x512xbf16>, vector<8x512xf32> -> vector<8x512xf32>
    %429 = arith.addf %423, %428 : vector<8x512xf32>
    %430 = vector.extract_strided_slice %429 {offsets = [0, 0], sizes = [8, 128], strides = [1, 1]} : vector<8x512xf32> to vector<8x128xf32>
    %431 = arith.negf %430 : vector<8x128xf32>
    %432 = math.exp %431 : vector<8x128xf32>
    %cst_206 = arith.constant 1.000000e+00 : f32
    %433 = vector.broadcast %cst_206 : f32 to vector<8x128xf32>
    %434 = arith.addf %433, %432 : vector<8x128xf32>
    %435 = arith.divf %433, %434 : vector<8x128xf32>
    %436 = vector.extract_strided_slice %429 {offsets = [0, 128], sizes = [8, 128], strides = [1, 1]} : vector<8x512xf32> to vector<8x128xf32>
    %437 = arith.negf %436 : vector<8x128xf32>
    %438 = math.exp %437 : vector<8x128xf32>
    %cst_207 = arith.constant 1.000000e+00 : f32
    %439 = vector.broadcast %cst_207 : f32 to vector<8x128xf32>
    %440 = arith.addf %439, %438 : vector<8x128xf32>
    %441 = arith.divf %439, %440 : vector<8x128xf32>
    %442 = vector.extract_strided_slice %429 {offsets = [0, 256], sizes = [8, 128], strides = [1, 1]} : vector<8x512xf32> to vector<8x128xf32>
    %443 = math.tanh %442 : vector<8x128xf32>
    %444 = vector.extract_strided_slice %429 {offsets = [0, 384], sizes = [8, 128], strides = [1, 1]} : vector<8x512xf32> to vector<8x128xf32>
    %445 = arith.negf %444 : vector<8x128xf32>
    %446 = math.exp %445 : vector<8x128xf32>
    %cst_208 = arith.constant 1.000000e+00 : f32
    %447 = vector.broadcast %cst_208 : f32 to vector<8x128xf32>
    %448 = arith.addf %447, %446 : vector<8x128xf32>
    %449 = arith.divf %447, %448 : vector<8x128xf32>
    %c0_209 = arith.constant 0 : index
    %c0_210 = arith.constant 0 : index
    %450 = vector.load %arg8[%c0_209, %c0_210] : memref<8x128xf32, #tpu.memory_space<vmem>>, vector<8x128xf32>
    %451 = arith.mulf %441, %450 : vector<8x128xf32>
    %452 = arith.mulf %435, %443 : vector<8x128xf32>
    %453 = arith.addf %451, %452 : vector<8x128xf32>
    %454 = math.tanh %453 : vector<8x128xf32>
    %455 = arith.mulf %449, %454 : vector<8x128xf32>
    %456 = vector.broadcast %419 : i32 to vector<8x128xi32>
    %457 = arith.cmpi sgt, %6, %456 : vector<8x128xi32>
    %c0_211 = arith.constant 0 : index
    %c0_212 = arith.constant 0 : index
    %458 = vector.load %arg8[%c0_211, %c0_212] : memref<8x128xf32, #tpu.memory_space<vmem>>, vector<8x128xf32>
    %459 = arith.select %457, %453, %458 : vector<8x128xi1>, vector<8x128xf32>
    %c0_213 = arith.constant 0 : index
    %c0_214 = arith.constant 0 : index
    %460 = vector.load %arg8[%c0_213, %c0_214] : memref<8x128xf32, #tpu.memory_space<vmem>>, vector<8x128xf32>
    tpu.vector_store %arg8[%c0_213, %c0_214], %459 {strides = array<i32>} : memref<8x128xf32, #tpu.memory_space<vmem>>, vector<8x128xf32>,
    %c0_215 = arith.constant 0 : index
    %c0_216 = arith.constant 0 : index
    %461 = vector.load %arg7[%c0_215, %c0_216] : memref<8x128xf32, #tpu.memory_space<vmem>>, vector<8x128xf32>
    %462 = arith.select %457, %455, %461 : vector<8x128xi1>, vector<8x128xf32>
    %c0_217 = arith.constant 0 : index
    %c0_218 = arith.constant 0 : index
    %463 = vector.load %arg7[%c0_217, %c0_218] : memref<8x128xf32, #tpu.memory_space<vmem>>, vector<8x128xf32>
    tpu.vector_store %arg7[%c0_217, %c0_218], %462 {strides = array<i32>} : memref<8x128xf32, #tpu.memory_space<vmem>>, vector<8x128xf32>,
    %cst_219 = arith.constant 0.000000e+00 : f32
    %464 = vector.broadcast %cst_219 : f32 to vector<8x128xf32>
    %465 = arith.select %457, %455, %464 : vector<8x128xi1>, vector<8x128xf32>
    %466 = arith.index_cast %c4_i32 : i32 to index
    %c0_220 = arith.constant 0 : index
    %c0_221 = arith.constant 0 : index
    %467 = vector.load %arg5[%466, %c0_220, %c0_221] : memref<8x8x128xf32, #tpu.memory_space<vmem>>, vector<1x8x128xf32>
    %468 = vector.shape_cast %467 : vector<1x8x128xf32> to vector<8x128xf32>
    %469 = vector.shape_cast %465 : vector<8x128xf32> to vector<1x8x128xf32>
    tpu.vector_store %arg5[%466, %c0_220, %c0_221], %469 {strides = array<i32>} : memref<8x8x128xf32, #tpu.memory_space<vmem>>, vector<1x8x128xf32>,
    %c7_i32_222 = arith.constant 7 : i32
    %470 = arith.subi %c7_i32_222, %c4_i32 : i32
    %471 = arith.addi %5, %470 : i32
    %472 = arith.index_cast %470 : i32 to index
    %c0_223 = arith.constant 0 : index
    %c0_224 = arith.constant 0 : index
    %473 = vector.load %arg3[%472, %c0_223, %c0_224] : memref<8x8x512xbf16, #tpu.memory_space<vmem>>, vector<1x8x512xbf16>
    %474 = vector.shape_cast %473 : vector<1x8x512xbf16> to vector<8x512xbf16>
    %475 = arith.extf %474 : vector<8x512xbf16> to vector<8x512xf32>
    %c0_225 = arith.constant 0 : index
    %c0_226 = arith.constant 0 : index
    %476 = vector.load %arg9[%c0_225, %c0_226] : memref<8x128xf32, #tpu.memory_space<vmem>>, vector<8x128xf32>
    %477 = arith.truncf %476 : vector<8x128xf32> to vector<8x128xbf16>
    %c1_227 = arith.constant 1 : index
    %c0_228 = arith.constant 0 : index
    %c0_229 = arith.constant 0 : index
    %478 = vector.load %arg4[%c1_227, %c0_228, %c0_229] : memref<2x128x512xbf16, #tpu.memory_space<vmem>>, vector<1x128x512xbf16>
    %479 = vector.shape_cast %478 : vector<1x128x512xbf16> to vector<128x512xbf16>
    %cst_230 = arith.constant dense<0.000000e+00> : vector<8x512xf32>
    %480 = tpu.matmul %477, %479, %cst_230 {dimension_numbers = #tpu.dot_dimension_numbers<[1], [0], [0], [1], [0, 0, 1, 1], [], []>} : vector<8x128xbf16>, vector<128x512xbf16>, vector<8x512xf32> -> vector<8x512xf32>
    %481 = arith.addf %475, %480 : vector<8x512xf32>
    %482 = vector.extract_strided_slice %481 {offsets = [0, 0], sizes = [8, 128], strides = [1, 1]} : vector<8x512xf32> to vector<8x128xf32>
    %483 = arith.negf %482 : vector<8x128xf32>
    %484 = math.exp %483 : vector<8x128xf32>
    %cst_231 = arith.constant 1.000000e+00 : f32
    %485 = vector.broadcast %cst_231 : f32 to vector<8x128xf32>
    %486 = arith.addf %485, %484 : vector<8x128xf32>
    %487 = arith.divf %485, %486 : vector<8x128xf32>
    %488 = vector.extract_strided_slice %481 {offsets = [0, 128], sizes = [8, 128], strides = [1, 1]} : vector<8x512xf32> to vector<8x128xf32>
    %489 = arith.negf %488 : vector<8x128xf32>
    %490 = math.exp %489 : vector<8x128xf32>
    %cst_232 = arith.constant 1.000000e+00 : f32
    %491 = vector.broadcast %cst_232 : f32 to vector<8x128xf32>
    %492 = arith.addf %491, %490 : vector<8x128xf32>
    %493 = arith.divf %491, %492 : vector<8x128xf32>
    %494 = vector.extract_strided_slice %481 {offsets = [0, 256], sizes = [8, 128], strides = [1, 1]} : vector<8x512xf32> to vector<8x128xf32>
    %495 = math.tanh %494 : vector<8x128xf32>
    %496 = vector.extract_strided_slice %481 {offsets = [0, 384], sizes = [8, 128], strides = [1, 1]} : vector<8x512xf32> to vector<8x128xf32>
    %497 = arith.negf %496 : vector<8x128xf32>
    %498 = math.exp %497 : vector<8x128xf32>
    %cst_233 = arith.constant 1.000000e+00 : f32
    %499 = vector.broadcast %cst_233 : f32 to vector<8x128xf32>
    %500 = arith.addf %499, %498 : vector<8x128xf32>
    %501 = arith.divf %499, %500 : vector<8x128xf32>
    %c0_234 = arith.constant 0 : index
    %c0_235 = arith.constant 0 : index
    %502 = vector.load %arg10[%c0_234, %c0_235] : memref<8x128xf32, #tpu.memory_space<vmem>>, vector<8x128xf32>
    %503 = arith.mulf %493, %502 : vector<8x128xf32>
    %504 = arith.mulf %487, %495 : vector<8x128xf32>
    %505 = arith.addf %503, %504 : vector<8x128xf32>
    %506 = math.tanh %505 : vector<8x128xf32>
    %507 = arith.mulf %501, %506 : vector<8x128xf32>
    %508 = vector.broadcast %471 : i32 to vector<8x128xi32>
    %509 = arith.cmpi sgt, %6, %508 : vector<8x128xi32>
    %c0_236 = arith.constant 0 : index
    %c0_237 = arith.constant 0 : index
    %510 = vector.load %arg10[%c0_236, %c0_237] : memref<8x128xf32, #tpu.memory_space<vmem>>, vector<8x128xf32>
    %511 = arith.select %509, %505, %510 : vector<8x128xi1>, vector<8x128xf32>
    %c0_238 = arith.constant 0 : index
    %c0_239 = arith.constant 0 : index
    %512 = vector.load %arg10[%c0_238, %c0_239] : memref<8x128xf32, #tpu.memory_space<vmem>>, vector<8x128xf32>
    tpu.vector_store %arg10[%c0_238, %c0_239], %511 {strides = array<i32>} : memref<8x128xf32, #tpu.memory_space<vmem>>, vector<8x128xf32>,
    %c0_240 = arith.constant 0 : index
    %c0_241 = arith.constant 0 : index
    %513 = vector.load %arg9[%c0_240, %c0_241] : memref<8x128xf32, #tpu.memory_space<vmem>>, vector<8x128xf32>
    %514 = arith.select %509, %507, %513 : vector<8x128xi1>, vector<8x128xf32>
    %c0_242 = arith.constant 0 : index
    %c0_243 = arith.constant 0 : index
    %515 = vector.load %arg9[%c0_242, %c0_243] : memref<8x128xf32, #tpu.memory_space<vmem>>, vector<8x128xf32>
    tpu.vector_store %arg9[%c0_242, %c0_243], %514 {strides = array<i32>} : memref<8x128xf32, #tpu.memory_space<vmem>>, vector<8x128xf32>,
    %cst_244 = arith.constant 0.000000e+00 : f32
    %516 = vector.broadcast %cst_244 : f32 to vector<8x128xf32>
    %517 = arith.select %509, %507, %516 : vector<8x128xi1>, vector<8x128xf32>
    %518 = arith.index_cast %470 : i32 to index
    %c0_245 = arith.constant 0 : index
    %c0_246 = arith.constant 0 : index
    %519 = vector.load %arg6[%518, %c0_245, %c0_246] : memref<8x8x128xf32, #tpu.memory_space<vmem>>, vector<1x8x128xf32>
    %520 = vector.shape_cast %519 : vector<1x8x128xf32> to vector<8x128xf32>
    %521 = vector.shape_cast %517 : vector<8x128xf32> to vector<1x8x128xf32>
    tpu.vector_store %arg6[%518, %c0_245, %c0_246], %521 {strides = array<i32>} : memref<8x8x128xf32, #tpu.memory_space<vmem>>, vector<1x8x128xf32>,
    %c5_i32 = arith.constant 5 : i32
    %522 = arith.addi %3, %c5_i32 : i32
    %523 = arith.index_cast %c5_i32 : i32 to index
    %c0_247 = arith.constant 0 : index
    %c0_248 = arith.constant 0 : index
    %524 = vector.load %arg2[%523, %c0_247, %c0_248] : memref<8x8x512xbf16, #tpu.memory_space<vmem>>, vector<1x8x512xbf16>
    %525 = vector.shape_cast %524 : vector<1x8x512xbf16> to vector<8x512xbf16>
    %526 = arith.extf %525 : vector<8x512xbf16> to vector<8x512xf32>
    %c0_249 = arith.constant 0 : index
    %c0_250 = arith.constant 0 : index
    %527 = vector.load %arg7[%c0_249, %c0_250] : memref<8x128xf32, #tpu.memory_space<vmem>>, vector<8x128xf32>
    %528 = arith.truncf %527 : vector<8x128xf32> to vector<8x128xbf16>
    %c0_251 = arith.constant 0 : index
    %c0_252 = arith.constant 0 : index
    %c0_253 = arith.constant 0 : index
    %529 = vector.load %arg4[%c0_251, %c0_252, %c0_253] : memref<2x128x512xbf16, #tpu.memory_space<vmem>>, vector<1x128x512xbf16>
    %530 = vector.shape_cast %529 : vector<1x128x512xbf16> to vector<128x512xbf16>
    %cst_254 = arith.constant dense<0.000000e+00> : vector<8x512xf32>
    %531 = tpu.matmul %528, %530, %cst_254 {dimension_numbers = #tpu.dot_dimension_numbers<[1], [0], [0], [1], [0, 0, 1, 1], [], []>} : vector<8x128xbf16>, vector<128x512xbf16>, vector<8x512xf32> -> vector<8x512xf32>
    %532 = arith.addf %526, %531 : vector<8x512xf32>
    %533 = vector.extract_strided_slice %532 {offsets = [0, 0], sizes = [8, 128], strides = [1, 1]} : vector<8x512xf32> to vector<8x128xf32>
    %534 = arith.negf %533 : vector<8x128xf32>
    %535 = math.exp %534 : vector<8x128xf32>
    %cst_255 = arith.constant 1.000000e+00 : f32
    %536 = vector.broadcast %cst_255 : f32 to vector<8x128xf32>
    %537 = arith.addf %536, %535 : vector<8x128xf32>
    %538 = arith.divf %536, %537 : vector<8x128xf32>
    %539 = vector.extract_strided_slice %532 {offsets = [0, 128], sizes = [8, 128], strides = [1, 1]} : vector<8x512xf32> to vector<8x128xf32>
    %540 = arith.negf %539 : vector<8x128xf32>
    %541 = math.exp %540 : vector<8x128xf32>
    %cst_256 = arith.constant 1.000000e+00 : f32
    %542 = vector.broadcast %cst_256 : f32 to vector<8x128xf32>
    %543 = arith.addf %542, %541 : vector<8x128xf32>
    %544 = arith.divf %542, %543 : vector<8x128xf32>
    %545 = vector.extract_strided_slice %532 {offsets = [0, 256], sizes = [8, 128], strides = [1, 1]} : vector<8x512xf32> to vector<8x128xf32>
    %546 = math.tanh %545 : vector<8x128xf32>
    %547 = vector.extract_strided_slice %532 {offsets = [0, 384], sizes = [8, 128], strides = [1, 1]} : vector<8x512xf32> to vector<8x128xf32>
    %548 = arith.negf %547 : vector<8x128xf32>
    %549 = math.exp %548 : vector<8x128xf32>
    %cst_257 = arith.constant 1.000000e+00 : f32
    %550 = vector.broadcast %cst_257 : f32 to vector<8x128xf32>
    %551 = arith.addf %550, %549 : vector<8x128xf32>
    %552 = arith.divf %550, %551 : vector<8x128xf32>
    %c0_258 = arith.constant 0 : index
    %c0_259 = arith.constant 0 : index
    %553 = vector.load %arg8[%c0_258, %c0_259] : memref<8x128xf32, #tpu.memory_space<vmem>>, vector<8x128xf32>
    %554 = arith.mulf %544, %553 : vector<8x128xf32>
    %555 = arith.mulf %538, %546 : vector<8x128xf32>
    %556 = arith.addf %554, %555 : vector<8x128xf32>
    %557 = math.tanh %556 : vector<8x128xf32>
    %558 = arith.mulf %552, %557 : vector<8x128xf32>
    %559 = vector.broadcast %522 : i32 to vector<8x128xi32>
    %560 = arith.cmpi sgt, %6, %559 : vector<8x128xi32>
    %c0_260 = arith.constant 0 : index
    %c0_261 = arith.constant 0 : index
    %561 = vector.load %arg8[%c0_260, %c0_261] : memref<8x128xf32, #tpu.memory_space<vmem>>, vector<8x128xf32>
    %562 = arith.select %560, %556, %561 : vector<8x128xi1>, vector<8x128xf32>
    %c0_262 = arith.constant 0 : index
    %c0_263 = arith.constant 0 : index
    %563 = vector.load %arg8[%c0_262, %c0_263] : memref<8x128xf32, #tpu.memory_space<vmem>>, vector<8x128xf32>
    tpu.vector_store %arg8[%c0_262, %c0_263], %562 {strides = array<i32>} : memref<8x128xf32, #tpu.memory_space<vmem>>, vector<8x128xf32>,
    %c0_264 = arith.constant 0 : index
    %c0_265 = arith.constant 0 : index
    %564 = vector.load %arg7[%c0_264, %c0_265] : memref<8x128xf32, #tpu.memory_space<vmem>>, vector<8x128xf32>
    %565 = arith.select %560, %558, %564 : vector<8x128xi1>, vector<8x128xf32>
    %c0_266 = arith.constant 0 : index
    %c0_267 = arith.constant 0 : index
    %566 = vector.load %arg7[%c0_266, %c0_267] : memref<8x128xf32, #tpu.memory_space<vmem>>, vector<8x128xf32>
    tpu.vector_store %arg7[%c0_266, %c0_267], %565 {strides = array<i32>} : memref<8x128xf32, #tpu.memory_space<vmem>>, vector<8x128xf32>,
    %cst_268 = arith.constant 0.000000e+00 : f32
    %567 = vector.broadcast %cst_268 : f32 to vector<8x128xf32>
    %568 = arith.select %560, %558, %567 : vector<8x128xi1>, vector<8x128xf32>
    %569 = arith.index_cast %c5_i32 : i32 to index
    %c0_269 = arith.constant 0 : index
    %c0_270 = arith.constant 0 : index
    %570 = vector.load %arg5[%569, %c0_269, %c0_270] : memref<8x8x128xf32, #tpu.memory_space<vmem>>, vector<1x8x128xf32>
    %571 = vector.shape_cast %570 : vector<1x8x128xf32> to vector<8x128xf32>
    %572 = vector.shape_cast %568 : vector<8x128xf32> to vector<1x8x128xf32>
    tpu.vector_store %arg5[%569, %c0_269, %c0_270], %572 {strides = array<i32>} : memref<8x8x128xf32, #tpu.memory_space<vmem>>, vector<1x8x128xf32>,
    %c7_i32_271 = arith.constant 7 : i32
    %573 = arith.subi %c7_i32_271, %c5_i32 : i32
    %574 = arith.addi %5, %573 : i32
    %575 = arith.index_cast %573 : i32 to index
    %c0_272 = arith.constant 0 : index
    %c0_273 = arith.constant 0 : index
    %576 = vector.load %arg3[%575, %c0_272, %c0_273] : memref<8x8x512xbf16, #tpu.memory_space<vmem>>, vector<1x8x512xbf16>
    %577 = vector.shape_cast %576 : vector<1x8x512xbf16> to vector<8x512xbf16>
    %578 = arith.extf %577 : vector<8x512xbf16> to vector<8x512xf32>
    %c0_274 = arith.constant 0 : index
    %c0_275 = arith.constant 0 : index
    %579 = vector.load %arg9[%c0_274, %c0_275] : memref<8x128xf32, #tpu.memory_space<vmem>>, vector<8x128xf32>
    %580 = arith.truncf %579 : vector<8x128xf32> to vector<8x128xbf16>
    %c1_276 = arith.constant 1 : index
    %c0_277 = arith.constant 0 : index
    %c0_278 = arith.constant 0 : index
    %581 = vector.load %arg4[%c1_276, %c0_277, %c0_278] : memref<2x128x512xbf16, #tpu.memory_space<vmem>>, vector<1x128x512xbf16>
    %582 = vector.shape_cast %581 : vector<1x128x512xbf16> to vector<128x512xbf16>
    %cst_279 = arith.constant dense<0.000000e+00> : vector<8x512xf32>
    %583 = tpu.matmul %580, %582, %cst_279 {dimension_numbers = #tpu.dot_dimension_numbers<[1], [0], [0], [1], [0, 0, 1, 1], [], []>} : vector<8x128xbf16>, vector<128x512xbf16>, vector<8x512xf32> -> vector<8x512xf32>
    %584 = arith.addf %578, %583 : vector<8x512xf32>
    %585 = vector.extract_strided_slice %584 {offsets = [0, 0], sizes = [8, 128], strides = [1, 1]} : vector<8x512xf32> to vector<8x128xf32>
    %586 = arith.negf %585 : vector<8x128xf32>
    %587 = math.exp %586 : vector<8x128xf32>
    %cst_280 = arith.constant 1.000000e+00 : f32
    %588 = vector.broadcast %cst_280 : f32 to vector<8x128xf32>
    %589 = arith.addf %588, %587 : vector<8x128xf32>
    %590 = arith.divf %588, %589 : vector<8x128xf32>
    %591 = vector.extract_strided_slice %584 {offsets = [0, 128], sizes = [8, 128], strides = [1, 1]} : vector<8x512xf32> to vector<8x128xf32>
    %592 = arith.negf %591 : vector<8x128xf32>
    %593 = math.exp %592 : vector<8x128xf32>
    %cst_281 = arith.constant 1.000000e+00 : f32
    %594 = vector.broadcast %cst_281 : f32 to vector<8x128xf32>
    %595 = arith.addf %594, %593 : vector<8x128xf32>
    %596 = arith.divf %594, %595 : vector<8x128xf32>
    %597 = vector.extract_strided_slice %584 {offsets = [0, 256], sizes = [8, 128], strides = [1, 1]} : vector<8x512xf32> to vector<8x128xf32>
    %598 = math.tanh %597 : vector<8x128xf32>
    %599 = vector.extract_strided_slice %584 {offsets = [0, 384], sizes = [8, 128], strides = [1, 1]} : vector<8x512xf32> to vector<8x128xf32>
    %600 = arith.negf %599 : vector<8x128xf32>
    %601 = math.exp %600 : vector<8x128xf32>
    %cst_282 = arith.constant 1.000000e+00 : f32
    %602 = vector.broadcast %cst_282 : f32 to vector<8x128xf32>
    %603 = arith.addf %602, %601 : vector<8x128xf32>
    %604 = arith.divf %602, %603 : vector<8x128xf32>
    %c0_283 = arith.constant 0 : index
    %c0_284 = arith.constant 0 : index
    %605 = vector.load %arg10[%c0_283, %c0_284] : memref<8x128xf32, #tpu.memory_space<vmem>>, vector<8x128xf32>
    %606 = arith.mulf %596, %605 : vector<8x128xf32>
    %607 = arith.mulf %590, %598 : vector<8x128xf32>
    %608 = arith.addf %606, %607 : vector<8x128xf32>
    %609 = math.tanh %608 : vector<8x128xf32>
    %610 = arith.mulf %604, %609 : vector<8x128xf32>
    %611 = vector.broadcast %574 : i32 to vector<8x128xi32>
    %612 = arith.cmpi sgt, %6, %611 : vector<8x128xi32>
    %c0_285 = arith.constant 0 : index
    %c0_286 = arith.constant 0 : index
    %613 = vector.load %arg10[%c0_285, %c0_286] : memref<8x128xf32, #tpu.memory_space<vmem>>, vector<8x128xf32>
    %614 = arith.select %612, %608, %613 : vector<8x128xi1>, vector<8x128xf32>
    %c0_287 = arith.constant 0 : index
    %c0_288 = arith.constant 0 : index
    %615 = vector.load %arg10[%c0_287, %c0_288] : memref<8x128xf32, #tpu.memory_space<vmem>>, vector<8x128xf32>
    tpu.vector_store %arg10[%c0_287, %c0_288], %614 {strides = array<i32>} : memref<8x128xf32, #tpu.memory_space<vmem>>, vector<8x128xf32>,
    %c0_289 = arith.constant 0 : index
    %c0_290 = arith.constant 0 : index
    %616 = vector.load %arg9[%c0_289, %c0_290] : memref<8x128xf32, #tpu.memory_space<vmem>>, vector<8x128xf32>
    %617 = arith.select %612, %610, %616 : vector<8x128xi1>, vector<8x128xf32>
    %c0_291 = arith.constant 0 : index
    %c0_292 = arith.constant 0 : index
    %618 = vector.load %arg9[%c0_291, %c0_292] : memref<8x128xf32, #tpu.memory_space<vmem>>, vector<8x128xf32>
    tpu.vector_store %arg9[%c0_291, %c0_292], %617 {strides = array<i32>} : memref<8x128xf32, #tpu.memory_space<vmem>>, vector<8x128xf32>,
    %cst_293 = arith.constant 0.000000e+00 : f32
    %619 = vector.broadcast %cst_293 : f32 to vector<8x128xf32>
    %620 = arith.select %612, %610, %619 : vector<8x128xi1>, vector<8x128xf32>
    %621 = arith.index_cast %573 : i32 to index
    %c0_294 = arith.constant 0 : index
    %c0_295 = arith.constant 0 : index
    %622 = vector.load %arg6[%621, %c0_294, %c0_295] : memref<8x8x128xf32, #tpu.memory_space<vmem>>, vector<1x8x128xf32>
    %623 = vector.shape_cast %622 : vector<1x8x128xf32> to vector<8x128xf32>
    %624 = vector.shape_cast %620 : vector<8x128xf32> to vector<1x8x128xf32>
    tpu.vector_store %arg6[%621, %c0_294, %c0_295], %624 {strides = array<i32>} : memref<8x8x128xf32, #tpu.memory_space<vmem>>, vector<1x8x128xf32>,
    %c6_i32 = arith.constant 6 : i32
    %625 = arith.addi %3, %c6_i32 : i32
    %626 = arith.index_cast %c6_i32 : i32 to index
    %c0_296 = arith.constant 0 : index
    %c0_297 = arith.constant 0 : index
    %627 = vector.load %arg2[%626, %c0_296, %c0_297] : memref<8x8x512xbf16, #tpu.memory_space<vmem>>, vector<1x8x512xbf16>
    %628 = vector.shape_cast %627 : vector<1x8x512xbf16> to vector<8x512xbf16>
    %629 = arith.extf %628 : vector<8x512xbf16> to vector<8x512xf32>
    %c0_298 = arith.constant 0 : index
    %c0_299 = arith.constant 0 : index
    %630 = vector.load %arg7[%c0_298, %c0_299] : memref<8x128xf32, #tpu.memory_space<vmem>>, vector<8x128xf32>
    %631 = arith.truncf %630 : vector<8x128xf32> to vector<8x128xbf16>
    %c0_300 = arith.constant 0 : index
    %c0_301 = arith.constant 0 : index
    %c0_302 = arith.constant 0 : index
    %632 = vector.load %arg4[%c0_300, %c0_301, %c0_302] : memref<2x128x512xbf16, #tpu.memory_space<vmem>>, vector<1x128x512xbf16>
    %633 = vector.shape_cast %632 : vector<1x128x512xbf16> to vector<128x512xbf16>
    %cst_303 = arith.constant dense<0.000000e+00> : vector<8x512xf32>
    %634 = tpu.matmul %631, %633, %cst_303 {dimension_numbers = #tpu.dot_dimension_numbers<[1], [0], [0], [1], [0, 0, 1, 1], [], []>} : vector<8x128xbf16>, vector<128x512xbf16>, vector<8x512xf32> -> vector<8x512xf32>
    %635 = arith.addf %629, %634 : vector<8x512xf32>
    %636 = vector.extract_strided_slice %635 {offsets = [0, 0], sizes = [8, 128], strides = [1, 1]} : vector<8x512xf32> to vector<8x128xf32>
    %637 = arith.negf %636 : vector<8x128xf32>
    %638 = math.exp %637 : vector<8x128xf32>
    %cst_304 = arith.constant 1.000000e+00 : f32
    %639 = vector.broadcast %cst_304 : f32 to vector<8x128xf32>
    %640 = arith.addf %639, %638 : vector<8x128xf32>
    %641 = arith.divf %639, %640 : vector<8x128xf32>
    %642 = vector.extract_strided_slice %635 {offsets = [0, 128], sizes = [8, 128], strides = [1, 1]} : vector<8x512xf32> to vector<8x128xf32>
    %643 = arith.negf %642 : vector<8x128xf32>
    %644 = math.exp %643 : vector<8x128xf32>
    %cst_305 = arith.constant 1.000000e+00 : f32
    %645 = vector.broadcast %cst_305 : f32 to vector<8x128xf32>
    %646 = arith.addf %645, %644 : vector<8x128xf32>
    %647 = arith.divf %645, %646 : vector<8x128xf32>
    %648 = vector.extract_strided_slice %635 {offsets = [0, 256], sizes = [8, 128], strides = [1, 1]} : vector<8x512xf32> to vector<8x128xf32>
    %649 = math.tanh %648 : vector<8x128xf32>
    %650 = vector.extract_strided_slice %635 {offsets = [0, 384], sizes = [8, 128], strides = [1, 1]} : vector<8x512xf32> to vector<8x128xf32>
    %651 = arith.negf %650 : vector<8x128xf32>
    %652 = math.exp %651 : vector<8x128xf32>
    %cst_306 = arith.constant 1.000000e+00 : f32
    %653 = vector.broadcast %cst_306 : f32 to vector<8x128xf32>
    %654 = arith.addf %653, %652 : vector<8x128xf32>
    %655 = arith.divf %653, %654 : vector<8x128xf32>
    %c0_307 = arith.constant 0 : index
    %c0_308 = arith.constant 0 : index
    %656 = vector.load %arg8[%c0_307, %c0_308] : memref<8x128xf32, #tpu.memory_space<vmem>>, vector<8x128xf32>
    %657 = arith.mulf %647, %656 : vector<8x128xf32>
    %658 = arith.mulf %641, %649 : vector<8x128xf32>
    %659 = arith.addf %657, %658 : vector<8x128xf32>
    %660 = math.tanh %659 : vector<8x128xf32>
    %661 = arith.mulf %655, %660 : vector<8x128xf32>
    %662 = vector.broadcast %625 : i32 to vector<8x128xi32>
    %663 = arith.cmpi sgt, %6, %662 : vector<8x128xi32>
    %c0_309 = arith.constant 0 : index
    %c0_310 = arith.constant 0 : index
    %664 = vector.load %arg8[%c0_309, %c0_310] : memref<8x128xf32, #tpu.memory_space<vmem>>, vector<8x128xf32>
    %665 = arith.select %663, %659, %664 : vector<8x128xi1>, vector<8x128xf32>
    %c0_311 = arith.constant 0 : index
    %c0_312 = arith.constant 0 : index
    %666 = vector.load %arg8[%c0_311, %c0_312] : memref<8x128xf32, #tpu.memory_space<vmem>>, vector<8x128xf32>
    tpu.vector_store %arg8[%c0_311, %c0_312], %665 {strides = array<i32>} : memref<8x128xf32, #tpu.memory_space<vmem>>, vector<8x128xf32>,
    %c0_313 = arith.constant 0 : index
    %c0_314 = arith.constant 0 : index
    %667 = vector.load %arg7[%c0_313, %c0_314] : memref<8x128xf32, #tpu.memory_space<vmem>>, vector<8x128xf32>
    %668 = arith.select %663, %661, %667 : vector<8x128xi1>, vector<8x128xf32>
    %c0_315 = arith.constant 0 : index
    %c0_316 = arith.constant 0 : index
    %669 = vector.load %arg7[%c0_315, %c0_316] : memref<8x128xf32, #tpu.memory_space<vmem>>, vector<8x128xf32>
    tpu.vector_store %arg7[%c0_315, %c0_316], %668 {strides = array<i32>} : memref<8x128xf32, #tpu.memory_space<vmem>>, vector<8x128xf32>,
    %cst_317 = arith.constant 0.000000e+00 : f32
    %670 = vector.broadcast %cst_317 : f32 to vector<8x128xf32>
    %671 = arith.select %663, %661, %670 : vector<8x128xi1>, vector<8x128xf32>
    %672 = arith.index_cast %c6_i32 : i32 to index
    %c0_318 = arith.constant 0 : index
    %c0_319 = arith.constant 0 : index
    %673 = vector.load %arg5[%672, %c0_318, %c0_319] : memref<8x8x128xf32, #tpu.memory_space<vmem>>, vector<1x8x128xf32>
    %674 = vector.shape_cast %673 : vector<1x8x128xf32> to vector<8x128xf32>
    %675 = vector.shape_cast %671 : vector<8x128xf32> to vector<1x8x128xf32>
    tpu.vector_store %arg5[%672, %c0_318, %c0_319], %675 {strides = array<i32>} : memref<8x8x128xf32, #tpu.memory_space<vmem>>, vector<1x8x128xf32>,
    %c7_i32_320 = arith.constant 7 : i32
    %676 = arith.subi %c7_i32_320, %c6_i32 : i32
    %677 = arith.addi %5, %676 : i32
    %678 = arith.index_cast %676 : i32 to index
    %c0_321 = arith.constant 0 : index
    %c0_322 = arith.constant 0 : index
    %679 = vector.load %arg3[%678, %c0_321, %c0_322] : memref<8x8x512xbf16, #tpu.memory_space<vmem>>, vector<1x8x512xbf16>
    %680 = vector.shape_cast %679 : vector<1x8x512xbf16> to vector<8x512xbf16>
    %681 = arith.extf %680 : vector<8x512xbf16> to vector<8x512xf32>
    %c0_323 = arith.constant 0 : index
    %c0_324 = arith.constant 0 : index
    %682 = vector.load %arg9[%c0_323, %c0_324] : memref<8x128xf32, #tpu.memory_space<vmem>>, vector<8x128xf32>
    %683 = arith.truncf %682 : vector<8x128xf32> to vector<8x128xbf16>
    %c1_325 = arith.constant 1 : index
    %c0_326 = arith.constant 0 : index
    %c0_327 = arith.constant 0 : index
    %684 = vector.load %arg4[%c1_325, %c0_326, %c0_327] : memref<2x128x512xbf16, #tpu.memory_space<vmem>>, vector<1x128x512xbf16>
    %685 = vector.shape_cast %684 : vector<1x128x512xbf16> to vector<128x512xbf16>
    %cst_328 = arith.constant dense<0.000000e+00> : vector<8x512xf32>
    %686 = tpu.matmul %683, %685, %cst_328 {dimension_numbers = #tpu.dot_dimension_numbers<[1], [0], [0], [1], [0, 0, 1, 1], [], []>} : vector<8x128xbf16>, vector<128x512xbf16>, vector<8x512xf32> -> vector<8x512xf32>
    %687 = arith.addf %681, %686 : vector<8x512xf32>
    %688 = vector.extract_strided_slice %687 {offsets = [0, 0], sizes = [8, 128], strides = [1, 1]} : vector<8x512xf32> to vector<8x128xf32>
    %689 = arith.negf %688 : vector<8x128xf32>
    %690 = math.exp %689 : vector<8x128xf32>
    %cst_329 = arith.constant 1.000000e+00 : f32
    %691 = vector.broadcast %cst_329 : f32 to vector<8x128xf32>
    %692 = arith.addf %691, %690 : vector<8x128xf32>
    %693 = arith.divf %691, %692 : vector<8x128xf32>
    %694 = vector.extract_strided_slice %687 {offsets = [0, 128], sizes = [8, 128], strides = [1, 1]} : vector<8x512xf32> to vector<8x128xf32>
    %695 = arith.negf %694 : vector<8x128xf32>
    %696 = math.exp %695 : vector<8x128xf32>
    %cst_330 = arith.constant 1.000000e+00 : f32
    %697 = vector.broadcast %cst_330 : f32 to vector<8x128xf32>
    %698 = arith.addf %697, %696 : vector<8x128xf32>
    %699 = arith.divf %697, %698 : vector<8x128xf32>
    %700 = vector.extract_strided_slice %687 {offsets = [0, 256], sizes = [8, 128], strides = [1, 1]} : vector<8x512xf32> to vector<8x128xf32>
    %701 = math.tanh %700 : vector<8x128xf32>
    %702 = vector.extract_strided_slice %687 {offsets = [0, 384], sizes = [8, 128], strides = [1, 1]} : vector<8x512xf32> to vector<8x128xf32>
    %703 = arith.negf %702 : vector<8x128xf32>
    %704 = math.exp %703 : vector<8x128xf32>
    %cst_331 = arith.constant 1.000000e+00 : f32
    %705 = vector.broadcast %cst_331 : f32 to vector<8x128xf32>
    %706 = arith.addf %705, %704 : vector<8x128xf32>
    %707 = arith.divf %705, %706 : vector<8x128xf32>
    %c0_332 = arith.constant 0 : index
    %c0_333 = arith.constant 0 : index
    %708 = vector.load %arg10[%c0_332, %c0_333] : memref<8x128xf32, #tpu.memory_space<vmem>>, vector<8x128xf32>
    %709 = arith.mulf %699, %708 : vector<8x128xf32>
    %710 = arith.mulf %693, %701 : vector<8x128xf32>
    %711 = arith.addf %709, %710 : vector<8x128xf32>
    %712 = math.tanh %711 : vector<8x128xf32>
    %713 = arith.mulf %707, %712 : vector<8x128xf32>
    %714 = vector.broadcast %677 : i32 to vector<8x128xi32>
    %715 = arith.cmpi sgt, %6, %714 : vector<8x128xi32>
    %c0_334 = arith.constant 0 : index
    %c0_335 = arith.constant 0 : index
    %716 = vector.load %arg10[%c0_334, %c0_335] : memref<8x128xf32, #tpu.memory_space<vmem>>, vector<8x128xf32>
    %717 = arith.select %715, %711, %716 : vector<8x128xi1>, vector<8x128xf32>
    %c0_336 = arith.constant 0 : index
    %c0_337 = arith.constant 0 : index
    %718 = vector.load %arg10[%c0_336, %c0_337] : memref<8x128xf32, #tpu.memory_space<vmem>>, vector<8x128xf32>
    tpu.vector_store %arg10[%c0_336, %c0_337], %717 {strides = array<i32>} : memref<8x128xf32, #tpu.memory_space<vmem>>, vector<8x128xf32>,
    %c0_338 = arith.constant 0 : index
    %c0_339 = arith.constant 0 : index
    %719 = vector.load %arg9[%c0_338, %c0_339] : memref<8x128xf32, #tpu.memory_space<vmem>>, vector<8x128xf32>
    %720 = arith.select %715, %713, %719 : vector<8x128xi1>, vector<8x128xf32>
    %c0_340 = arith.constant 0 : index
    %c0_341 = arith.constant 0 : index
    %721 = vector.load %arg9[%c0_340, %c0_341] : memref<8x128xf32, #tpu.memory_space<vmem>>, vector<8x128xf32>
    tpu.vector_store %arg9[%c0_340, %c0_341], %720 {strides = array<i32>} : memref<8x128xf32, #tpu.memory_space<vmem>>, vector<8x128xf32>,
    %cst_342 = arith.constant 0.000000e+00 : f32
    %722 = vector.broadcast %cst_342 : f32 to vector<8x128xf32>
    %723 = arith.select %715, %713, %722 : vector<8x128xi1>, vector<8x128xf32>
    %724 = arith.index_cast %676 : i32 to index
    %c0_343 = arith.constant 0 : index
    %c0_344 = arith.constant 0 : index
    %725 = vector.load %arg6[%724, %c0_343, %c0_344] : memref<8x8x128xf32, #tpu.memory_space<vmem>>, vector<1x8x128xf32>
    %726 = vector.shape_cast %725 : vector<1x8x128xf32> to vector<8x128xf32>
    %727 = vector.shape_cast %723 : vector<8x128xf32> to vector<1x8x128xf32>
    tpu.vector_store %arg6[%724, %c0_343, %c0_344], %727 {strides = array<i32>} : memref<8x8x128xf32, #tpu.memory_space<vmem>>, vector<1x8x128xf32>,
    %c7_i32_345 = arith.constant 7 : i32
    %728 = arith.addi %3, %c7_i32_345 : i32
    %729 = arith.index_cast %c7_i32_345 : i32 to index
    %c0_346 = arith.constant 0 : index
    %c0_347 = arith.constant 0 : index
    %730 = vector.load %arg2[%729, %c0_346, %c0_347] : memref<8x8x512xbf16, #tpu.memory_space<vmem>>, vector<1x8x512xbf16>
    %731 = vector.shape_cast %730 : vector<1x8x512xbf16> to vector<8x512xbf16>
    %732 = arith.extf %731 : vector<8x512xbf16> to vector<8x512xf32>
    %c0_348 = arith.constant 0 : index
    %c0_349 = arith.constant 0 : index
    %733 = vector.load %arg7[%c0_348, %c0_349] : memref<8x128xf32, #tpu.memory_space<vmem>>, vector<8x128xf32>
    %734 = arith.truncf %733 : vector<8x128xf32> to vector<8x128xbf16>
    %c0_350 = arith.constant 0 : index
    %c0_351 = arith.constant 0 : index
    %c0_352 = arith.constant 0 : index
    %735 = vector.load %arg4[%c0_350, %c0_351, %c0_352] : memref<2x128x512xbf16, #tpu.memory_space<vmem>>, vector<1x128x512xbf16>
    %736 = vector.shape_cast %735 : vector<1x128x512xbf16> to vector<128x512xbf16>
    %cst_353 = arith.constant dense<0.000000e+00> : vector<8x512xf32>
    %737 = tpu.matmul %734, %736, %cst_353 {dimension_numbers = #tpu.dot_dimension_numbers<[1], [0], [0], [1], [0, 0, 1, 1], [], []>} : vector<8x128xbf16>, vector<128x512xbf16>, vector<8x512xf32> -> vector<8x512xf32>
    %738 = arith.addf %732, %737 : vector<8x512xf32>
    %739 = vector.extract_strided_slice %738 {offsets = [0, 0], sizes = [8, 128], strides = [1, 1]} : vector<8x512xf32> to vector<8x128xf32>
    %740 = arith.negf %739 : vector<8x128xf32>
    %741 = math.exp %740 : vector<8x128xf32>
    %cst_354 = arith.constant 1.000000e+00 : f32
    %742 = vector.broadcast %cst_354 : f32 to vector<8x128xf32>
    %743 = arith.addf %742, %741 : vector<8x128xf32>
    %744 = arith.divf %742, %743 : vector<8x128xf32>
    %745 = vector.extract_strided_slice %738 {offsets = [0, 128], sizes = [8, 128], strides = [1, 1]} : vector<8x512xf32> to vector<8x128xf32>
    %746 = arith.negf %745 : vector<8x128xf32>
    %747 = math.exp %746 : vector<8x128xf32>
    %cst_355 = arith.constant 1.000000e+00 : f32
    %748 = vector.broadcast %cst_355 : f32 to vector<8x128xf32>
    %749 = arith.addf %748, %747 : vector<8x128xf32>
    %750 = arith.divf %748, %749 : vector<8x128xf32>
    %751 = vector.extract_strided_slice %738 {offsets = [0, 256], sizes = [8, 128], strides = [1, 1]} : vector<8x512xf32> to vector<8x128xf32>
    %752 = math.tanh %751 : vector<8x128xf32>
    %753 = vector.extract_strided_slice %738 {offsets = [0, 384], sizes = [8, 128], strides = [1, 1]} : vector<8x512xf32> to vector<8x128xf32>
    %754 = arith.negf %753 : vector<8x128xf32>
    %755 = math.exp %754 : vector<8x128xf32>
    %cst_356 = arith.constant 1.000000e+00 : f32
    %756 = vector.broadcast %cst_356 : f32 to vector<8x128xf32>
    %757 = arith.addf %756, %755 : vector<8x128xf32>
    %758 = arith.divf %756, %757 : vector<8x128xf32>
    %c0_357 = arith.constant 0 : index
    %c0_358 = arith.constant 0 : index
    %759 = vector.load %arg8[%c0_357, %c0_358] : memref<8x128xf32, #tpu.memory_space<vmem>>, vector<8x128xf32>
    %760 = arith.mulf %750, %759 : vector<8x128xf32>
    %761 = arith.mulf %744, %752 : vector<8x128xf32>
    %762 = arith.addf %760, %761 : vector<8x128xf32>
    %763 = math.tanh %762 : vector<8x128xf32>
    %764 = arith.mulf %758, %763 : vector<8x128xf32>
    %765 = vector.broadcast %728 : i32 to vector<8x128xi32>
    %766 = arith.cmpi sgt, %6, %765 : vector<8x128xi32>
    %c0_359 = arith.constant 0 : index
    %c0_360 = arith.constant 0 : index
    %767 = vector.load %arg8[%c0_359, %c0_360] : memref<8x128xf32, #tpu.memory_space<vmem>>, vector<8x128xf32>
    %768 = arith.select %766, %762, %767 : vector<8x128xi1>, vector<8x128xf32>
    %c0_361 = arith.constant 0 : index
    %c0_362 = arith.constant 0 : index
    %769 = vector.load %arg8[%c0_361, %c0_362] : memref<8x128xf32, #tpu.memory_space<vmem>>, vector<8x128xf32>
    tpu.vector_store %arg8[%c0_361, %c0_362], %768 {strides = array<i32>} : memref<8x128xf32, #tpu.memory_space<vmem>>, vector<8x128xf32>,
    %c0_363 = arith.constant 0 : index
    %c0_364 = arith.constant 0 : index
    %770 = vector.load %arg7[%c0_363, %c0_364] : memref<8x128xf32, #tpu.memory_space<vmem>>, vector<8x128xf32>
    %771 = arith.select %766, %764, %770 : vector<8x128xi1>, vector<8x128xf32>
    %c0_365 = arith.constant 0 : index
    %c0_366 = arith.constant 0 : index
    %772 = vector.load %arg7[%c0_365, %c0_366] : memref<8x128xf32, #tpu.memory_space<vmem>>, vector<8x128xf32>
    tpu.vector_store %arg7[%c0_365, %c0_366], %771 {strides = array<i32>} : memref<8x128xf32, #tpu.memory_space<vmem>>, vector<8x128xf32>,
    %cst_367 = arith.constant 0.000000e+00 : f32
    %773 = vector.broadcast %cst_367 : f32 to vector<8x128xf32>
    %774 = arith.select %766, %764, %773 : vector<8x128xi1>, vector<8x128xf32>
    %775 = arith.index_cast %c7_i32_345 : i32 to index
    %c0_368 = arith.constant 0 : index
    %c0_369 = arith.constant 0 : index
    %776 = vector.load %arg5[%775, %c0_368, %c0_369] : memref<8x8x128xf32, #tpu.memory_space<vmem>>, vector<1x8x128xf32>
    %777 = vector.shape_cast %776 : vector<1x8x128xf32> to vector<8x128xf32>
    %778 = vector.shape_cast %774 : vector<8x128xf32> to vector<1x8x128xf32>
    tpu.vector_store %arg5[%775, %c0_368, %c0_369], %778 {strides = array<i32>} : memref<8x8x128xf32, #tpu.memory_space<vmem>>, vector<1x8x128xf32>,
    %c7_i32_370 = arith.constant 7 : i32
    %779 = arith.subi %c7_i32_370, %c7_i32_345 : i32
    %780 = arith.addi %5, %779 : i32
    %781 = arith.index_cast %779 : i32 to index
    %c0_371 = arith.constant 0 : index
    %c0_372 = arith.constant 0 : index
    %782 = vector.load %arg3[%781, %c0_371, %c0_372] : memref<8x8x512xbf16, #tpu.memory_space<vmem>>, vector<1x8x512xbf16>
    %783 = vector.shape_cast %782 : vector<1x8x512xbf16> to vector<8x512xbf16>
    %784 = arith.extf %783 : vector<8x512xbf16> to vector<8x512xf32>
    %c0_373 = arith.constant 0 : index
    %c0_374 = arith.constant 0 : index
    %785 = vector.load %arg9[%c0_373, %c0_374] : memref<8x128xf32, #tpu.memory_space<vmem>>, vector<8x128xf32>
    %786 = arith.truncf %785 : vector<8x128xf32> to vector<8x128xbf16>
    %c1_375 = arith.constant 1 : index
    %c0_376 = arith.constant 0 : index
    %c0_377 = arith.constant 0 : index
    %787 = vector.load %arg4[%c1_375, %c0_376, %c0_377] : memref<2x128x512xbf16, #tpu.memory_space<vmem>>, vector<1x128x512xbf16>
    %788 = vector.shape_cast %787 : vector<1x128x512xbf16> to vector<128x512xbf16>
    %cst_378 = arith.constant dense<0.000000e+00> : vector<8x512xf32>
    %789 = tpu.matmul %786, %788, %cst_378 {dimension_numbers = #tpu.dot_dimension_numbers<[1], [0], [0], [1], [0, 0, 1, 1], [], []>} : vector<8x128xbf16>, vector<128x512xbf16>, vector<8x512xf32> -> vector<8x512xf32>
    %790 = arith.addf %784, %789 : vector<8x512xf32>
    %791 = vector.extract_strided_slice %790 {offsets = [0, 0], sizes = [8, 128], strides = [1, 1]} : vector<8x512xf32> to vector<8x128xf32>
    %792 = arith.negf %791 : vector<8x128xf32>
    %793 = math.exp %792 : vector<8x128xf32>
    %cst_379 = arith.constant 1.000000e+00 : f32
    %794 = vector.broadcast %cst_379 : f32 to vector<8x128xf32>
    %795 = arith.addf %794, %793 : vector<8x128xf32>
    %796 = arith.divf %794, %795 : vector<8x128xf32>
    %797 = vector.extract_strided_slice %790 {offsets = [0, 128], sizes = [8, 128], strides = [1, 1]} : vector<8x512xf32> to vector<8x128xf32>
    %798 = arith.negf %797 : vector<8x128xf32>
    %799 = math.exp %798 : vector<8x128xf32>
    %cst_380 = arith.constant 1.000000e+00 : f32
    %800 = vector.broadcast %cst_380 : f32 to vector<8x128xf32>
    %801 = arith.addf %800, %799 : vector<8x128xf32>
    %802 = arith.divf %800, %801 : vector<8x128xf32>
    %803 = vector.extract_strided_slice %790 {offsets = [0, 256], sizes = [8, 128], strides = [1, 1]} : vector<8x512xf32> to vector<8x128xf32>
    %804 = math.tanh %803 : vector<8x128xf32>
    %805 = vector.extract_strided_slice %790 {offsets = [0, 384], sizes = [8, 128], strides = [1, 1]} : vector<8x512xf32> to vector<8x128xf32>
    %806 = arith.negf %805 : vector<8x128xf32>
    %807 = math.exp %806 : vector<8x128xf32>
    %cst_381 = arith.constant 1.000000e+00 : f32
    %808 = vector.broadcast %cst_381 : f32 to vector<8x128xf32>
    %809 = arith.addf %808, %807 : vector<8x128xf32>
    %810 = arith.divf %808, %809 : vector<8x128xf32>
    %c0_382 = arith.constant 0 : index
    %c0_383 = arith.constant 0 : index
    %811 = vector.load %arg10[%c0_382, %c0_383] : memref<8x128xf32, #tpu.memory_space<vmem>>, vector<8x128xf32>
    %812 = arith.mulf %802, %811 : vector<8x128xf32>
    %813 = arith.mulf %796, %804 : vector<8x128xf32>
    %814 = arith.addf %812, %813 : vector<8x128xf32>
    %815 = math.tanh %814 : vector<8x128xf32>
    %816 = arith.mulf %810, %815 : vector<8x128xf32>
    %817 = vector.broadcast %780 : i32 to vector<8x128xi32>
    %818 = arith.cmpi sgt, %6, %817 : vector<8x128xi32>
    %c0_384 = arith.constant 0 : index
    %c0_385 = arith.constant 0 : index
    %819 = vector.load %arg10[%c0_384, %c0_385] : memref<8x128xf32, #tpu.memory_space<vmem>>, vector<8x128xf32>
    %820 = arith.select %818, %814, %819 : vector<8x128xi1>, vector<8x128xf32>
    %c0_386 = arith.constant 0 : index
    %c0_387 = arith.constant 0 : index
    %821 = vector.load %arg10[%c0_386, %c0_387] : memref<8x128xf32, #tpu.memory_space<vmem>>, vector<8x128xf32>
    tpu.vector_store %arg10[%c0_386, %c0_387], %820 {strides = array<i32>} : memref<8x128xf32, #tpu.memory_space<vmem>>, vector<8x128xf32>,
    %c0_388 = arith.constant 0 : index
    %c0_389 = arith.constant 0 : index
    %822 = vector.load %arg9[%c0_388, %c0_389] : memref<8x128xf32, #tpu.memory_space<vmem>>, vector<8x128xf32>
    %823 = arith.select %818, %816, %822 : vector<8x128xi1>, vector<8x128xf32>
    %c0_390 = arith.constant 0 : index
    %c0_391 = arith.constant 0 : index
    %824 = vector.load %arg9[%c0_390, %c0_391] : memref<8x128xf32, #tpu.memory_space<vmem>>, vector<8x128xf32>
    tpu.vector_store %arg9[%c0_390, %c0_391], %823 {strides = array<i32>} : memref<8x128xf32, #tpu.memory_space<vmem>>, vector<8x128xf32>,
    %cst_392 = arith.constant 0.000000e+00 : f32
    %825 = vector.broadcast %cst_392 : f32 to vector<8x128xf32>
    %826 = arith.select %818, %816, %825 : vector<8x128xi1>, vector<8x128xf32>
    %827 = arith.index_cast %779 : i32 to index
    %c0_393 = arith.constant 0 : index
    %c0_394 = arith.constant 0 : index
    %828 = vector.load %arg6[%827, %c0_393, %c0_394] : memref<8x8x128xf32, #tpu.memory_space<vmem>>, vector<1x8x128xf32>
    %829 = vector.shape_cast %828 : vector<1x8x128xf32> to vector<8x128xf32>
    %830 = vector.shape_cast %826 : vector<8x128xf32> to vector<1x8x128xf32>
    tpu.vector_store %arg6[%827, %c0_393, %c0_394], %830 {strides = array<i32>} : memref<8x8x128xf32, #tpu.memory_space<vmem>>, vector<1x8x128xf32>,
    %c8_i32_395 = arith.constant 8 : i32
    return
  }
  func.func @transform_0(%arg0: i32) -> (i32, i32) {
    %c0_i32 = arith.constant 0 : i32
    %c0_i32_0 = arith.constant 0 : i32
    %c0_i32_1 = arith.constant 0 : i32
    return %c0_i32, %c0_i32_0 : i32, i32
  }
  func.func @transform_1(%arg0: i32) -> (i32, i32, i32) {
    %c0_i32 = arith.constant 0 : i32
    %c0_i32_0 = arith.constant 0 : i32
    %c0_i32_1 = arith.constant 0 : i32
    return %arg0, %c0_i32, %c0_i32_0 : i32, i32, i32
  }
  func.func @transform_2(%arg0: i32) -> (i32, i32, i32) {
    %c0_i32 = arith.constant 0 : i32
    %0 = arith.subi %c0_i32, %arg0 : i32
    %c0_i32_0 = arith.constant 0 : i32
    %c0_i32_1 = arith.constant 0 : i32
    %c0_i32_2 = arith.constant 0 : i32
    return %0, %c0_i32_0, %c0_i32_1 : i32, i32, i32
  }
  func.func @transform_3(%arg0: i32) -> (i32, i32, i32) {
    %c0_i32 = arith.constant 0 : i32
    %c0_i32_0 = arith.constant 0 : i32
    %c0_i32_1 = arith.constant 0 : i32
    %c0_i32_2 = arith.constant 0 : i32
    return %c0_i32, %c0_i32_0, %c0_i32_1 : i32, i32, i32
  }
  func.func @transform_4(%arg0: i32) -> (i32, i32, i32) {
    %c0_i32 = arith.constant 0 : i32
    %c0_i32_0 = arith.constant 0 : i32
    %c0_i32_1 = arith.constant 0 : i32
    return %arg0, %c0_i32, %c0_i32_0 : i32, i32, i32
  }
  func.func @transform_5(%arg0: i32) -> (i32, i32, i32) {
    %c0_i32 = arith.constant 0 : i32
    %0 = arith.subi %c0_i32, %arg0 : i32
    %c0_i32_0 = arith.constant 0 : i32
    %c0_i32_1 = arith.constant 0 : i32
    %c0_i32_2 = arith.constant 0 : i32
    return %0, %c0_i32_0, %c0_i32_1 : i32, i32, i32
  }
}

</mosaic_0001>

<llo_original>
// kernel: mtlstm_forward.2
$region0: #{mtlstm_forward.2}
  #allocation0 [shape = 'u32[]', space=smem, size = 0x4, offset = 0x4, fixed_abs, tag = 'smem constant byte address 0x4 - core index']
  #allocation1 [shape = 'u32[144,128]{1,0:T(1,128)}', space=vmem, size = 0x12000, scoped, tag = 'internal scratch']
  #allocation2 [shape = 'f32[8,128]{1,0:T(8,128)}', space=vmem, size = 0x1000, scoped, tag = 'scratch operand']
  #allocation3 [shape = 'f32[8,128]{1,0:T(8,128)}', space=vmem, size = 0x1000, scoped, tag = 'scratch operand']
  #allocation4 [shape = 'f32[8,128]{1,0:T(8,128)}', space=vmem, size = 0x1000, scoped, tag = 'scratch operand']
  #allocation5 [shape = 'f32[8,128]{1,0:T(8,128)}', space=vmem, size = 0x1000, scoped, tag = 'scratch operand']
  %s0 = inlined_call_operand.vmem [shape: s32[8,128], index: 0, kind: input, shape index: {}]
  %s1 = inlined_call_operand.vmem [shape: bf16[8,8,512], index: 1, kind: input, shape index: {}]
  %s2 = inlined_call_operand.vmem [shape: bf16[8,8,512], index: 2, kind: input, shape index: {}]
  %s3 = inlined_call_operand.vmem [shape: bf16[2,128,512], index: 3, kind: input, shape index: {}]
  %s4 = inlined_call_operand.vmem [shape: f32[8,8,128], index: 4, kind: output, shape index: {0}]
  %s5 = inlined_call_operand.vmem [shape: f32[8,8,128], index: 5, kind: output, shape index: {1}]
  %6 = xla_tuple %s4, %s5
  %s7 = sld [smem:[#allocation0]]
  $region38: #{mtlstm_forward.2} parent=0
    _
  %s9 = ssub.s32 1, %s7
  %s10 = scalar_select 0, %s9, %s7
  // Predicated region
  $region2: #{mtlstm_forward.2} parent=0 // pred_check
    _
  $region3: #{mtlstm_forward.2} parent=0 // pred_check_branch
    %12 = sbr.rel (0) target = $region5
  $region4: #{mtlstm_forward.2} parent=0 // pred_region
    _
  $region5: #{mtlstm_forward.2} parent=0 // pred_fallthru
    _
  // Predicated region
  $region6: #{mtlstm_forward.2} parent=0 // pred_check
    _
  $region7: #{mtlstm_forward.2} parent=0 // pred_check_branch
    %14 = sbr.rel (0) target = $region9
  $region8: #{mtlstm_forward.2} parent=0 // pred_region
    _
  $region9: #{mtlstm_forward.2} parent=0 // pred_fallthru
    _
  // Predicated region
  $region10: #{mtlstm_forward.2} parent=0 // pred_check
    _
  $region11: #{mtlstm_forward.2} parent=0 // pred_check_branch
    %16 = sbr.rel (0) target = $region13
  $region12: #{mtlstm_forward.2} parent=0 // pred_region
    %s17 = ssub.s32 0, 0
    %s18 = smul.u32 8, %s17
    %p19 = scmp.lt.s32.totalorder %s18, 7
    %s20 = scalar_select %p19, %s18, 7
    %s21 = smul.addr %s20, 4
    %s22 = smul.addr %s21, 4
    %s23 = scalar_lea.vmem %s2, %s22
    %s24 = ssub.s32 0, 0
    %s25 = smul.u32 8, %s24
  $region13: #{mtlstm_forward.2} parent=0 // pred_fallthru
    _
  // Predicated region
  $region14: #{mtlstm_forward.2} parent=0 // pred_check
    _
  $region15: #{mtlstm_forward.2} parent=0 // pred_check_branch
    %27 = sbr.rel (0) target = $region17
  $region16: #{mtlstm_forward.2} parent=0 // pred_region
    _
  $region17: #{mtlstm_forward.2} parent=0 // pred_fallthru
    _
  %s28 = ssub.s32 0, 0
  %s29 = smul.u32 8, %s28
  %p30 = scmp.lt.s32.totalorder %s29, 7
  %s31 = scalar_select %p30, %s29, 7
  %s32 = smul.addr %s31, 4
  %s33 = smul.addr %s32, 4
  %s34 = scalar_lea.vmem %s2, %s33
  %s35 = ssub.s32 0, 0
  %s36 = smul.u32 8, %s35
  %p37 = scmp.lt.s32.totalorder %s36, 7
  %s38 = scalar_select %p37, %s36, 7
  %s39 = smul.addr %s38, 8
  %s40 = scalar_lea.vmem %s5, %s39
  %s41 = ssub.s32 0, 0
  %s42 = smul.u32 8, %s41
  %p43 = scmp.lt.s32.totalorder %s42, 7
  %s44 = scalar_select %p43, %s42, 7
  %s45 = smul.addr %s44, 4
  %s46 = smul.addr %s45, 4
  %s47 = scalar_lea.vmem %s2, %s46
  %s48 = ssub.s32 0, 0
  %s49 = smul.u32 8, %s48
  %s50 = ssub.s32 0, 0
  %s51 = smul.u32 8, %s50
  %p52 = scmp.lt.s32.totalorder %s51, 7
  %s53 = scalar_select %p52, %s51, 7
  %s54 = smul.addr %s53, 8
  %s55 = scalar_lea.vmem %s5, %s54
  %s56 = ssub.s32 0, 0
  %s57 = smul.u32 8, %s56
  %p59 = scmp.eq.s32.totalorder 0, 0
  // Predicated region
  $region18: #{mtlstm_forward.2} parent=0 // pred_check
    %p60 = pneg %p59
  $region19: #{mtlstm_forward.2} parent=0 // pred_check_branch
    %62 = sbr.rel (%p60) target = $region21
  $region20: #{mtlstm_forward.2} parent=0 // pred_region
    %63 = vst [vmem:[#allocation2] sm:$0xff] 0.0
    %64 = vst [vmem:[#allocation3] sm:$0xff] 0.0
    %65 = vst [vmem:[#allocation4] sm:$0xff] 0.0
    %66 = vst [vmem:[#allocation5] sm:$0xff] 0.0
  $region21: #{mtlstm_forward.2} parent=0 // pred_fallthru
    _
  %s67 = smul.u32 0, 8
  %s68 = ssub.s32 0, 0
  %s69 = smul.u32 %s68, 8
  %v70 = vld [vmem:[%s0] sm:$0xff]
  %v71 = vld [vmem:[%s1] sm:$0xff]
  %v72 = vld [vmem:[%s1 + $0x8] sm:$0xff]
  %v73 = vunpack.c.l.bf16 %v71
  %v74 = vunpack.c.h.bf16 %v71
  %v75 = vunpack.c.l.bf16 %v72
  %v76 = vunpack.c.h.bf16 %v72
  %v77 = vld [vmem:[#allocation2] sm:$0xff]
  %v78 = vpack.c.bf16 %v77, %v77
  %v79 = vld [vmem:[%s3] sm:$0xff]
  %v80 = vld [vmem:[%s3 + $0x8] sm:$0xff]
  %v81 = vld [vmem:[%s3 + $0x10] sm:$0xff]
  %v82 = vld [vmem:[%s3 + $0x18] sm:$0xff]
  %v83 = vld [vmem:[%s3 + $0x20] sm:$0xff]
  %v84 = vld [vmem:[%s3 + $0x28] sm:$0xff]
  %v85 = vld [vmem:[%s3 + $0x30] sm:$0xff]
  %v86 = vld [vmem:[%s3 + $0x38] sm:$0xff]
  %v87 = vld [vmem:[%s3 + $0x40] sm:$0xff]
  %v88 = vld [vmem:[%s3 + $0x48] sm:$0xff]
  %v89 = vld [vmem:[%s3 + $0x50] sm:$0xff]
  %v90 = vld [vmem:[%s3 + $0x58] sm:$0xff]
  %v91 = vld [vmem:[%s3 + $0x60] sm:$0xff]
  %v92 = vld [vmem:[%s3 + $0x68] sm:$0xff]
  %v93 = vld [vmem:[%s3 + $0x70] sm:$0xff]
  %v94 = vld [vmem:[%s3 + $0x78] sm:$0xff]
  %v95 = vld [vmem:[%s3 + $0x80] sm:$0xff]
  %v96 = vld [vmem:[%s3 + $0x88] sm:$0xff]
  %v97 = vld [vmem:[%s3 + $0x90] sm:$0xff]
  %v98 = vld [vmem:[%s3 + $0x98] sm:$0xff]
  %v99 = vld [vmem:[%s3 + $0xa0] sm:$0xff]
  %v100 = vld [vmem:[%s3 + $0xa8] sm:$0xff]
  %v101 = vld [vmem:[%s3 + $0xb0] sm:$0xff]
  %v102 = vld [vmem:[%s3 + $0xb8] sm:$0xff]
  %v103 = vld [vmem:[%s3 + $0xc0] sm:$0xff]
  %v104 = vld [vmem:[%s3 + $0xc8] sm:$0xff]
  %v105 = vld [vmem:[%s3 + $0xd0] sm:$0xff]
  %v106 = vld [vmem:[%s3 + $0xd8] sm:$0xff]
  %v107 = vld [vmem:[%s3 + $0xe0] sm:$0xff]
  %v108 = vld [vmem:[%s3 + $0xe8] sm:$0xff]
  %v109 = vld [vmem:[%s3 + $0xf0] sm:$0xff]
  %v110 = vld [vmem:[%s3 + $0xf8] sm:$0xff]
  %v143 = vunpack.c.l.b16 %v79
  %v144 = vunpack.c.h.b16 %v79
  %v145 = vunpack.c.l.b16 %v80
  %v146 = vunpack.c.h.b16 %v80
  %v147 = vunpack.c.l.b16 %v81
  %v148 = vunpack.c.h.b16 %v81
  %v149 = vunpack.c.l.b16 %v82
  %v150 = vunpack.c.h.b16 %v82
  %v151 = vunpack.c.l.b16 %v83
  %v152 = vunpack.c.h.b16 %v83
  %v153 = vunpack.c.l.b16 %v84
  %v154 = vunpack.c.h.b16 %v84
  %v155 = vunpack.c.l.b16 %v85
  %v156 = vunpack.c.h.b16 %v85
  %v157 = vunpack.c.l.b16 %v86
  %v158 = vunpack.c.h.b16 %v86
  %v159 = vunpack.c.l.b16 %v87
  %v160 = vunpack.c.h.b16 %v87
  %v161 = vunpack.c.l.b16 %v88
  %v162 = vunpack.c.h.b16 %v88
  %v163 = vunpack.c.l.b16 %v89
  %v164 = vunpack.c.h.b16 %v89
  %v165 = vunpack.c.l.b16 %v90
  %v166 = vunpack.c.h.b16 %v90
  %v167 = vunpack.c.l.b16 %v91
  %v168 = vunpack.c.h.b16 %v91
  %v169 = vunpack.c.l.b16 %v92
  %v170 = vunpack.c.h.b16 %v92
  %v171 = vunpack.c.l.b16 %v93
  %v172 = vunpack.c.h.b16 %v93
  %v173 = vunpack.c.l.b16 %v94
  %v174 = vunpack.c.h.b16 %v94
  %v175 = vunpack.c.l.b16 %v95
  %v176 = vunpack.c.h.b16 %v95
  %v177 = vunpack.c.l.b16 %v96
  %v178 = vunpack.c.h.b16 %v96
  %v179 = vunpack.c.l.b16 %v97
  %v180 = vunpack.c.h.b16 %v97
  %v181 = vunpack.c.l.b16 %v98
  %v182 = vunpack.c.h.b16 %v98
  %v183 = vunpack.c.l.b16 %v99
  %v184 = vunpack.c.h.b16 %v99
  %v185 = vunpack.c.l.b16 %v100
  %v186 = vunpack.c.h.b16 %v100
  %v187 = vunpack.c.l.b16 %v101
  %v188 = vunpack.c.h.b16 %v101
  %v189 = vunpack.c.l.b16 %v102
  %v190 = vunpack.c.h.b16 %v102
  %v191 = vunpack.c.l.b16 %v103
  %v192 = vunpack.c.h.b16 %v103
  %v193 = vunpack.c.l.b16 %v104
  %v194 = vunpack.c.h.b16 %v104
  %v195 = vunpack.c.l.b16 %v105
  %v196 = vunpack.c.h.b16 %v105
  %v197 = vunpack.c.l.b16 %v106
  %v198 = vunpack.c.h.b16 %v106
  %v199 = vunpack.c.l.b16 %v107
  %v200 = vunpack.c.h.b16 %v107
  %v201 = vunpack.c.l.b16 %v108
  %v202 = vunpack.c.h.b16 %v108
  %v203 = vunpack.c.l.b16 %v109
  %v204 = vunpack.c.h.b16 %v109
  %v205 = vunpack.c.l.b16 %v110
  %v206 = vunpack.c.h.b16 %v110
  %v207 = vpack.c.b16 %v147, %v143
  %v208 = vpack.c.b16 %v148, %v144
  %v209 = vpack.c.b16 %v149, %v145
  %v210 = vpack.c.b16 %v150, %v146
  %v211 = vpack.c.b16 %v155, %v151
  %v212 = vpack.c.b16 %v156, %v152
  %v213 = vpack.c.b16 %v157, %v153
  %v214 = vpack.c.b16 %v158, %v154
  %v215 = vpack.c.b16 %v163, %v159
  %v216 = vpack.c.b16 %v164, %v160
  %v217 = vpack.c.b16 %v165, %v161
  %v218 = vpack.c.b16 %v166, %v162
  %v219 = vpack.c.b16 %v171, %v167
  %v220 = vpack.c.b16 %v172, %v168
  %v221 = vpack.c.b16 %v173, %v169
  %v222 = vpack.c.b16 %v174, %v170
  %v223 = vpack.c.b16 %v179, %v175
  %v224 = vpack.c.b16 %v180, %v176
  %v225 = vpack.c.b16 %v181, %v177
  %v226 = vpack.c.b16 %v182, %v178
  %v227 = vpack.c.b16 %v187, %v183
  %v228 = vpack.c.b16 %v188, %v184
  %v229 = vpack.c.b16 %v189, %v185
  %v230 = vpack.c.b16 %v190, %v186
  %v231 = vpack.c.b16 %v195, %v191
  %v232 = vpack.c.b16 %v196, %v192
  %v233 = vpack.c.b16 %v197, %v193
  %v234 = vpack.c.b16 %v198, %v194
  %v235 = vpack.c.b16 %v203, %v199
  %v236 = vpack.c.b16 %v204, %v200
  %v237 = vpack.c.b16 %v205, %v201
  %v238 = vpack.c.b16 %v206, %v202
  %271 = vmatprep.subr.bf16.mxu0 %v236
  %272 = vmatpush1.bf16.msra.mxu0 %v235
  %273 = vmatprep.subr.bf16.mxu0 %v232
  %274 = vmatpush1.bf16.msra.mxu0 %v231
  %275 = vmatprep.subr.bf16.mxu0 %v228
  %276 = vmatpush1.bf16.msra.mxu0 %v227
  %277 = vmatprep.subr.bf16.mxu0 %v224
  %278 = vmatpush1.bf16.msra.mxu0 %v223
  %279 = vmatprep.subr.bf16.mxu0 %v220
  %280 = vmatpush1.bf16.msra.mxu0 %v219
  %281 = vmatprep.subr.bf16.mxu0 %v216
  %282 = vmatpush1.bf16.msra.mxu0 %v215
  %283 = vmatprep.subr.bf16.mxu0 %v212
  %284 = vmatpush1.bf16.msra.mxu0 %v211
  %285 = vmatprep.subr.bf16.mxu0 %v208
  %286 = vmatpush1.bf16.msra.mxu0 %v207
  %287 = vmatprep.subr.bf16.mxu0 0
  %288 = vmatpush2.bf16.msra.mxu0 0
  %289 = vmatprep.subr.bf16.mxu0 0
  %290 = vmatpush2.bf16.msra.mxu0 0
  %291 = vmatprep.subr.bf16.mxu0 0
  %292 = vmatpush2.bf16.msra.mxu0 0
  %293 = vmatprep.subr.bf16.mxu0 0
  %294 = vmatpush2.bf16.msra.mxu0 0
  %295 = vmatprep.subr.bf16.mxu0 0
  %296 = vmatpush2.bf16.msra.mxu0 0
  %297 = vmatprep.subr.bf16.mxu0 0
  %298 = vmatpush2.bf16.msra.mxu0 0
  %299 = vmatprep.subr.bf16.mxu0 0
  %300 = vmatpush2.bf16.msra.mxu0 0
  %301 = vmatprep.subr.bf16.mxu0 0
  %302 = vmatpush2.bf16.msra.mxu0 0
  %303 = vmatprep.mubr.bf16.mxu0 0
  %304 = vmatmul.mubr.bf16.gmra.mxu0 %v78
  %v305 = vpop.f32.mrf.mxu0
  %v306 = vadd.f32 0.0, %v305
  %v307 = vpop.f32.mrf.mxu0
  %v308 = vadd.f32 0.0, %v307
  %v309 = vpop.f32.mrf.mxu0
  %v310 = vpop.f32.mrf.mxu0
  %311 = vdwg.mxu0
  %312 = vmatprep.subr.bf16.mxu0 %v238
  %313 = vmatpush1.bf16.msra.mxu0 %v237
  %314 = vmatprep.subr.bf16.mxu0 %v234
  %315 = vmatpush1.bf16.msra.mxu0 %v233
  %316 = vmatprep.subr.bf16.mxu0 %v230
  %317 = vmatpush1.bf16.msra.mxu0 %v229
  %318 = vmatprep.subr.bf16.mxu0 %v226
  %319 = vmatpush1.bf16.msra.mxu0 %v225
  %320 = vmatprep.subr.bf16.mxu0 %v222
  %321 = vmatpush1.bf16.msra.mxu0 %v221
  %322 = vmatprep.subr.bf16.mxu0 %v218
  %323 = vmatpush1.bf16.msra.mxu0 %v217
  %324 = vmatprep.subr.bf16.mxu0 %v214
  %325 = vmatpush1.bf16.msra.mxu0 %v213
  %326 = vmatprep.subr.bf16.mxu0 %v210
  %327 = vmatpush1.bf16.msra.mxu0 %v209
  %328 = vmatprep.subr.bf16.mxu0 0
  %329 = vmatpush2.bf16.msra.mxu0 0
  %330 = vmatprep.subr.bf16.mxu0 0
  %331 = vmatpush2.bf16.msra.mxu0 0
  %332 = vmatprep.subr.bf16.mxu0 0
  %333 = vmatpush2.bf16.msra.mxu0 0
  %334 = vmatprep.subr.bf16.mxu0 0
  %335 = vmatpush2.bf16.msra.mxu0 0
  %336 = vmatprep.subr.bf16.mxu0 0
  %337 = vmatpush2.bf16.msra.mxu0 0
  %338 = vmatprep.subr.bf16.mxu0 0
  %339 = vmatpush2.bf16.msra.mxu0 0
  %340 = vmatprep.subr.bf16.mxu0 0
  %341 = vmatpush2.bf16.msra.mxu0 0
  %342 = vmatprep.subr.bf16.mxu0 0
  %343 = vmatpush2.bf16.msra.mxu0 0
  %344 = vmatprep.mubr.bf16.mxu0 0
  %345 = vmatmul.mubr.bf16.gmra.mxu0 %v78
  %v346 = vpop.f32.mrf.mxu0
  %v347 = vadd.f32 0.0, %v346
  %v348 = vpop.f32.mrf.mxu0
  %v349 = vadd.f32 0.0, %v348
  %v350 = vpop.f32.mrf.mxu0
  %v351 = vpop.f32.mrf.mxu0
  %352 = vdwg.mxu0
  %v353 = vadd.f32 %v73, %v306
  %v354 = vadd.f32 %v74, %v308
  %v355 = vadd.f32 %v75, %v347
  %v356 = vadd.f32 %v76, %v349
  %v357 = vxor.u32 %v353, 2147483648
  %v358 = vmul.f32 %v357, 1.442695
  %v359 = vpow.pop %v358
  %v360 = vadd.f32 %v359, 1.0
  %v361 = vrcp.pop %v360
  %v362 = vmul.f32 1.0, %v361
  %v363 = vxor.u32 %v354, 2147483648
  %v364 = vmul.f32 %v363, 1.442695
  %v365 = vpow.pop %v364
  %v366 = vadd.f32 %v365, 1.0
  %v367 = vrcp.pop %v366
  %v368 = vmul.f32 1.0, %v367
  %v369 = vtanh.pop %v355
  %v370 = vxor.u32 %v356, 2147483648
  %v371 = vmul.f32 %v370, 1.442695
  %v372 = vpow.pop %v371
  %v373 = vadd.f32 %v372, 1.0
  %v374 = vrcp.pop %v373
  %v375 = vmul.f32 1.0, %v374
  %v376 = vld [vmem:[#allocation3] sm:$0xff]
  %v377 = vmul.f32 %v368, %v376
  %v378 = vmul.f32 %v362, %v369
  %v379 = vadd.f32 %v377, %v378
  %v380 = vtanh.pop %v379
  %v381 = vmul.f32 %v375, %v380
  %v382 = vstv %s67
  %vm383 = vcmp.gt.s32.totalorder %v70, %v382
  %v384 = vsel %vm383, %v379, %v376
  %385 = vst [vmem:[#allocation3] sm:$0xff] %v384
  %v386 = vld [vmem:[#allocation2] sm:$0xff]
  %v387 = vsel %vm383, %v381, %v386
  %388 = vst [vmem:[#allocation2] sm:$0xff] %v387
  %v389 = vsel %vm383, %v381, 0.0
  %390 = vst [vmem:[%s4] sm:$0xff] %v389
  %s391 = sadd.s32 %s69, 7
  %s392 = scalar_lea.vmem %s47, 112
  %v393 = vld [vmem:[%s392] sm:$0xff]
  %v394 = vld [vmem:[%s392 + $0x8] sm:$0xff]
  %v395 = vunpack.c.l.bf16 %v393
  %v396 = vunpack.c.h.bf16 %v393
  %v397 = vunpack.c.l.bf16 %v394
  %v398 = vunpack.c.h.bf16 %v394
  %v399 = vld [vmem:[#allocation4] sm:$0xff]
  %v400 = vpack.c.bf16 %v399, %v399
  %s401 = scalar_lea.vmem %s3, 256
  %v402 = vld [vmem:[%s401] sm:$0xff]
  %v403 = vld [vmem:[%s401 + $0x8] sm:$0xff]
  %v404 = vld [vmem:[%s401 + $0x10] sm:$0xff]
  %v405 = vld [vmem:[%s401 + $0x18] sm:$0xff]
  %v406 = vld [vmem:[%s401 + $0x20] sm:$0xff]
  %v407 = vld [vmem:[%s401 + $0x28] sm:$0xff]
  %v408 = vld [vmem:[%s401 + $0x30] sm:$0xff]
  %v409 = vld [vmem:[%s401 + $0x38] sm:$0xff]
  %v410 = vld [vmem:[%s401 + $0x40] sm:$0xff]
  %v411 = vld [vmem:[%s401 + $0x48] sm:$0xff]
  %v412 = vld [vmem:[%s401 + $0x50] sm:$0xff]
  %v413 = vld [vmem:[%s401 + $0x58] sm:$0xff]
  %v414 = vld [vmem:[%s401 + $0x60] sm:$0xff]
  %v415 = vld [vmem:[%s401 + $0x68] sm:$0xff]
  %v416 = vld [vmem:[%s401 + $0x70] sm:$0xff]
  %v417 = vld [vmem:[%s401 + $0x78] sm:$0xff]
  %v418 = vld [vmem:[%s401 + $0x80] sm:$0xff]
  %v419 = vld [vmem:[%s401 + $0x88] sm:$0xff]
  %v420 = vld [vmem:[%s401 + $0x90] sm:$0xff]
  %v421 = vld [vmem:[%s401 + $0x98] sm:$0xff]
  %v422 = vld [vmem:[%s401 + $0xa0] sm:$0xff]
  %v423 = vld [vmem:[%s401 + $0xa8] sm:$0xff]
  %v424 = vld [vmem:[%s401 + $0xb0] sm:$0xff]
  %v425 = vld [vmem:[%s401 + $0xb8] sm:$0xff]
  %v426 = vld [vmem:[%s401 + $0xc0] sm:$0xff]
  %v427 = vld [vmem:[%s401 + $0xc8] sm:$0xff]
  %v428 = vld [vmem:[%s401 + $0xd0] sm:$0xff]
  %v429 = vld [vmem:[%s401 + $0xd8] sm:$0xff]
  %v430 = vld [vmem:[%s401 + $0xe0] sm:$0xff]
  %v431 = vld [vmem:[%s401 + $0xe8] sm:$0xff]
  %v432 = vld [vmem:[%s401 + $0xf0] sm:$0xff]
  %v433 = vld [vmem:[%s401 + $0xf8] sm:$0xff]
  %v466 = vunpack.c.l.b16 %v402
  %v467 = vunpack.c.h.b16 %v402
  %v468 = vunpack.c.l.b16 %v403
  %v469 = vunpack.c.h.b16 %v403
  %v470 = vunpack.c.l.b16 %v404
  %v471 = vunpack.c.h.b16 %v404
  %v472 = vunpack.c.l.b16 %v405
  %v473 = vunpack.c.h.b16 %v405
  %v474 = vunpack.c.l.b16 %v406
  %v475 = vunpack.c.h.b16 %v406
  %v476 = vunpack.c.l.b16 %v407
  %v477 = vunpack.c.h.b16 %v407
  %v478 = vunpack.c.l.b16 %v408
  %v479 = vunpack.c.h.b16 %v408
  %v480 = vunpack.c.l.b16 %v409
  %v481 = vunpack.c.h.b16 %v409
  %v482 = vunpack.c.l.b16 %v410
  %v483 = vunpack.c.h.b16 %v410
  %v484 = vunpack.c.l.b16 %v411
  %v485 = vunpack.c.h.b16 %v411
  %v486 = vunpack.c.l.b16 %v412
  %v487 = vunpack.c.h.b16 %v412
  %v488 = vunpack.c.l.b16 %v413
  %v489 = vunpack.c.h.b16 %v413
  %v490 = vunpack.c.l.b16 %v414
  %v491 = vunpack.c.h.b16 %v414
  %v492 = vunpack.c.l.b16 %v415
  %v493 = vunpack.c.h.b16 %v415
  %v494 = vunpack.c.l.b16 %v416
  %v495 = vunpack.c.h.b16 %v416
  %v496 = vunpack.c.l.b16 %v417
  %v497 = vunpack.c.h.b16 %v417
  %v498 = vunpack.c.l.b16 %v418
  %v499 = vunpack.c.h.b16 %v418
  %v500 = vunpack.c.l.b16 %v419
  %v501 = vunpack.c.h.b16 %v419
  %v502 = vunpack.c.l.b16 %v420
  %v503 = vunpack.c.h.b16 %v420
  %v504 = vunpack.c.l.b16 %v421
  %v505 = vunpack.c.h.b16 %v421
  %v506 = vunpack.c.l.b16 %v422
  %v507 = vunpack.c.h.b16 %v422
  %v508 = vunpack.c.l.b16 %v423
  %v509 = vunpack.c.h.b16 %v423
  %v510 = vunpack.c.l.b16 %v424
  %v511 = vunpack.c.h.b16 %v424
  %v512 = vunpack.c.l.b16 %v425
  %v513 = vunpack.c.h.b16 %v425
  %v514 = vunpack.c.l.b16 %v426
  %v515 = vunpack.c.h.b16 %v426
  %v516 = vunpack.c.l.b16 %v427
  %v517 = vunpack.c.h.b16 %v427
  %v518 = vunpack.c.l.b16 %v428
  %v519 = vunpack.c.h.b16 %v428
  %v520 = vunpack.c.l.b16 %v429
  %v521 = vunpack.c.h.b16 %v429
  %v522 = vunpack.c.l.b16 %v430
  %v523 = vunpack.c.h.b16 %v430
  %v524 = vunpack.c.l.b16 %v431
  %v525 = vunpack.c.h.b16 %v431
  %v526 = vunpack.c.l.b16 %v432
  %v527 = vunpack.c.h.b16 %v432
  %v528 = vunpack.c.l.b16 %v433
  %v529 = vunpack.c.h.b16 %v433
  %v530 = vpack.c.b16 %v470, %v466
  %v531 = vpack.c.b16 %v471, %v467
  %v532 = vpack.c.b16 %v472, %v468
  %v533 = vpack.c.b16 %v473, %v469
  %v534 = vpack.c.b16 %v478, %v474
  %v535 = vpack.c.b16 %v479, %v475
  %v536 = vpack.c.b16 %v480, %v476
  %v537 = vpack.c.b16 %v481, %v477
  %v538 = vpack.c.b16 %v486, %v482
  %v539 = vpack.c.b16 %v487, %v483
  %v540 = vpack.c.b16 %v488, %v484
  %v541 = vpack.c.b16 %v489, %v485
  %v542 = vpack.c.b16 %v494, %v490
  %v543 = vpack.c.b16 %v495, %v491
  %v544 = vpack.c.b16 %v496, %v492
  %v545 = vpack.c.b16 %v497, %v493
  %v546 = vpack.c.b16 %v502, %v498
  %v547 = vpack.c.b16 %v503, %v499
  %v548 = vpack.c.b16 %v504, %v500
  %v549 = vpack.c.b16 %v505, %v501
  %v550 = vpack.c.b16 %v510, %v506
  %v551 = vpack.c.b16 %v511, %v507
  %v552 = vpack.c.b16 %v512, %v508
  %v553 = vpack.c.b16 %v513, %v509
  %v554 = vpack.c.b16 %v518, %v514
  %v555 = vpack.c.b16 %v519, %v515
  %v556 = vpack.c.b16 %v520, %v516
  %v557 = vpack.c.b16 %v521, %v517
  %v558 = vpack.c.b16 %v526, %v522
  %v559 = vpack.c.b16 %v527, %v523
  %v560 = vpack.c.b16 %v528, %v524
  %v561 = vpack.c.b16 %v529, %v525
  %594 = vmatprep.subr.bf16.mxu0 %v559
  %595 = vmatpush1.bf16.msra.mxu0 %v558
  %596 = vmatprep.subr.bf16.mxu0 %v555
  %597 = vmatpush1.bf16.msra.mxu0 %v554
  %598 = vmatprep.subr.bf16.mxu0 %v551
  %599 = vmatpush1.bf16.msra.mxu0 %v550
  %600 = vmatprep.subr.bf16.mxu0 %v547
  %601 = vmatpush1.bf16.msra.mxu0 %v546
  %602 = vmatprep.subr.bf16.mxu0 %v543
  %603 = vmatpush1.bf16.msra.mxu0 %v542
  %604 = vmatprep.subr.bf16.mxu0 %v539
  %605 = vmatpush1.bf16.msra.mxu0 %v538
  %606 = vmatprep.subr.bf16.mxu0 %v535
  %607 = vmatpush1.bf16.msra.mxu0 %v534
  %608 = vmatprep.subr.bf16.mxu0 %v531
  %609 = vmatpush1.bf16.msra.mxu0 %v530
  %610 = vmatprep.subr.bf16.mxu0 0
  %611 = vmatpush2.bf16.msra.mxu0 0
  %612 = vmatprep.subr.bf16.mxu0 0
  %613 = vmatpush2.bf16.msra.mxu0 0
  %614 = vmatprep.subr.bf16.mxu0 0
  %615 = vmatpush2.bf16.msra.mxu0 0
  %616 = vmatprep.subr.bf16.mxu0 0
  %617 = vmatpush2.bf16.msra.mxu0 0
  %618 = vmatprep.subr.bf16.mxu0 0
  %619 = vmatpush2.bf16.msra.mxu0 0
  %620 = vmatprep.subr.bf16.mxu0 0
  %621 = vmatpush2.bf16.msra.mxu0 0
  %622 = vmatprep.subr.bf16.mxu0 0
  %623 = vmatpush2.bf16.msra.mxu0 0
  %624 = vmatprep.subr.bf16.mxu0 0
  %625 = vmatpush2.bf16.msra.mxu0 0
  %626 = vmatprep.mubr.bf16.mxu0 0
  %627 = vmatmul.mubr.bf16.gmra.mxu0 %v400
  %v628 = vpop.f32.mrf.mxu0
  %v629 = vadd.f32 0.0, %v628
  %v630 = vpop.f32.mrf.mxu0
  %v631 = vadd.f32 0.0, %v630
  %v632 = vpop.f32.mrf.mxu0
  %v633 = vpop.f32.mrf.mxu0
  %634 = vdwg.mxu0
  %635 = vmatprep.subr.bf16.mxu0 %v561
  %636 = vmatpush1.bf16.msra.mxu0 %v560
  %637 = vmatprep.subr.bf16.mxu0 %v557
  %638 = vmatpush1.bf16.msra.mxu0 %v556
  %639 = vmatprep.subr.bf16.mxu0 %v553
  %640 = vmatpush1.bf16.msra.mxu0 %v552
  %641 = vmatprep.subr.bf16.mxu0 %v549
  %642 = vmatpush1.bf16.msra.mxu0 %v548
  %643 = vmatprep.subr.bf16.mxu0 %v545
  %644 = vmatpush1.bf16.msra.mxu0 %v544
  %645 = vmatprep.subr.bf16.mxu0 %v541
  %646 = vmatpush1.bf16.msra.mxu0 %v540
  %647 = vmatprep.subr.bf16.mxu0 %v537
  %648 = vmatpush1.bf16.msra.mxu0 %v536
  %649 = vmatprep.subr.bf16.mxu0 %v533
  %650 = vmatpush1.bf16.msra.mxu0 %v532
  %651 = vmatprep.subr.bf16.mxu0 0
  %652 = vmatpush2.bf16.msra.mxu0 0
  %653 = vmatprep.subr.bf16.mxu0 0
  %654 = vmatpush2.bf16.msra.mxu0 0
  %655 = vmatprep.subr.bf16.mxu0 0
  %656 = vmatpush2.bf16.msra.mxu0 0
  %657 = vmatprep.subr.bf16.mxu0 0
  %658 = vmatpush2.bf16.msra.mxu0 0
  %659 = vmatprep.subr.bf16.mxu0 0
  %660 = vmatpush2.bf16.msra.mxu0 0
  %661 = vmatprep.subr.bf16.mxu0 0
  %662 = vmatpush2.bf16.msra.mxu0 0
  %663 = vmatprep.subr.bf16.mxu0 0
  %664 = vmatpush2.bf16.msra.mxu0 0
  %665 = vmatprep.subr.bf16.mxu0 0
  %666 = vmatpush2.bf16.msra.mxu0 0
  %667 = vmatprep.mubr.bf16.mxu0 0
  %668 = vmatmul.mubr.bf16.gmra.mxu0 %v400
  %v669 = vpop.f32.mrf.mxu0
  %v670 = vadd.f32 0.0, %v669
  %v671 = vpop.f32.mrf.mxu0
  %v672 = vadd.f32 0.0, %v671
  %v673 = vpop.f32.mrf.mxu0
  %v674 = vpop.f32.mrf.mxu0
  %675 = vdwg.mxu0
  %v676 = vadd.f32 %v395, %v629
  %v677 = vadd.f32 %v396, %v631
  %v678 = vadd.f32 %v397, %v670
  %v679 = vadd.f32 %v398, %v672
  %v680 = vxor.u32 %v676, 2147483648
  %v681 = vmul.f32 %v680, 1.442695
  %v682 = vpow.pop %v681
  %v683 = vadd.f32 %v682, 1.0
  %v684 = vrcp.pop %v683
  %v685 = vmul.f32 1.0, %v684
  %v686 = vxor.u32 %v677, 2147483648
  %v687 = vmul.f32 %v686, 1.442695
  %v688 = vpow.pop %v687
  %v689 = vadd.f32 %v688, 1.0
  %v690 = vrcp.pop %v689
  %v691 = vmul.f32 1.0, %v690
  %v692 = vtanh.pop %v678
  %v693 = vxor.u32 %v679, 2147483648
  %v694 = vmul.f32 %v693, 1.442695
  %v695 = vpow.pop %v694
  %v696 = vadd.f32 %v695, 1.0
  %v697 = vrcp.pop %v696
  %v698 = vmul.f32 1.0, %v697
  %v699 = vld [vmem:[#allocation5] sm:$0xff]
  %v700 = vmul.f32 %v691, %v699
  %v701 = vmul.f32 %v685, %v692
  %v702 = vadd.f32 %v700, %v701
  %v703 = vtanh.pop %v702
  %v704 = vmul.f32 %v698, %v703
  %v705 = vstv %s391
  %vm706 = vcmp.gt.s32.totalorder %v70, %v705
  %v707 = vsel %vm706, %v702, %v699
  %708 = vst [vmem:[#allocation5] sm:$0xff] %v707
  %v709 = vld [vmem:[#allocation4] sm:$0xff]
  %v710 = vsel %vm706, %v704, %v709
  %711 = vst [vmem:[#allocation4] sm:$0xff] %v710
  %v712 = vsel %vm706, %v704, 0.0
  %s713 = scalar_lea.vmem %s55, 56
  %714 = vst [vmem:[%s713] sm:$0xff] %v712
  %s715 = sadd.s32 %s67, 1
  %s716 = scalar_lea.vmem %s1, 16
  %v717 = vld [vmem:[%s716] sm:$0xff]
  %v718 = vld [vmem:[%s716 + $0x8] sm:$0xff]
  %v719 = vunpack.c.l.bf16 %v717
  %v720 = vunpack.c.h.bf16 %v717
  %v721 = vunpack.c.l.bf16 %v718
  %v722 = vunpack.c.h.bf16 %v718
  %v723 = vld [vmem:[#allocation2] sm:$0xff]
  %v724 = vpack.c.bf16 %v723, %v723
  %v725 = vld [vmem:[%s3] sm:$0xff]
  %v726 = vld [vmem:[%s3 + $0x8] sm:$0xff]
  %v727 = vld [vmem:[%s3 + $0x10] sm:$0xff]
  %v728 = vld [vmem:[%s3 + $0x18] sm:$0xff]
  %v729 = vld [vmem:[%s3 + $0x20] sm:$0xff]
  %v730 = vld [vmem:[%s3 + $0x28] sm:$0xff]
  %v731 = vld [vmem:[%s3 + $0x30] sm:$0xff]
  %v732 = vld [vmem:[%s3 + $0x38] sm:$0xff]
  %v733 = vld [vmem:[%s3 + $0x40] sm:$0xff]
  %v734 = vld [vmem:[%s3 + $0x48] sm:$0xff]
  %v735 = vld [vmem:[%s3 + $0x50] sm:$0xff]
  %v736 = vld [vmem:[%s3 + $0x58] sm:$0xff]
  %v737 = vld [vmem:[%s3 + $0x60] sm:$0xff]
  %v738 = vld [vmem:[%s3 + $0x68] sm:$0xff]
  %v739 = vld [vmem:[%s3 + $0x70] sm:$0xff]
  %v740 = vld [vmem:[%s3 + $0x78] sm:$0xff]
  %v741 = vld [vmem:[%s3 + $0x80] sm:$0xff]
  %v742 = vld [vmem:[%s3 + $0x88] sm:$0xff]
  %v743 = vld [vmem:[%s3 + $0x90] sm:$0xff]
  %v744 = vld [vmem:[%s3 + $0x98] sm:$0xff]
  %v745 = vld [vmem:[%s3 + $0xa0] sm:$0xff]
  %v746 = vld [vmem:[%s3 + $0xa8] sm:$0xff]
  %v747 = vld [vmem:[%s3 + $0xb0] sm:$0xff]
  %v748 = vld [vmem:[%s3 + $0xb8] sm:$0xff]
  %v749 = vld [vmem:[%s3 + $0xc0] sm:$0xff]
  %v750 = vld [vmem:[%s3 + $0xc8] sm:$0xff]
  %v751 = vld [vmem:[%s3 + $0xd0] sm:$0xff]
  %v752 = vld [vmem:[%s3 + $0xd8] sm:$0xff]
  %v753 = vld [vmem:[%s3 + $0xe0] sm:$0xff]
  %v754 = vld [vmem:[%s3 + $0xe8] sm:$0xff]
  %v755 = vld [vmem:[%s3 + $0xf0] sm:$0xff]
  %v756 = vld [vmem:[%s3 + $0xf8] sm:$0xff]
  %v789 = vunpack.c.l.b16 %v725
  %v790 = vunpack.c.h.b16 %v725
  %v791 = vunpack.c.l.b16 %v726
  %v792 = vunpack.c.h.b16 %v726
  %v793 = vunpack.c.l.b16 %v727
  %v794 = vunpack.c.h.b16 %v727
  %v795 = vunpack.c.l.b16 %v728
  %v796 = vunpack.c.h.b16 %v728
  %v797 = vunpack.c.l.b16 %v729
  %v798 = vunpack.c.h.b16 %v729
  %v799 = vunpack.c.l.b16 %v730
  %v800 = vunpack.c.h.b16 %v730
  %v801 = vunpack.c.l.b16 %v731
  %v802 = vunpack.c.h.b16 %v731
  %v803 = vunpack.c.l.b16 %v732
  %v804 = vunpack.c.h.b16 %v732
  %v805 = vunpack.c.l.b16 %v733
  %v806 = vunpack.c.h.b16 %v733
  %v807 = vunpack.c.l.b16 %v734
  %v808 = vunpack.c.h.b16 %v734
  %v809 = vunpack.c.l.b16 %v735
  %v810 = vunpack.c.h.b16 %v735
  %v811 = vunpack.c.l.b16 %v736
  %v812 = vunpack.c.h.b16 %v736
  %v813 = vunpack.c.l.b16 %v737
  %v814 = vunpack.c.h.b16 %v737
  %v815 = vunpack.c.l.b16 %v738
  %v816 = vunpack.c.h.b16 %v738
  %v817 = vunpack.c.l.b16 %v739
  %v818 = vunpack.c.h.b16 %v739
  %v819 = vunpack.c.l.b16 %v740
  %v820 = vunpack.c.h.b16 %v740
  %v821 = vunpack.c.l.b16 %v741
  %v822 = vunpack.c.h.b16 %v741
  %v823 = vunpack.c.l.b16 %v742
  %v824 = vunpack.c.h.b16 %v742
  %v825 = vunpack.c.l.b16 %v743
  %v826 = vunpack.c.h.b16 %v743
  %v827 = vunpack.c.l.b16 %v744
  %v828 = vunpack.c.h.b16 %v744
  %v829 = vunpack.c.l.b16 %v745
  %v830 = vunpack.c.h.b16 %v745
  %v831 = vunpack.c.l.b16 %v746
  %v832 = vunpack.c.h.b16 %v746
  %v833 = vunpack.c.l.b16 %v747
  %v834 = vunpack.c.h.b16 %v747
  %v835 = vunpack.c.l.b16 %v748
  %v836 = vunpack.c.h.b16 %v748
  %v837 = vunpack.c.l.b16 %v749
  %v838 = vunpack.c.h.b16 %v749
  %v839 = vunpack.c.l.b16 %v750
  %v840 = vunpack.c.h.b16 %v750
  %v841 = vunpack.c.l.b16 %v751
  %v842 = vunpack.c.h.b16 %v751
  %v843 = vunpack.c.l.b16 %v752
  %v844 = vunpack.c.h.b16 %v752
  %v845 = vunpack.c.l.b16 %v753
  %v846 = vunpack.c.h.b16 %v753
  %v847 = vunpack.c.l.b16 %v754
  %v848 = vunpack.c.h.b16 %v754
  %v849 = vunpack.c.l.b16 %v755
  %v850 = vunpack.c.h.b16 %v755
  %v851 = vunpack.c.l.b16 %v756
  %v852 = vunpack.c.h.b16 %v756
  %v853 = vpack.c.b16 %v793, %v789
  %v854 = vpack.c.b16 %v794, %v790
  %v855 = vpack.c.b16 %v795, %v791
  %v856 = vpack.c.b16 %v796, %v792
  %v857 = vpack.c.b16 %v801, %v797
  %v858 = vpack.c.b16 %v802, %v798
  %v859 = vpack.c.b16 %v803, %v799
  %v860 = vpack.c.b16 %v804, %v800
  %v861 = vpack.c.b16 %v809, %v805
  %v862 = vpack.c.b16 %v810, %v806
  %v863 = vpack.c.b16 %v811, %v807
  %v864 = vpack.c.b16 %v812, %v808
  %v865 = vpack.c.b16 %v817, %v813
  %v866 = vpack.c.b16 %v818, %v814
  %v867 = vpack.c.b16 %v819, %v815
  %v868 = vpack.c.b16 %v820, %v816
  %v869 = vpack.c.b16 %v825, %v821
  %v870 = vpack.c.b16 %v826, %v822
  %v871 = vpack.c.b16 %v827, %v823
  %v872 = vpack.c.b16 %v828, %v824
  %v873 = vpack.c.b16 %v833, %v829
  %v874 = vpack.c.b16 %v834, %v830
  %v875 = vpack.c.b16 %v835, %v831
  %v876 = vpack.c.b16 %v836, %v832
  %v877 = vpack.c.b16 %v841, %v837
  %v878 = vpack.c.b16 %v842, %v838
  %v879 = vpack.c.b16 %v843, %v839
  %v880 = vpack.c.b16 %v844, %v840
  %v881 = vpack.c.b16 %v849, %v845
  %v882 = vpack.c.b16 %v850, %v846
  %v883 = vpack.c.b16 %v851, %v847
  %v884 = vpack.c.b16 %v852, %v848
  %917 = vmatprep.subr.bf16.mxu0 %v882
  %918 = vmatpush1.bf16.msra.mxu0 %v881
  %919 = vmatprep.subr.bf16.mxu0 %v878
  %920 = vmatpush1.bf16.msra.mxu0 %v877
  %921 = vmatprep.subr.bf16.mxu0 %v874
  %922 = vmatpush1.bf16.msra.mxu0 %v873
  %923 = vmatprep.subr.bf16.mxu0 %v870
  %924 = vmatpush1.bf16.msra.mxu0 %v869
  %925 = vmatprep.subr.bf16.mxu0 %v866
  %926 = vmatpush1.bf16.msra.mxu0 %v865
  %927 = vmatprep.subr.bf16.mxu0 %v862
  %928 = vmatpush1.bf16.msra.mxu0 %v861
  %929 = vmatprep.subr.bf16.mxu0 %v858
  %930 = vmatpush1.bf16.msra.mxu0 %v857
  %931 = vmatprep.subr.bf16.mxu0 %v854
  %932 = vmatpush1.bf16.msra.mxu0 %v853
  %933 = vmatprep.subr.bf16.mxu0 0
  %934 = vmatpush2.bf16.msra.mxu0 0
  %935 = vmatprep.subr.bf16.mxu0 0
  %936 = vmatpush2.bf16.msra.mxu0 0
  %937 = vmatprep.subr.bf16.mxu0 0
  %938 = vmatpush2.bf16.msra.mxu0 0
  %939 = vmatprep.subr.bf16.mxu0 0
  %940 = vmatpush2.bf16.msra.mxu0 0
  %941 = vmatprep.subr.bf16.mxu0 0
  %942 = vmatpush2.bf16.msra.mxu0 0
  %943 = vmatprep.subr.bf16.mxu0 0
  %944 = vmatpush2.bf16.msra.mxu0 0
  %945 = vmatprep.subr.bf16.mxu0 0
  %946 = vmatpush2.bf16.msra.mxu0 0
  %947 = vmatprep.subr.bf16.mxu0 0
  %948 = vmatpush2.bf16.msra.mxu0 0
  %949 = vmatprep.mubr.bf16.mxu0 0
  %950 = vmatmul.mubr.bf16.gmra.mxu0 %v724
  %v951 = vpop.f32.mrf.mxu0
  %v952 = vadd.f32 0.0, %v951
  %v953 = vpop.f32.mrf.mxu0
  %v954 = vadd.f32 0.0, %v953
  %v955 = vpop.f32.mrf.mxu0
  %v956 = vpop.f32.mrf.mxu0
  %957 = vdwg.mxu0
  %958 = vmatprep.subr.bf16.mxu0 %v884
  %959 = vmatpush1.bf16.msra.mxu0 %v883
  %960 = vmatprep.subr.bf16.mxu0 %v880
  %961 = vmatpush1.bf16.msra.mxu0 %v879
  %962 = vmatprep.subr.bf16.mxu0 %v876
  %963 = vmatpush1.bf16.msra.mxu0 %v875
  %964 = vmatprep.subr.bf16.mxu0 %v872
  %965 = vmatpush1.bf16.msra.mxu0 %v871
  %966 = vmatprep.subr.bf16.mxu0 %v868
  %967 = vmatpush1.bf16.msra.mxu0 %v867
  %968 = vmatprep.subr.bf16.mxu0 %v864
  %969 = vmatpush1.bf16.msra.mxu0 %v863
  %970 = vmatprep.subr.bf16.mxu0 %v860
  %971 = vmatpush1.bf16.msra.mxu0 %v859
  %972 = vmatprep.subr.bf16.mxu0 %v856
  %973 = vmatpush1.bf16.msra.mxu0 %v855
  %974 = vmatprep.subr.bf16.mxu0 0
  %975 = vmatpush2.bf16.msra.mxu0 0
  %976 = vmatprep.subr.bf16.mxu0 0
  %977 = vmatpush2.bf16.msra.mxu0 0
  %978 = vmatprep.subr.bf16.mxu0 0
  %979 = vmatpush2.bf16.msra.mxu0 0
  %980 = vmatprep.subr.bf16.mxu0 0
  %981 = vmatpush2.bf16.msra.mxu0 0
  %982 = vmatprep.subr.bf16.mxu0 0
  %983 = vmatpush2.bf16.msra.mxu0 0
  %984 = vmatprep.subr.bf16.mxu0 0
  %985 = vmatpush2.bf16.msra.mxu0 0
  %986 = vmatprep.subr.bf16.mxu0 0
  %987 = vmatpush2.bf16.msra.mxu0 0
  %988 = vmatprep.subr.bf16.mxu0 0
  %989 = vmatpush2.bf16.msra.mxu0 0
  %990 = vmatprep.mubr.bf16.mxu0 0
  %991 = vmatmul.mubr.bf16.gmra.mxu0 %v724
  %v992 = vpop.f32.mrf.mxu0
  %v993 = vadd.f32 0.0, %v992
  %v994 = vpop.f32.mrf.mxu0
  %v995 = vadd.f32 0.0, %v994
  %v996 = vpop.f32.mrf.mxu0
  %v997 = vpop.f32.mrf.mxu0
  %998 = vdwg.mxu0
  %v999 = vadd.f32 %v719, %v952
  %v1000 = vadd.f32 %v720, %v954
  %v1001 = vadd.f32 %v721, %v993
  %v1002 = vadd.f32 %v722, %v995
  %v1003 = vxor.u32 %v999, 2147483648
  %v1004 = vmul.f32 %v1003, 1.442695
  %v1005 = vpow.pop %v1004
  %v1006 = vadd.f32 %v1005, 1.0
  %v1007 = vrcp.pop %v1006
  %v1008 = vmul.f32 1.0, %v1007
  %v1009 = vxor.u32 %v1000, 2147483648
  %v1010 = vmul.f32 %v1009, 1.442695
  %v1011 = vpow.pop %v1010
  %v1012 = vadd.f32 %v1011, 1.0
  %v1013 = vrcp.pop %v1012
  %v1014 = vmul.f32 1.0, %v1013
  %v1015 = vtanh.pop %v1001
  %v1016 = vxor.u32 %v1002, 2147483648
  %v1017 = vmul.f32 %v1016, 1.442695
  %v1018 = vpow.pop %v1017
  %v1019 = vadd.f32 %v1018, 1.0
  %v1020 = vrcp.pop %v1019
  %v1021 = vmul.f32 1.0, %v1020
  %v1022 = vld [vmem:[#allocation3] sm:$0xff]
  %v1023 = vmul.f32 %v1014, %v1022
  %v1024 = vmul.f32 %v1008, %v1015
  %v1025 = vadd.f32 %v1023, %v1024
  %v1026 = vtanh.pop %v1025
  %v1027 = vmul.f32 %v1021, %v1026
  %v1028 = vstv %s715
  %vm1029 = vcmp.gt.s32.totalorder %v70, %v1028
  %v1030 = vsel %vm1029, %v1025, %v1022
  %1031 = vst [vmem:[#allocation3] sm:$0xff] %v1030
  %v1032 = vld [vmem:[#allocation2] sm:$0xff]
  %v1033 = vsel %vm1029, %v1027, %v1032
  %1034 = vst [vmem:[#allocation2] sm:$0xff] %v1033
  %v1035 = vsel %vm1029, %v1027, 0.0
  %s1036 = scalar_lea.vmem %s4, 8
  %1037 = vst [vmem:[%s1036] sm:$0xff] %v1035
  %s1038 = sadd.s32 %s69, 6
  %s1039 = scalar_lea.vmem %s47, 96
  %v1040 = vld [vmem:[%s1039] sm:$0xff]
  %v1041 = vld [vmem:[%s1039 + $0x8] sm:$0xff]
  %v1042 = vunpack.c.l.bf16 %v1040
  %v1043 = vunpack.c.h.bf16 %v1040
  %v1044 = vunpack.c.l.bf16 %v1041
  %v1045 = vunpack.c.h.bf16 %v1041
  %v1046 = vld [vmem:[#allocation4] sm:$0xff]
  %v1047 = vpack.c.bf16 %v1046, %v1046
  %v1048 = vld [vmem:[%s401] sm:$0xff]
  %v1049 = vld [vmem:[%s401 + $0x8] sm:$0xff]
  %v1050 = vld [vmem:[%s401 + $0x10] sm:$0xff]
  %v1051 = vld [vmem:[%s401 + $0x18] sm:$0xff]
  %v1052 = vld [vmem:[%s401 + $0x20] sm:$0xff]
  %v1053 = vld [vmem:[%s401 + $0x28] sm:$0xff]
  %v1054 = vld [vmem:[%s401 + $0x30] sm:$0xff]
  %v1055 = vld [vmem:[%s401 + $0x38] sm:$0xff]
  %v1056 = vld [vmem:[%s401 + $0x40] sm:$0xff]
  %v1057 = vld [vmem:[%s401 + $0x48] sm:$0xff]
  %v1058 = vld [vmem:[%s401 + $0x50] sm:$0xff]
  %v1059 = vld [vmem:[%s401 + $0x58] sm:$0xff]
  %v1060 = vld [vmem:[%s401 + $0x60] sm:$0xff]
  %v1061 = vld [vmem:[%s401 + $0x68] sm:$0xff]
  %v1062 = vld [vmem:[%s401 + $0x70] sm:$0xff]
  %v1063 = vld [vmem:[%s401 + $0x78] sm:$0xff]
  %v1064 = vld [vmem:[%s401 + $0x80] sm:$0xff]
  %v1065 = vld [vmem:[%s401 + $0x88] sm:$0xff]
  %v1066 = vld [vmem:[%s401 + $0x90] sm:$0xff]
  %v1067 = vld [vmem:[%s401 + $0x98] sm:$0xff]
  %v1068 = vld [vmem:[%s401 + $0xa0] sm:$0xff]
  %v1069 = vld [vmem:[%s401 + $0xa8] sm:$0xff]
  %v1070 = vld [vmem:[%s401 + $0xb0] sm:$0xff]
  %v1071 = vld [vmem:[%s401 + $0xb8] sm:$0xff]
  %v1072 = vld [vmem:[%s401 + $0xc0] sm:$0xff]
  %v1073 = vld [vmem:[%s401 + $0xc8] sm:$0xff]
  %v1074 = vld [vmem:[%s401 + $0xd0] sm:$0xff]
  %v1075 = vld [vmem:[%s401 + $0xd8] sm:$0xff]
  %v1076 = vld [vmem:[%s401 + $0xe0] sm:$0xff]
  %v1077 = vld [vmem:[%s401 + $0xe8] sm:$0xff]
  %v1078 = vld [vmem:[%s401 + $0xf0] sm:$0xff]
  %v1079 = vld [vmem:[%s401 + $0xf8] sm:$0xff]
  %v1112 = vunpack.c.l.b16 %v1048
  %v1113 = vunpack.c.h.b16 %v1048
  %v1114 = vunpack.c.l.b16 %v1049
  %v1115 = vunpack.c.h.b16 %v1049
  %v1116 = vunpack.c.l.b16 %v1050
  %v1117 = vunpack.c.h.b16 %v1050
  %v1118 = vunpack.c.l.b16 %v1051
  %v1119 = vunpack.c.h.b16 %v1051
  %v1120 = vunpack.c.l.b16 %v1052
  %v1121 = vunpack.c.h.b16 %v1052
  %v1122 = vunpack.c.l.b16 %v1053
  %v1123 = vunpack.c.h.b16 %v1053
  %v1124 = vunpack.c.l.b16 %v1054
  %v1125 = vunpack.c.h.b16 %v1054
  %v1126 = vunpack.c.l.b16 %v1055
  %v1127 = vunpack.c.h.b16 %v1055
  %v1128 = vunpack.c.l.b16 %v1056
  %v1129 = vunpack.c.h.b16 %v1056
  %v1130 = vunpack.c.l.b16 %v1057
  %v1131 = vunpack.c.h.b16 %v1057
  %v1132 = vunpack.c.l.b16 %v1058
  %v1133 = vunpack.c.h.b16 %v1058
  %v1134 = vunpack.c.l.b16 %v1059
  %v1135 = vunpack.c.h.b16 %v1059
  %v1136 = vunpack.c.l.b16 %v1060
  %v1137 = vunpack.c.h.b16 %v1060
  %v1138 = vunpack.c.l.b16 %v1061
  %v1139 = vunpack.c.h.b16 %v1061
  %v1140 = vunpack.c.l.b16 %v1062
  %v1141 = vunpack.c.h.b16 %v1062
  %v1142 = vunpack.c.l.b16 %v1063
  %v1143 = vunpack.c.h.b16 %v1063
  %v1144 = vunpack.c.l.b16 %v1064
  %v1145 = vunpack.c.h.b16 %v1064
  %v1146 = vunpack.c.l.b16 %v1065
  %v1147 = vunpack.c.h.b16 %v1065
  %v1148 = vunpack.c.l.b16 %v1066
  %v1149 = vunpack.c.h.b16 %v1066
  %v1150 = vunpack.c.l.b16 %v1067
  %v1151 = vunpack.c.h.b16 %v1067
  %v1152 = vunpack.c.l.b16 %v1068
  %v1153 = vunpack.c.h.b16 %v1068
  %v1154 = vunpack.c.l.b16 %v1069
  %v1155 = vunpack.c.h.b16 %v1069
  %v1156 = vunpack.c.l.b16 %v1070
  %v1157 = vunpack.c.h.b16 %v1070
  %v1158 = vunpack.c.l.b16 %v1071
  %v1159 = vunpack.c.h.b16 %v1071
  %v1160 = vunpack.c.l.b16 %v1072
  %v1161 = vunpack.c.h.b16 %v1072
  %v1162 = vunpack.c.l.b16 %v1073
  %v1163 = vunpack.c.h.b16 %v1073
  %v1164 = vunpack.c.l.b16 %v1074
  %v1165 = vunpack.c.h.b16 %v1074
  %v1166 = vunpack.c.l.b16 %v1075
  %v1167 = vunpack.c.h.b16 %v1075
  %v1168 = vunpack.c.l.b16 %v1076
  %v1169 = vunpack.c.h.b16 %v1076
  %v1170 = vunpack.c.l.b16 %v1077
  %v1171 = vunpack.c.h.b16 %v1077
  %v1172 = vunpack.c.l.b16 %v1078
  %v1173 = vunpack.c.h.b16 %v1078
  %v1174 = vunpack.c.l.b16 %v1079
  %v1175 = vunpack.c.h.b16 %v1079
  %v1176 = vpack.c.b16 %v1116, %v1112
  %v1177 = vpack.c.b16 %v1117, %v1113
  %v1178 = vpack.c.b16 %v1118, %v1114
  %v1179 = vpack.c.b16 %v1119, %v1115
  %v1180 = vpack.c.b16 %v1124, %v1120
  %v1181 = vpack.c.b16 %v1125, %v1121
  %v1182 = vpack.c.b16 %v1126, %v1122
  %v1183 = vpack.c.b16 %v1127, %v1123
  %v1184 = vpack.c.b16 %v1132, %v1128
  %v1185 = vpack.c.b16 %v1133, %v1129
  %v1186 = vpack.c.b16 %v1134, %v1130
  %v1187 = vpack.c.b16 %v1135, %v1131
  %v1188 = vpack.c.b16 %v1140, %v1136
  %v1189 = vpack.c.b16 %v1141, %v1137
  %v1190 = vpack.c.b16 %v1142, %v1138
  %v1191 = vpack.c.b16 %v1143, %v1139
  %v1192 = vpack.c.b16 %v1148, %v1144
  %v1193 = vpack.c.b16 %v1149, %v1145
  %v1194 = vpack.c.b16 %v1150, %v1146
  %v1195 = vpack.c.b16 %v1151, %v1147
  %v1196 = vpack.c.b16 %v1156, %v1152
  %v1197 = vpack.c.b16 %v1157, %v1153
  %v1198 = vpack.c.b16 %v1158, %v1154
  %v1199 = vpack.c.b16 %v1159, %v1155
  %v1200 = vpack.c.b16 %v1164, %v1160
  %v1201 = vpack.c.b16 %v1165, %v1161
  %v1202 = vpack.c.b16 %v1166, %v1162
  %v1203 = vpack.c.b16 %v1167, %v1163
  %v1204 = vpack.c.b16 %v1172, %v1168
  %v1205 = vpack.c.b16 %v1173, %v1169
  %v1206 = vpack.c.b16 %v1174, %v1170
  %v1207 = vpack.c.b16 %v1175, %v1171
  %1240 = vmatprep.subr.bf16.mxu0 %v1205
  %1241 = vmatpush1.bf16.msra.mxu0 %v1204
  %1242 = vmatprep.subr.bf16.mxu0 %v1201
  %1243 = vmatpush1.bf16.msra.mxu0 %v1200
  %1244 = vmatprep.subr.bf16.mxu0 %v1197
  %1245 = vmatpush1.bf16.msra.mxu0 %v1196
  %1246 = vmatprep.subr.bf16.mxu0 %v1193
  %1247 = vmatpush1.bf16.msra.mxu0 %v1192
  %1248 = vmatprep.subr.bf16.mxu0 %v1189
  %1249 = vmatpush1.bf16.msra.mxu0 %v1188
  %1250 = vmatprep.subr.bf16.mxu0 %v1185
  %1251 = vmatpush1.bf16.msra.mxu0 %v1184
  %1252 = vmatprep.subr.bf16.mxu0 %v1181
  %1253 = vmatpush1.bf16.msra.mxu0 %v1180
  %1254 = vmatprep.subr.bf16.mxu0 %v1177
  %1255 = vmatpush1.bf16.msra.mxu0 %v1176
  %1256 = vmatprep.subr.bf16.mxu0 0
  %1257 = vmatpush2.bf16.msra.mxu0 0
  %1258 = vmatprep.subr.bf16.mxu0 0
  %1259 = vmatpush2.bf16.msra.mxu0 0
  %1260 = vmatprep.subr.bf16.mxu0 0
  %1261 = vmatpush2.bf16.msra.mxu0 0
  %1262 = vmatprep.subr.bf16.mxu0 0
  %1263 = vmatpush2.bf16.msra.mxu0 0
  %1264 = vmatprep.subr.bf16.mxu0 0
  %1265 = vmatpush2.bf16.msra.mxu0 0
  %1266 = vmatprep.subr.bf16.mxu0 0
  %1267 = vmatpush2.bf16.msra.mxu0 0
  %1268 = vmatprep.subr.bf16.mxu0 0
  %1269 = vmatpush2.bf16.msra.mxu0 0
  %1270 = vmatprep.subr.bf16.mxu0 0
  %1271 = vmatpush2.bf16.msra.mxu0 0
  %1272 = vmatprep.mubr.bf16.mxu0 0
  %1273 = vmatmul.mubr.bf16.gmra.mxu0 %v1047
  %v1274 = vpop.f32.mrf.mxu0
  %v1275 = vadd.f32 0.0, %v1274
  %v1276 = vpop.f32.mrf.mxu0
  %v1277 = vadd.f32 0.0, %v1276
  %v1278 = vpop.f32.mrf.mxu0
  %v1279 = vpop.f32.mrf.mxu0
  %1280 = vdwg.mxu0
  %1281 = vmatprep.subr.bf16.mxu0 %v1207
  %1282 = vmatpush1.bf16.msra.mxu0 %v1206
  %1283 = vmatprep.subr.bf16.mxu0 %v1203
  %1284 = vmatpush1.bf16.msra.mxu0 %v1202
  %1285 = vmatprep.subr.bf16.mxu0 %v1199
  %1286 = vmatpush1.bf16.msra.mxu0 %v1198
  %1287 = vmatprep.subr.bf16.mxu0 %v1195
  %1288 = vmatpush1.bf16.msra.mxu0 %v1194
  %1289 = vmatprep.subr.bf16.mxu0 %v1191
  %1290 = vmatpush1.bf16.msra.mxu0 %v1190
  %1291 = vmatprep.subr.bf16.mxu0 %v1187
  %1292 = vmatpush1.bf16.msra.mxu0 %v1186
  %1293 = vmatprep.subr.bf16.mxu0 %v1183
  %1294 = vmatpush1.bf16.msra.mxu0 %v1182
  %1295 = vmatprep.subr.bf16.mxu0 %v1179
  %1296 = vmatpush1.bf16.msra.mxu0 %v1178
  %1297 = vmatprep.subr.bf16.mxu0 0
  %1298 = vmatpush2.bf16.msra.mxu0 0
  %1299 = vmatprep.subr.bf16.mxu0 0
  %1300 = vmatpush2.bf16.msra.mxu0 0
  %1301 = vmatprep.subr.bf16.mxu0 0
  %1302 = vmatpush2.bf16.msra.mxu0 0
  %1303 = vmatprep.subr.bf16.mxu0 0
  %1304 = vmatpush2.bf16.msra.mxu0 0
  %1305 = vmatprep.subr.bf16.mxu0 0
  %1306 = vmatpush2.bf16.msra.mxu0 0
  %1307 = vmatprep.subr.bf16.mxu0 0
  %1308 = vmatpush2.bf16.msra.mxu0 0
  %1309 = vmatprep.subr.bf16.mxu0 0
  %1310 = vmatpush2.bf16.msra.mxu0 0
  %1311 = vmatprep.subr.bf16.mxu0 0
  %1312 = vmatpush2.bf16.msra.mxu0 0
  %1313 = vmatprep.mubr.bf16.mxu0 0
  %1314 = vmatmul.mubr.bf16.gmra.mxu0 %v1047
  %v1315 = vpop.f32.mrf.mxu0
  %v1316 = vadd.f32 0.0, %v1315
  %v1317 = vpop.f32.mrf.mxu0
  %v1318 = vadd.f32 0.0, %v1317
  %v1319 = vpop.f32.mrf.mxu0
  %v1320 = vpop.f32.mrf.mxu0
  %1321 = vdwg.mxu0
  %v1322 = vadd.f32 %v1042, %v1275
  %v1323 = vadd.f32 %v1043, %v1277
  %v1324 = vadd.f32 %v1044, %v1316
  %v1325 = vadd.f32 %v1045, %v1318
  %v1326 = vxor.u32 %v1322, 2147483648
  %v1327 = vmul.f32 %v1326, 1.442695
  %v1328 = vpow.pop %v1327
  %v1329 = vadd.f32 %v1328, 1.0
  %v1330 = vrcp.pop %v1329
  %v1331 = vmul.f32 1.0, %v1330
  %v1332 = vxor.u32 %v1323, 2147483648
  %v1333 = vmul.f32 %v1332, 1.442695
  %v1334 = vpow.pop %v1333
  %v1335 = vadd.f32 %v1334, 1.0
  %v1336 = vrcp.pop %v1335
  %v1337 = vmul.f32 1.0, %v1336
  %v1338 = vtanh.pop %v1324
  %v1339 = vxor.u32 %v1325, 2147483648
  %v1340 = vmul.f32 %v1339, 1.442695
  %v1341 = vpow.pop %v1340
  %v1342 = vadd.f32 %v1341, 1.0
  %v1343 = vrcp.pop %v1342
  %v1344 = vmul.f32 1.0, %v1343
  %v1345 = vld [vmem:[#allocation5] sm:$0xff]
  %v1346 = vmul.f32 %v1337, %v1345
  %v1347 = vmul.f32 %v1331, %v1338
  %v1348 = vadd.f32 %v1346, %v1347
  %v1349 = vtanh.pop %v1348
  %v1350 = vmul.f32 %v1344, %v1349
  %v1351 = vstv %s1038
  %vm1352 = vcmp.gt.s32.totalorder %v70, %v1351
  %v1353 = vsel %vm1352, %v1348, %v1345
  %1354 = vst [vmem:[#allocation5] sm:$0xff] %v1353
  %v1355 = vld [vmem:[#allocation4] sm:$0xff]
  %v1356 = vsel %vm1352, %v1350, %v1355
  %1357 = vst [vmem:[#allocation4] sm:$0xff] %v1356
  %v1358 = vsel %vm1352, %v1350, 0.0
  %s1359 = scalar_lea.vmem %s55, 48
  %1360 = vst [vmem:[%s1359] sm:$0xff] %v1358
  %s1361 = sadd.s32 %s67, 2
  %s1362 = scalar_lea.vmem %s1, 32
  %v1363 = vld [vmem:[%s1362] sm:$0xff]
  %v1364 = vld [vmem:[%s1362 + $0x8] sm:$0xff]
  %v1365 = vunpack.c.l.bf16 %v1363
  %v1366 = vunpack.c.h.bf16 %v1363
  %v1367 = vunpack.c.l.bf16 %v1364
  %v1368 = vunpack.c.h.bf16 %v1364
  %v1369 = vld [vmem:[#allocation2] sm:$0xff]
  %v1370 = vpack.c.bf16 %v1369, %v1369
  %v1371 = vld [vmem:[%s3] sm:$0xff]
  %v1372 = vld [vmem:[%s3 + $0x8] sm:$0xff]
  %v1373 = vld [vmem:[%s3 + $0x10] sm:$0xff]
  %v1374 = vld [vmem:[%s3 + $0x18] sm:$0xff]
  %v1375 = vld [vmem:[%s3 + $0x20] sm:$0xff]
  %v1376 = vld [vmem:[%s3 + $0x28] sm:$0xff]
  %v1377 = vld [vmem:[%s3 + $0x30] sm:$0xff]
  %v1378 = vld [vmem:[%s3 + $0x38] sm:$0xff]
  %v1379 = vld [vmem:[%s3 + $0x40] sm:$0xff]
  %v1380 = vld [vmem:[%s3 + $0x48] sm:$0xff]
  %v1381 = vld [vmem:[%s3 + $0x50] sm:$0xff]
  %v1382 = vld [vmem:[%s3 + $0x58] sm:$0xff]
  %v1383 = vld [vmem:[%s3 + $0x60] sm:$0xff]
  %v1384 = vld [vmem:[%s3 + $0x68] sm:$0xff]
  %v1385 = vld [vmem:[%s3 + $0x70] sm:$0xff]
  %v1386 = vld [vmem:[%s3 + $0x78] sm:$0xff]
  %v1387 = vld [vmem:[%s3 + $0x80] sm:$0xff]
  %v1388 = vld [vmem:[%s3 + $0x88] sm:$0xff]
  %v1389 = vld [vmem:[%s3 + $0x90] sm:$0xff]
  %v1390 = vld [vmem:[%s3 + $0x98] sm:$0xff]
  %v1391 = vld [vmem:[%s3 + $0xa0] sm:$0xff]
  %v1392 = vld [vmem:[%s3 + $0xa8] sm:$0xff]
  %v1393 = vld [vmem:[%s3 + $0xb0] sm:$0xff]
  %v1394 = vld [vmem:[%s3 + $0xb8] sm:$0xff]
  %v1395 = vld [vmem:[%s3 + $0xc0] sm:$0xff]
  %v1396 = vld [vmem:[%s3 + $0xc8] sm:$0xff]
  %v1397 = vld [vmem:[%s3 + $0xd0] sm:$0xff]
  %v1398 = vld [vmem:[%s3 + $0xd8] sm:$0xff]
  %v1399 = vld [vmem:[%s3 + $0xe0] sm:$0xff]
  %v1400 = vld [vmem:[%s3 + $0xe8] sm:$0xff]
  %v1401 = vld [vmem:[%s3 + $0xf0] sm:$0xff]
  %v1402 = vld [vmem:[%s3 + $0xf8] sm:$0xff]
  %v1435 = vunpack.c.l.b16 %v1371
  %v1436 = vunpack.c.h.b16 %v1371
  %v1437 = vunpack.c.l.b16 %v1372
  %v1438 = vunpack.c.h.b16 %v1372
  %v1439 = vunpack.c.l.b16 %v1373
  %v1440 = vunpack.c.h.b16 %v1373
  %v1441 = vunpack.c.l.b16 %v1374
  %v1442 = vunpack.c.h.b16 %v1374
  %v1443 = vunpack.c.l.b16 %v1375
  %v1444 = vunpack.c.h.b16 %v1375
  %v1445 = vunpack.c.l.b16 %v1376
  %v1446 = vunpack.c.h.b16 %v1376
  %v1447 = vunpack.c.l.b16 %v1377
  %v1448 = vunpack.c.h.b16 %v1377
  %v1449 = vunpack.c.l.b16 %v1378
  %v1450 = vunpack.c.h.b16 %v1378
  %v1451 = vunpack.c.l.b16 %v1379
  %v1452 = vunpack.c.h.b16 %v1379
  %v1453 = vunpack.c.l.b16 %v1380
  %v1454 = vunpack.c.h.b16 %v1380
  %v1455 = vunpack.c.l.b16 %v1381
  %v1456 = vunpack.c.h.b16 %v1381
  %v1457 = vunpack.c.l.b16 %v1382
  %v1458 = vunpack.c.h.b16 %v1382
  %v1459 = vunpack.c.l.b16 %v1383
  %v1460 = vunpack.c.h.b16 %v1383
  %v1461 = vunpack.c.l.b16 %v1384
  %v1462 = vunpack.c.h.b16 %v1384
  %v1463 = vunpack.c.l.b16 %v1385
  %v1464 = vunpack.c.h.b16 %v1385
  %v1465 = vunpack.c.l.b16 %v1386
  %v1466 = vunpack.c.h.b16 %v1386
  %v1467 = vunpack.c.l.b16 %v1387
  %v1468 = vunpack.c.h.b16 %v1387
  %v1469 = vunpack.c.l.b16 %v1388
  %v1470 = vunpack.c.h.b16 %v1388
  %v1471 = vunpack.c.l.b16 %v1389
  %v1472 = vunpack.c.h.b16 %v1389
  %v1473 = vunpack.c.l.b16 %v1390
  %v1474 = vunpack.c.h.b16 %v1390
  %v1475 = vunpack.c.l.b16 %v1391
  %v1476 = vunpack.c.h.b16 %v1391
  %v1477 = vunpack.c.l.b16 %v1392
  %v1478 = vunpack.c.h.b16 %v1392
  %v1479 = vunpack.c.l.b16 %v1393
  %v1480 = vunpack.c.h.b16 %v1393
  %v1481 = vunpack.c.l.b16 %v1394
  %v1482 = vunpack.c.h.b16 %v1394
  %v1483 = vunpack.c.l.b16 %v1395
  %v1484 = vunpack.c.h.b16 %v1395
  %v1485 = vunpack.c.l.b16 %v1396
  %v1486 = vunpack.c.h.b16 %v1396
  %v1487 = vunpack.c.l.b16 %v1397
  %v1488 = vunpack.c.h.b16 %v1397
  %v1489 = vunpack.c.l.b16 %v1398
  %v1490 = vunpack.c.h.b16 %v1398
  %v1491 = vunpack.c.l.b16 %v1399
  %v1492 = vunpack.c.h.b16 %v1399
  %v1493 = vunpack.c.l.b16 %v1400
  %v1494 = vunpack.c.h.b16 %v1400
  %v1495 = vunpack.c.l.b16 %v1401
  %v1496 = vunpack.c.h.b16 %v1401
  %v1497 = vunpack.c.l.b16 %v1402
  %v1498 = vunpack.c.h.b16 %v1402
  %v1499 = vpack.c.b16 %v1439, %v1435
  %v1500 = vpack.c.b16 %v1440, %v1436
  %v1501 = vpack.c.b16 %v1441, %v1437
  %v1502 = vpack.c.b16 %v1442, %v1438
  %v1503 = vpack.c.b16 %v1447, %v1443
  %v1504 = vpack.c.b16 %v1448, %v1444
  %v1505 = vpack.c.b16 %v1449, %v1445
  %v1506 = vpack.c.b16 %v1450, %v1446
  %v1507 = vpack.c.b16 %v1455, %v1451
  %v1508 = vpack.c.b16 %v1456, %v1452
  %v1509 = vpack.c.b16 %v1457, %v1453
  %v1510 = vpack.c.b16 %v1458, %v1454
  %v1511 = vpack.c.b16 %v1463, %v1459
  %v1512 = vpack.c.b16 %v1464, %v1460
  %v1513 = vpack.c.b16 %v1465, %v1461
  %v1514 = vpack.c.b16 %v1466, %v1462
  %v1515 = vpack.c.b16 %v1471, %v1467
  %v1516 = vpack.c.b16 %v1472, %v1468
  %v1517 = vpack.c.b16 %v1473, %v1469
  %v1518 = vpack.c.b16 %v1474, %v1470
  %v1519 = vpack.c.b16 %v1479, %v1475
  %v1520 = vpack.c.b16 %v1480, %v1476
  %v1521 = vpack.c.b16 %v1481, %v1477
  %v1522 = vpack.c.b16 %v1482, %v1478
  %v1523 = vpack.c.b16 %v1487, %v1483
  %v1524 = vpack.c.b16 %v1488, %v1484
  %v1525 = vpack.c.b16 %v1489, %v1485
  %v1526 = vpack.c.b16 %v1490, %v1486
  %v1527 = vpack.c.b16 %v1495, %v1491
  %v1528 = vpack.c.b16 %v1496, %v1492
  %v1529 = vpack.c.b16 %v1497, %v1493
  %v1530 = vpack.c.b16 %v1498, %v1494
  %1563 = vmatprep.subr.bf16.mxu0 %v1528
  %1564 = vmatpush1.bf16.msra.mxu0 %v1527
  %1565 = vmatprep.subr.bf16.mxu0 %v1524
  %1566 = vmatpush1.bf16.msra.mxu0 %v1523
  %1567 = vmatprep.subr.bf16.mxu0 %v1520
  %1568 = vmatpush1.bf16.msra.mxu0 %v1519
  %1569 = vmatprep.subr.bf16.mxu0 %v1516
  %1570 = vmatpush1.bf16.msra.mxu0 %v1515
  %1571 = vmatprep.subr.bf16.mxu0 %v1512
  %1572 = vmatpush1.bf16.msra.mxu0 %v1511
  %1573 = vmatprep.subr.bf16.mxu0 %v1508
  %1574 = vmatpush1.bf16.msra.mxu0 %v1507
  %1575 = vmatprep.subr.bf16.mxu0 %v1504
  %1576 = vmatpush1.bf16.msra.mxu0 %v1503
  %1577 = vmatprep.subr.bf16.mxu0 %v1500
  %1578 = vmatpush1.bf16.msra.mxu0 %v1499
  %1579 = vmatprep.subr.bf16.mxu0 0
  %1580 = vmatpush2.bf16.msra.mxu0 0
  %1581 = vmatprep.subr.bf16.mxu0 0
  %1582 = vmatpush2.bf16.msra.mxu0 0
  %1583 = vmatprep.subr.bf16.mxu0 0
  %1584 = vmatpush2.bf16.msra.mxu0 0
  %1585 = vmatprep.subr.bf16.mxu0 0
  %1586 = vmatpush2.bf16.msra.mxu0 0
  %1587 = vmatprep.subr.bf16.mxu0 0
  %1588 = vmatpush2.bf16.msra.mxu0 0
  %1589 = vmatprep.subr.bf16.mxu0 0
  %1590 = vmatpush2.bf16.msra.mxu0 0
  %1591 = vmatprep.subr.bf16.mxu0 0
  %1592 = vmatpush2.bf16.msra.mxu0 0
  %1593 = vmatprep.subr.bf16.mxu0 0
  %1594 = vmatpush2.bf16.msra.mxu0 0
  %1595 = vmatprep.mubr.bf16.mxu0 0
  %1596 = vmatmul.mubr.bf16.gmra.mxu0 %v1370
  %v1597 = vpop.f32.mrf.mxu0
  %v1598 = vadd.f32 0.0, %v1597
  %v1599 = vpop.f32.mrf.mxu0
  %v1600 = vadd.f32 0.0, %v1599
  %v1601 = vpop.f32.mrf.mxu0
  %v1602 = vpop.f32.mrf.mxu0
  %1603 = vdwg.mxu0
  %1604 = vmatprep.subr.bf16.mxu0 %v1530
  %1605 = vmatpush1.bf16.msra.mxu0 %v1529
  %1606 = vmatprep.subr.bf16.mxu0 %v1526
  %1607 = vmatpush1.bf16.msra.mxu0 %v1525
  %1608 = vmatprep.subr.bf16.mxu0 %v1522
  %1609 = vmatpush1.bf16.msra.mxu0 %v1521
  %1610 = vmatprep.subr.bf16.mxu0 %v1518
  %1611 = vmatpush1.bf16.msra.mxu0 %v1517
  %1612 = vmatprep.subr.bf16.mxu0 %v1514
  %1613 = vmatpush1.bf16.msra.mxu0 %v1513
  %1614 = vmatprep.subr.bf16.mxu0 %v1510
  %1615 = vmatpush1.bf16.msra.mxu0 %v1509
  %1616 = vmatprep.subr.bf16.mxu0 %v1506
  %1617 = vmatpush1.bf16.msra.mxu0 %v1505
  %1618 = vmatprep.subr.bf16.mxu0 %v1502
  %1619 = vmatpush1.bf16.msra.mxu0 %v1501
  %1620 = vmatprep.subr.bf16.mxu0 0
  %1621 = vmatpush2.bf16.msra.mxu0 0
  %1622 = vmatprep.subr.bf16.mxu0 0
  %1623 = vmatpush2.bf16.msra.mxu0 0
  %1624 = vmatprep.subr.bf16.mxu0 0
  %1625 = vmatpush2.bf16.msra.mxu0 0
  %1626 = vmatprep.subr.bf16.mxu0 0
  %1627 = vmatpush2.bf16.msra.mxu0 0
  %1628 = vmatprep.subr.bf16.mxu0 0
  %1629 = vmatpush2.bf16.msra.mxu0 0
  %1630 = vmatprep.subr.bf16.mxu0 0
  %1631 = vmatpush2.bf16.msra.mxu0 0
  %1632 = vmatprep.subr.bf16.mxu0 0
  %1633 = vmatpush2.bf16.msra.mxu0 0
  %1634 = vmatprep.subr.bf16.mxu0 0
  %1635 = vmatpush2.bf16.msra.mxu0 0
  %1636 = vmatprep.mubr.bf16.mxu0 0
  %1637 = vmatmul.mubr.bf16.gmra.mxu0 %v1370
  %v1638 = vpop.f32.mrf.mxu0
  %v1639 = vadd.f32 0.0, %v1638
  %v1640 = vpop.f32.mrf.mxu0
  %v1641 = vadd.f32 0.0, %v1640
  %v1642 = vpop.f32.mrf.mxu0
  %v1643 = vpop.f32.mrf.mxu0
  %1644 = vdwg.mxu0
  %v1645 = vadd.f32 %v1365, %v1598
  %v1646 = vadd.f32 %v1366, %v1600
  %v1647 = vadd.f32 %v1367, %v1639
  %v1648 = vadd.f32 %v1368, %v1641
  %v1649 = vxor.u32 %v1645, 2147483648
  %v1650 = vmul.f32 %v1649, 1.442695
  %v1651 = vpow.pop %v1650
  %v1652 = vadd.f32 %v1651, 1.0
  %v1653 = vrcp.pop %v1652
  %v1654 = vmul.f32 1.0, %v1653
  %v1655 = vxor.u32 %v1646, 2147483648
  %v1656 = vmul.f32 %v1655, 1.442695
  %v1657 = vpow.pop %v1656
  %v1658 = vadd.f32 %v1657, 1.0
  %v1659 = vrcp.pop %v1658
  %v1660 = vmul.f32 1.0, %v1659
  %v1661 = vtanh.pop %v1647
  %v1662 = vxor.u32 %v1648, 2147483648
  %v1663 = vmul.f32 %v1662, 1.442695
  %v1664 = vpow.pop %v1663
  %v1665 = vadd.f32 %v1664, 1.0
  %v1666 = vrcp.pop %v1665
  %v1667 = vmul.f32 1.0, %v1666
  %v1668 = vld [vmem:[#allocation3] sm:$0xff]
  %v1669 = vmul.f32 %v1660, %v1668
  %v1670 = vmul.f32 %v1654, %v1661
  %v1671 = vadd.f32 %v1669, %v1670
  %v1672 = vtanh.pop %v1671
  %v1673 = vmul.f32 %v1667, %v1672
  %v1674 = vstv %s1361
  %vm1675 = vcmp.gt.s32.totalorder %v70, %v1674
  %v1676 = vsel %vm1675, %v1671, %v1668
  %1677 = vst [vmem:[#allocation3] sm:$0xff] %v1676
  %v1678 = vld [vmem:[#allocation2] sm:$0xff]
  %v1679 = vsel %vm1675, %v1673, %v1678
  %1680 = vst [vmem:[#allocation2] sm:$0xff] %v1679
  %v1681 = vsel %vm1675, %v1673, 0.0
  %s1682 = scalar_lea.vmem %s4, 16
  %1683 = vst [vmem:[%s1682] sm:$0xff] %v1681
  %s1684 = sadd.s32 %s69, 5
  %s1685 = scalar_lea.vmem %s47, 80
  %v1686 = vld [vmem:[%s1685] sm:$0xff]
  %v1687 = vld [vmem:[%s1685 + $0x8] sm:$0xff]
  %v1688 = vunpack.c.l.bf16 %v1686
  %v1689 = vunpack.c.h.bf16 %v1686
  %v1690 = vunpack.c.l.bf16 %v1687
  %v1691 = vunpack.c.h.bf16 %v1687
  %v1692 = vld [vmem:[#allocation4] sm:$0xff]
  %v1693 = vpack.c.bf16 %v1692, %v1692
  %v1694 = vld [vmem:[%s401] sm:$0xff]
  %v1695 = vld [vmem:[%s401 + $0x8] sm:$0xff]
  %v1696 = vld [vmem:[%s401 + $0x10] sm:$0xff]
  %v1697 = vld [vmem:[%s401 + $0x18] sm:$0xff]
  %v1698 = vld [vmem:[%s401 + $0x20] sm:$0xff]
  %v1699 = vld [vmem:[%s401 + $0x28] sm:$0xff]
  %v1700 = vld [vmem:[%s401 + $0x30] sm:$0xff]
  %v1701 = vld [vmem:[%s401 + $0x38] sm:$0xff]
  %v1702 = vld [vmem:[%s401 + $0x40] sm:$0xff]
  %v1703 = vld [vmem:[%s401 + $0x48] sm:$0xff]
  %v1704 = vld [vmem:[%s401 + $0x50] sm:$0xff]
  %v1705 = vld [vmem:[%s401 + $0x58] sm:$0xff]
  %v1706 = vld [vmem:[%s401 + $0x60] sm:$0xff]
  %v1707 = vld [vmem:[%s401 + $0x68] sm:$0xff]
  %v1708 = vld [vmem:[%s401 + $0x70] sm:$0xff]
  %v1709 = vld [vmem:[%s401 + $0x78] sm:$0xff]
  %v1710 = vld [vmem:[%s401 + $0x80] sm:$0xff]
  %v1711 = vld [vmem:[%s401 + $0x88] sm:$0xff]
  %v1712 = vld [vmem:[%s401 + $0x90] sm:$0xff]
  %v1713 = vld [vmem:[%s401 + $0x98] sm:$0xff]
  %v1714 = vld [vmem:[%s401 + $0xa0] sm:$0xff]
  %v1715 = vld [vmem:[%s401 + $0xa8] sm:$0xff]
  %v1716 = vld [vmem:[%s401 + $0xb0] sm:$0xff]
  %v1717 = vld [vmem:[%s401 + $0xb8] sm:$0xff]
  %v1718 = vld [vmem:[%s401 + $0xc0] sm:$0xff]
  %v1719 = vld [vmem:[%s401 + $0xc8] sm:$0xff]
  %v1720 = vld [vmem:[%s401 + $0xd0] sm:$0xff]
  %v1721 = vld [vmem:[%s401 + $0xd8] sm:$0xff]
  %v1722 = vld [vmem:[%s401 + $0xe0] sm:$0xff]
  %v1723 = vld [vmem:[%s401 + $0xe8] sm:$0xff]
  %v1724 = vld [vmem:[%s401 + $0xf0] sm:$0xff]
  %v1725 = vld [vmem:[%s401 + $0xf8] sm:$0xff]
  %v1758 = vunpack.c.l.b16 %v1694
  %v1759 = vunpack.c.h.b16 %v1694
  %v1760 = vunpack.c.l.b16 %v1695
  %v1761 = vunpack.c.h.b16 %v1695
  %v1762 = vunpack.c.l.b16 %v1696
  %v1763 = vunpack.c.h.b16 %v1696
  %v1764 = vunpack.c.l.b16 %v1697
  %v1765 = vunpack.c.h.b16 %v1697
  %v1766 = vunpack.c.l.b16 %v1698
  %v1767 = vunpack.c.h.b16 %v1698
  %v1768 = vunpack.c.l.b16 %v1699
  %v1769 = vunpack.c.h.b16 %v1699
  %v1770 = vunpack.c.l.b16 %v1700
  %v1771 = vunpack.c.h.b16 %v1700
  %v1772 = vunpack.c.l.b16 %v1701
  %v1773 = vunpack.c.h.b16 %v1701
  %v1774 = vunpack.c.l.b16 %v1702
  %v1775 = vunpack.c.h.b16 %v1702
  %v1776 = vunpack.c.l.b16 %v1703
  %v1777 = vunpack.c.h.b16 %v1703
  %v1778 = vunpack.c.l.b16 %v1704
  %v1779 = vunpack.c.h.b16 %v1704
  %v1780 = vunpack.c.l.b16 %v1705
  %v1781 = vunpack.c.h.b16 %v1705
  %v1782 = vunpack.c.l.b16 %v1706
  %v1783 = vunpack.c.h.b16 %v1706
  %v1784 = vunpack.c.l.b16 %v1707
  %v1785 = vunpack.c.h.b16 %v1707
  %v1786 = vunpack.c.l.b16 %v1708
  %v1787 = vunpack.c.h.b16 %v1708
  %v1788 = vunpack.c.l.b16 %v1709
  %v1789 = vunpack.c.h.b16 %v1709
  %v1790 = vunpack.c.l.b16 %v1710
  %v1791 = vunpack.c.h.b16 %v1710
  %v1792 = vunpack.c.l.b16 %v1711
  %v1793 = vunpack.c.h.b16 %v1711
  %v1794 = vunpack.c.l.b16 %v1712
  %v1795 = vunpack.c.h.b16 %v1712
  %v1796 = vunpack.c.l.b16 %v1713
  %v1797 = vunpack.c.h.b16 %v1713
  %v1798 = vunpack.c.l.b16 %v1714
  %v1799 = vunpack.c.h.b16 %v1714
  %v1800 = vunpack.c.l.b16 %v1715
  %v1801 = vunpack.c.h.b16 %v1715
  %v1802 = vunpack.c.l.b16 %v1716
  %v1803 = vunpack.c.h.b16 %v1716
  %v1804 = vunpack.c.l.b16 %v1717
  %v1805 = vunpack.c.h.b16 %v1717
  %v1806 = vunpack.c.l.b16 %v1718
  %v1807 = vunpack.c.h.b16 %v1718
  %v1808 = vunpack.c.l.b16 %v1719
  %v1809 = vunpack.c.h.b16 %v1719
  %v1810 = vunpack.c.l.b16 %v1720
  %v1811 = vunpack.c.h.b16 %v1720
  %v1812 = vunpack.c.l.b16 %v1721
  %v1813 = vunpack.c.h.b16 %v1721
  %v1814 = vunpack.c.l.b16 %v1722
  %v1815 = vunpack.c.h.b16 %v1722
  %v1816 = vunpack.c.l.b16 %v1723
  %v1817 = vunpack.c.h.b16 %v1723
  %v1818 = vunpack.c.l.b16 %v1724
  %v1819 = vunpack.c.h.b16 %v1724
  %v1820 = vunpack.c.l.b16 %v1725
  %v1821 = vunpack.c.h.b16 %v1725
  %v1822 = vpack.c.b16 %v1762, %v1758
  %v1823 = vpack.c.b16 %v1763, %v1759
  %v1824 = vpack.c.b16 %v1764, %v1760
  %v1825 = vpack.c.b16 %v1765, %v1761
  %v1826 = vpack.c.b16 %v1770, %v1766
  %v1827 = vpack.c.b16 %v1771, %v1767
  %v1828 = vpack.c.b16 %v1772, %v1768
  %v1829 = vpack.c.b16 %v1773, %v1769
  %v1830 = vpack.c.b16 %v1778, %v1774
  %v1831 = vpack.c.b16 %v1779, %v1775
  %v1832 = vpack.c.b16 %v1780, %v1776
  %v1833 = vpack.c.b16 %v1781, %v1777
  %v1834 = vpack.c.b16 %v1786, %v1782
  %v1835 = vpack.c.b16 %v1787, %v1783
  %v1836 = vpack.c.b16 %v1788, %v1784
  %v1837 = vpack.c.b16 %v1789, %v1785
  %v1838 = vpack.c.b16 %v1794, %v1790
  %v1839 = vpack.c.b16 %v1795, %v1791
  %v1840 = vpack.c.b16 %v1796, %v1792
  %v1841 = vpack.c.b16 %v1797, %v1793
  %v1842 = vpack.c.b16 %v1802, %v1798
  %v1843 = vpack.c.b16 %v1803, %v1799
  %v1844 = vpack.c.b16 %v1804, %v1800
  %v1845 = vpack.c.b16 %v1805, %v1801
  %v1846 = vpack.c.b16 %v1810, %v1806
  %v1847 = vpack.c.b16 %v1811, %v1807
  %v1848 = vpack.c.b16 %v1812, %v1808
  %v1849 = vpack.c.b16 %v1813, %v1809
  %v1850 = vpack.c.b16 %v1818, %v1814
  %v1851 = vpack.c.b16 %v1819, %v1815
  %v1852 = vpack.c.b16 %v1820, %v1816
  %v1853 = vpack.c.b16 %v1821, %v1817
  %1886 = vmatprep.subr.bf16.mxu0 %v1851
  %1887 = vmatpush1.bf16.msra.mxu0 %v1850
  %1888 = vmatprep.subr.bf16.mxu0 %v1847
  %1889 = vmatpush1.bf16.msra.mxu0 %v1846
  %1890 = vmatprep.subr.bf16.mxu0 %v1843
  %1891 = vmatpush1.bf16.msra.mxu0 %v1842
  %1892 = vmatprep.subr.bf16.mxu0 %v1839
  %1893 = vmatpush1.bf16.msra.mxu0 %v1838
  %1894 = vmatprep.subr.bf16.mxu0 %v1835
  %1895 = vmatpush1.bf16.msra.mxu0 %v1834
  %1896 = vmatprep.subr.bf16.mxu0 %v1831
  %1897 = vmatpush1.bf16.msra.mxu0 %v1830
  %1898 = vmatprep.subr.bf16.mxu0 %v1827
  %1899 = vmatpush1.bf16.msra.mxu0 %v1826
  %1900 = vmatprep.subr.bf16.mxu0 %v1823
  %1901 = vmatpush1.bf16.msra.mxu0 %v1822
  %1902 = vmatprep.subr.bf16.mxu0 0
  %1903 = vmatpush2.bf16.msra.mxu0 0
  %1904 = vmatprep.subr.bf16.mxu0 0
  %1905 = vmatpush2.bf16.msra.mxu0 0
  %1906 = vmatprep.subr.bf16.mxu0 0
  %1907 = vmatpush2.bf16.msra.mxu0 0
  %1908 = vmatprep.subr.bf16.mxu0 0
  %1909 = vmatpush2.bf16.msra.mxu0 0
  %1910 = vmatprep.subr.bf16.mxu0 0
  %1911 = vmatpush2.bf16.msra.mxu0 0
  %1912 = vmatprep.subr.bf16.mxu0 0
  %1913 = vmatpush2.bf16.msra.mxu0 0
  %1914 = vmatprep.subr.bf16.mxu0 0
  %1915 = vmatpush2.bf16.msra.mxu0 0
  %1916 = vmatprep.subr.bf16.mxu0 0
  %1917 = vmatpush2.bf16.msra.mxu0 0
  %1918 = vmatprep.mubr.bf16.mxu0 0
  %1919 = vmatmul.mubr.bf16.gmra.mxu0 %v1693
  %v1920 = vpop.f32.mrf.mxu0
  %v1921 = vadd.f32 0.0, %v1920
  %v1922 = vpop.f32.mrf.mxu0
  %v1923 = vadd.f32 0.0, %v1922
  %v1924 = vpop.f32.mrf.mxu0
  %v1925 = vpop.f32.mrf.mxu0
  %1926 = vdwg.mxu0
  %1927 = vmatprep.subr.bf16.mxu0 %v1853
  %1928 = vmatpush1.bf16.msra.mxu0 %v1852
  %1929 = vmatprep.subr.bf16.mxu0 %v1849
  %1930 = vmatpush1.bf16.msra.mxu0 %v1848
  %1931 = vmatprep.subr.bf16.mxu0 %v1845
  %1932 = vmatpush1.bf16.msra.mxu0 %v1844
  %1933 = vmatprep.subr.bf16.mxu0 %v1841
  %1934 = vmatpush1.bf16.msra.mxu0 %v1840
  %1935 = vmatprep.subr.bf16.mxu0 %v1837
  %1936 = vmatpush1.bf16.msra.mxu0 %v1836
  %1937 = vmatprep.subr.bf16.mxu0 %v1833
  %1938 = vmatpush1.bf16.msra.mxu0 %v1832
  %1939 = vmatprep.subr.bf16.mxu0 %v1829
  %1940 = vmatpush1.bf16.msra.mxu0 %v1828
  %1941 = vmatprep.subr.bf16.mxu0 %v1825
  %1942 = vmatpush1.bf16.msra.mxu0 %v1824
  %1943 = vmatprep.subr.bf16.mxu0 0
  %1944 = vmatpush2.bf16.msra.mxu0 0
  %1945 = vmatprep.subr.bf16.mxu0 0
  %1946 = vmatpush2.bf16.msra.mxu0 0
  %1947 = vmatprep.subr.bf16.mxu0 0
  %1948 = vmatpush2.bf16.msra.mxu0 0
  %1949 = vmatprep.subr.bf16.mxu0 0
  %1950 = vmatpush2.bf16.msra.mxu0 0
  %1951 = vmatprep.subr.bf16.mxu0 0
  %1952 = vmatpush2.bf16.msra.mxu0 0
  %1953 = vmatprep.subr.bf16.mxu0 0
  %1954 = vmatpush2.bf16.msra.mxu0 0
  %1955 = vmatprep.subr.bf16.mxu0 0
  %1956 = vmatpush2.bf16.msra.mxu0 0
  %1957 = vmatprep.subr.bf16.mxu0 0
  %1958 = vmatpush2.bf16.msra.mxu0 0
  %1959 = vmatprep.mubr.bf16.mxu0 0
  %1960 = vmatmul.mubr.bf16.gmra.mxu0 %v1693
  %v1961 = vpop.f32.mrf.mxu0
  %v1962 = vadd.f32 0.0, %v1961
  %v1963 = vpop.f32.mrf.mxu0
  %v1964 = vadd.f32 0.0, %v1963
  %v1965 = vpop.f32.mrf.mxu0
  %v1966 = vpop.f32.mrf.mxu0
  %1967 = vdwg.mxu0
  %v1968 = vadd.f32 %v1688, %v1921
  %v1969 = vadd.f32 %v1689, %v1923
  %v1970 = vadd.f32 %v1690, %v1962
  %v1971 = vadd.f32 %v1691, %v1964
  %v1972 = vxor.u32 %v1968, 2147483648
  %v1973 = vmul.f32 %v1972, 1.442695
  %v1974 = vpow.pop %v1973
  %v1975 = vadd.f32 %v1974, 1.0
  %v1976 = vrcp.pop %v1975
  %v1977 = vmul.f32 1.0, %v1976
  %v1978 = vxor.u32 %v1969, 2147483648
  %v1979 = vmul.f32 %v1978, 1.442695
  %v1980 = vpow.pop %v1979
  %v1981 = vadd.f32 %v1980, 1.0
  %v1982 = vrcp.pop %v1981
  %v1983 = vmul.f32 1.0, %v1982
  %v1984 = vtanh.pop %v1970
  %v1985 = vxor.u32 %v1971, 2147483648
  %v1986 = vmul.f32 %v1985, 1.442695
  %v1987 = vpow.pop %v1986
  %v1988 = vadd.f32 %v1987, 1.0
  %v1989 = vrcp.pop %v1988
  %v1990 = vmul.f32 1.0, %v1989
  %v1991 = vld [vmem:[#allocation5] sm:$0xff]
  %v1992 = vmul.f32 %v1983, %v1991
  %v1993 = vmul.f32 %v1977, %v1984
  %v1994 = vadd.f32 %v1992, %v1993
  %v1995 = vtanh.pop %v1994
  %v1996 = vmul.f32 %v1990, %v1995
  %v1997 = vstv %s1684
  %vm1998 = vcmp.gt.s32.totalorder %v70, %v1997
  %v1999 = vsel %vm1998, %v1994, %v1991
  %2000 = vst [vmem:[#allocation5] sm:$0xff] %v1999
  %v2001 = vld [vmem:[#allocation4] sm:$0xff]
  %v2002 = vsel %vm1998, %v1996, %v2001
  %2003 = vst [vmem:[#allocation4] sm:$0xff] %v2002
  %v2004 = vsel %vm1998, %v1996, 0.0
  %s2005 = scalar_lea.vmem %s55, 40
  %2006 = vst [vmem:[%s2005] sm:$0xff] %v2004
  %s2007 = sadd.s32 %s67, 3
  %s2008 = scalar_lea.vmem %s1, 48
  %v2009 = vld [vmem:[%s2008] sm:$0xff]
  %v2010 = vld [vmem:[%s2008 + $0x8] sm:$0xff]
  %v2011 = vunpack.c.l.bf16 %v2009
  %v2012 = vunpack.c.h.bf16 %v2009
  %v2013 = vunpack.c.l.bf16 %v2010
  %v2014 = vunpack.c.h.bf16 %v2010
  %v2015 = vld [vmem:[#allocation2] sm:$0xff]
  %v2016 = vpack.c.bf16 %v2015, %v2015
  %v2017 = vld [vmem:[%s3] sm:$0xff]
  %v2018 = vld [vmem:[%s3 + $0x8] sm:$0xff]
  %v2019 = vld [vmem:[%s3 + $0x10] sm:$0xff]
  %v2020 = vld [vmem:[%s3 + $0x18] sm:$0xff]
  %v2021 = vld [vmem:[%s3 + $0x20] sm:$0xff]
  %v2022 = vld [vmem:[%s3 + $0x28] sm:$0xff]
  %v2023 = vld [vmem:[%s3 + $0x30] sm:$0xff]
  %v2024 = vld [vmem:[%s3 + $0x38] sm:$0xff]
  %v2025 = vld [vmem:[%s3 + $0x40] sm:$0xff]
  %v2026 = vld [vmem:[%s3 + $0x48] sm:$0xff]
  %v2027 = vld [vmem:[%s3 + $0x50] sm:$0xff]
  %v2028 = vld [vmem:[%s3 + $0x58] sm:$0xff]
  %v2029 = vld [vmem:[%s3 + $0x60] sm:$0xff]
  %v2030 = vld [vmem:[%s3 + $0x68] sm:$0xff]
  %v2031 = vld [vmem:[%s3 + $0x70] sm:$0xff]
  %v2032 = vld [vmem:[%s3 + $0x78] sm:$0xff]
  %v2033 = vld [vmem:[%s3 + $0x80] sm:$0xff]
  %v2034 = vld [vmem:[%s3 + $0x88] sm:$0xff]
  %v2035 = vld [vmem:[%s3 + $0x90] sm:$0xff]
  %v2036 = vld [vmem:[%s3 + $0x98] sm:$0xff]
  %v2037 = vld [vmem:[%s3 + $0xa0] sm:$0xff]
  %v2038 = vld [vmem:[%s3 + $0xa8] sm:$0xff]
  %v2039 = vld [vmem:[%s3 + $0xb0] sm:$0xff]
  %v2040 = vld [vmem:[%s3 + $0xb8] sm:$0xff]
  %v2041 = vld [vmem:[%s3 + $0xc0] sm:$0xff]
  %v2042 = vld [vmem:[%s3 + $0xc8] sm:$0xff]
  %v2043 = vld [vmem:[%s3 + $0xd0] sm:$0xff]
  %v2044 = vld [vmem:[%s3 + $0xd8] sm:$0xff]
  %v2045 = vld [vmem:[%s3 + $0xe0] sm:$0xff]
  %v2046 = vld [vmem:[%s3 + $0xe8] sm:$0xff]
  %v2047 = vld [vmem:[%s3 + $0xf0] sm:$0xff]
  %v2048 = vld [vmem:[%s3 + $0xf8] sm:$0xff]
  %v2081 = vunpack.c.l.b16 %v2017
  %v2082 = vunpack.c.h.b16 %v2017
  %v2083 = vunpack.c.l.b16 %v2018
  %v2084 = vunpack.c.h.b16 %v2018
  %v2085 = vunpack.c.l.b16 %v2019
  %v2086 = vunpack.c.h.b16 %v2019
  %v2087 = vunpack.c.l.b16 %v2020
  %v2088 = vunpack.c.h.b16 %v2020
  %v2089 = vunpack.c.l.b16 %v2021
  %v2090 = vunpack.c.h.b16 %v2021
  %v2091 = vunpack.c.l.b16 %v2022
  %v2092 = vunpack.c.h.b16 %v2022
  %v2093 = vunpack.c.l.b16 %v2023
  %v2094 = vunpack.c.h.b16 %v2023
  %v2095 = vunpack.c.l.b16 %v2024
  %v2096 = vunpack.c.h.b16 %v2024
  %v2097 = vunpack.c.l.b16 %v2025
  %v2098 = vunpack.c.h.b16 %v2025
  %v2099 = vunpack.c.l.b16 %v2026
  %v2100 = vunpack.c.h.b16 %v2026
  %v2101 = vunpack.c.l.b16 %v2027
  %v2102 = vunpack.c.h.b16 %v2027
  %v2103 = vunpack.c.l.b16 %v2028
  %v2104 = vunpack.c.h.b16 %v2028
  %v2105 = vunpack.c.l.b16 %v2029
  %v2106 = vunpack.c.h.b16 %v2029
  %v2107 = vunpack.c.l.b16 %v2030
  %v2108 = vunpack.c.h.b16 %v2030
  %v2109 = vunpack.c.l.b16 %v2031
  %v2110 = vunpack.c.h.b16 %v2031
  %v2111 = vunpack.c.l.b16 %v2032
  %v2112 = vunpack.c.h.b16 %v2032
  %v2113 = vunpack.c.l.b16 %v2033
  %v2114 = vunpack.c.h.b16 %v2033
  %v2115 = vunpack.c.l.b16 %v2034
  %v2116 = vunpack.c.h.b16 %v2034
  %v2117 = vunpack.c.l.b16 %v2035
  %v2118 = vunpack.c.h.b16 %v2035
  %v2119 = vunpack.c.l.b16 %v2036
  %v2120 = vunpack.c.h.b16 %v2036
  %v2121 = vunpack.c.l.b16 %v2037
  %v2122 = vunpack.c.h.b16 %v2037
  %v2123 = vunpack.c.l.b16 %v2038
  %v2124 = vunpack.c.h.b16 %v2038
  %v2125 = vunpack.c.l.b16 %v2039
  %v2126 = vunpack.c.h.b16 %v2039
  %v2127 = vunpack.c.l.b16 %v2040
  %v2128 = vunpack.c.h.b16 %v2040
  %v2129 = vunpack.c.l.b16 %v2041
  %v2130 = vunpack.c.h.b16 %v2041
  %v2131 = vunpack.c.l.b16 %v2042
  %v2132 = vunpack.c.h.b16 %v2042
  %v2133 = vunpack.c.l.b16 %v2043
  %v2134 = vunpack.c.h.b16 %v2043
  %v2135 = vunpack.c.l.b16 %v2044
  %v2136 = vunpack.c.h.b16 %v2044
  %v2137 = vunpack.c.l.b16 %v2045
  %v2138 = vunpack.c.h.b16 %v2045
  %v2139 = vunpack.c.l.b16 %v2046
  %v2140 = vunpack.c.h.b16 %v2046
  %v2141 = vunpack.c.l.b16 %v2047
  %v2142 = vunpack.c.h.b16 %v2047
  %v2143 = vunpack.c.l.b16 %v2048
  %v2144 = vunpack.c.h.b16 %v2048
  %v2145 = vpack.c.b16 %v2085, %v2081
  %v2146 = vpack.c.b16 %v2086, %v2082
  %v2147 = vpack.c.b16 %v2087, %v2083
  %v2148 = vpack.c.b16 %v2088, %v2084
  %v2149 = vpack.c.b16 %v2093, %v2089
  %v2150 = vpack.c.b16 %v2094, %v2090
  %v2151 = vpack.c.b16 %v2095, %v2091
  %v2152 = vpack.c.b16 %v2096, %v2092
  %v2153 = vpack.c.b16 %v2101, %v2097
  %v2154 = vpack.c.b16 %v2102, %v2098
  %v2155 = vpack.c.b16 %v2103, %v2099
  %v2156 = vpack.c.b16 %v2104, %v2100
  %v2157 = vpack.c.b16 %v2109, %v2105
  %v2158 = vpack.c.b16 %v2110, %v2106
  %v2159 = vpack.c.b16 %v2111, %v2107
  %v2160 = vpack.c.b16 %v2112, %v2108
  %v2161 = vpack.c.b16 %v2117, %v2113
  %v2162 = vpack.c.b16 %v2118, %v2114
  %v2163 = vpack.c.b16 %v2119, %v2115
  %v2164 = vpack.c.b16 %v2120, %v2116
  %v2165 = vpack.c.b16 %v2125, %v2121
  %v2166 = vpack.c.b16 %v2126, %v2122
  %v2167 = vpack.c.b16 %v2127, %v2123
  %v2168 = vpack.c.b16 %v2128, %v2124
  %v2169 = vpack.c.b16 %v2133, %v2129
  %v2170 = vpack.c.b16 %v2134, %v2130
  %v2171 = vpack.c.b16 %v2135, %v2131
  %v2172 = vpack.c.b16 %v2136, %v2132
  %v2173 = vpack.c.b16 %v2141, %v2137
  %v2174 = vpack.c.b16 %v2142, %v2138
  %v2175 = vpack.c.b16 %v2143, %v2139
  %v2176 = vpack.c.b16 %v2144, %v2140
  %2209 = vmatprep.subr.bf16.mxu0 %v2174
  %2210 = vmatpush1.bf16.msra.mxu0 %v2173
  %2211 = vmatprep.subr.bf16.mxu0 %v2170
  %2212 = vmatpush1.bf16.msra.mxu0 %v2169
  %2213 = vmatprep.subr.bf16.mxu0 %v2166
  %2214 = vmatpush1.bf16.msra.mxu0 %v2165
  %2215 = vmatprep.subr.bf16.mxu0 %v2162
  %2216 = vmatpush1.bf16.msra.mxu0 %v2161
  %2217 = vmatprep.subr.bf16.mxu0 %v2158
  %2218 = vmatpush1.bf16.msra.mxu0 %v2157
  %2219 = vmatprep.subr.bf16.mxu0 %v2154
  %2220 = vmatpush1.bf16.msra.mxu0 %v2153
  %2221 = vmatprep.subr.bf16.mxu0 %v2150
  %2222 = vmatpush1.bf16.msra.mxu0 %v2149
  %2223 = vmatprep.subr.bf16.mxu0 %v2146
  %2224 = vmatpush1.bf16.msra.mxu0 %v2145
  %2225 = vmatprep.subr.bf16.mxu0 0
  %2226 = vmatpush2.bf16.msra.mxu0 0
  %2227 = vmatprep.subr.bf16.mxu0 0
  %2228 = vmatpush2.bf16.msra.mxu0 0
  %2229 = vmatprep.subr.bf16.mxu0 0
  %2230 = vmatpush2.bf16.msra.mxu0 0
  %2231 = vmatprep.subr.bf16.mxu0 0
  %2232 = vmatpush2.bf16.msra.mxu0 0
  %2233 = vmatprep.subr.bf16.mxu0 0
  %2234 = vmatpush2.bf16.msra.mxu0 0
  %2235 = vmatprep.subr.bf16.mxu0 0
  %2236 = vmatpush2.bf16.msra.mxu0 0
  %2237 = vmatprep.subr.bf16.mxu0 0
  %2238 = vmatpush2.bf16.msra.mxu0 0
  %2239 = vmatprep.subr.bf16.mxu0 0
  %2240 = vmatpush2.bf16.msra.mxu0 0
  %2241 = vmatprep.mubr.bf16.mxu0 0
  %2242 = vmatmul.mubr.bf16.gmra.mxu0 %v2016
  %v2243 = vpop.f32.mrf.mxu0
  %v2244 = vadd.f32 0.0, %v2243
  %v2245 = vpop.f32.mrf.mxu0
  %v2246 = vadd.f32 0.0, %v2245
  %v2247 = vpop.f32.mrf.mxu0
  %v2248 = vpop.f32.mrf.mxu0
  %2249 = vdwg.mxu0
  %2250 = vmatprep.subr.bf16.mxu0 %v2176
  %2251 = vmatpush1.bf16.msra.mxu0 %v2175
  %2252 = vmatprep.subr.bf16.mxu0 %v2172
  %2253 = vmatpush1.bf16.msra.mxu0 %v2171
  %2254 = vmatprep.subr.bf16.mxu0 %v2168
  %2255 = vmatpush1.bf16.msra.mxu0 %v2167
  %2256 = vmatprep.subr.bf16.mxu0 %v2164
  %2257 = vmatpush1.bf16.msra.mxu0 %v2163
  %2258 = vmatprep.subr.bf16.mxu0 %v2160
  %2259 = vmatpush1.bf16.msra.mxu0 %v2159
  %2260 = vmatprep.subr.bf16.mxu0 %v2156
  %2261 = vmatpush1.bf16.msra.mxu0 %v2155
  %2262 = vmatprep.subr.bf16.mxu0 %v2152
  %2263 = vmatpush1.bf16.msra.mxu0 %v2151
  %2264 = vmatprep.subr.bf16.mxu0 %v2148
  %2265 = vmatpush1.bf16.msra.mxu0 %v2147
  %2266 = vmatprep.subr.bf16.mxu0 0
  %2267 = vmatpush2.bf16.msra.mxu0 0
  %2268 = vmatprep.subr.bf16.mxu0 0
  %2269 = vmatpush2.bf16.msra.mxu0 0
  %2270 = vmatprep.subr.bf16.mxu0 0
  %2271 = vmatpush2.bf16.msra.mxu0 0
  %2272 = vmatprep.subr.bf16.mxu0 0
  %2273 = vmatpush2.bf16.msra.mxu0 0
  %2274 = vmatprep.subr.bf16.mxu0 0
  %2275 = vmatpush2.bf16.msra.mxu0 0
  %2276 = vmatprep.subr.bf16.mxu0 0
  %2277 = vmatpush2.bf16.msra.mxu0 0
  %2278 = vmatprep.subr.bf16.mxu0 0
  %2279 = vmatpush2.bf16.msra.mxu0 0
  %2280 = vmatprep.subr.bf16.mxu0 0
  %2281 = vmatpush2.bf16.msra.mxu0 0
  %2282 = vmatprep.mubr.bf16.mxu0 0
  %2283 = vmatmul.mubr.bf16.gmra.mxu0 %v2016
  %v2284 = vpop.f32.mrf.mxu0
  %v2285 = vadd.f32 0.0, %v2284
  %v2286 = vpop.f32.mrf.mxu0
  %v2287 = vadd.f32 0.0, %v2286
  %v2288 = vpop.f32.mrf.mxu0
  %v2289 = vpop.f32.mrf.mxu0
  %2290 = vdwg.mxu0
  %v2291 = vadd.f32 %v2011, %v2244
  %v2292 = vadd.f32 %v2012, %v2246
  %v2293 = vadd.f32 %v2013, %v2285
  %v2294 = vadd.f32 %v2014, %v2287
  %v2295 = vxor.u32 %v2291, 2147483648
  %v2296 = vmul.f32 %v2295, 1.442695
  %v2297 = vpow.pop %v2296
  %v2298 = vadd.f32 %v2297, 1.0
  %v2299 = vrcp.pop %v2298
  %v2300 = vmul.f32 1.0, %v2299
  %v2301 = vxor.u32 %v2292, 2147483648
  %v2302 = vmul.f32 %v2301, 1.442695
  %v2303 = vpow.pop %v2302
  %v2304 = vadd.f32 %v2303, 1.0
  %v2305 = vrcp.pop %v2304
  %v2306 = vmul.f32 1.0, %v2305
  %v2307 = vtanh.pop %v2293
  %v2308 = vxor.u32 %v2294, 2147483648
  %v2309 = vmul.f32 %v2308, 1.442695
  %v2310 = vpow.pop %v2309
  %v2311 = vadd.f32 %v2310, 1.0
  %v2312 = vrcp.pop %v2311
  %v2313 = vmul.f32 1.0, %v2312
  %v2314 = vld [vmem:[#allocation3] sm:$0xff]
  %v2315 = vmul.f32 %v2306, %v2314
  %v2316 = vmul.f32 %v2300, %v2307
  %v2317 = vadd.f32 %v2315, %v2316
  %v2318 = vtanh.pop %v2317
  %v2319 = vmul.f32 %v2313, %v2318
  %v2320 = vstv %s2007
  %vm2321 = vcmp.gt.s32.totalorder %v70, %v2320
  %v2322 = vsel %vm2321, %v2317, %v2314
  %2323 = vst [vmem:[#allocation3] sm:$0xff] %v2322
  %v2324 = vld [vmem:[#allocation2] sm:$0xff]
  %v2325 = vsel %vm2321, %v2319, %v2324
  %2326 = vst [vmem:[#allocation2] sm:$0xff] %v2325
  %v2327 = vsel %vm2321, %v2319, 0.0
  %s2328 = scalar_lea.vmem %s4, 24
  %2329 = vst [vmem:[%s2328] sm:$0xff] %v2327
  %s2330 = sadd.s32 %s69, 4
  %s2331 = scalar_lea.vmem %s47, 64
  %v2332 = vld [vmem:[%s2331] sm:$0xff]
  %v2333 = vld [vmem:[%s2331 + $0x8] sm:$0xff]
  %v2334 = vunpack.c.l.bf16 %v2332
  %v2335 = vunpack.c.h.bf16 %v2332
  %v2336 = vunpack.c.l.bf16 %v2333
  %v2337 = vunpack.c.h.bf16 %v2333
  %v2338 = vld [vmem:[#allocation4] sm:$0xff]
  %v2339 = vpack.c.bf16 %v2338, %v2338
  %v2340 = vld [vmem:[%s401] sm:$0xff]
  %v2341 = vld [vmem:[%s401 + $0x8] sm:$0xff]
  %v2342 = vld [vmem:[%s401 + $0x10] sm:$0xff]
  %v2343 = vld [vmem:[%s401 + $0x18] sm:$0xff]
  %v2344 = vld [vmem:[%s401 + $0x20] sm:$0xff]
  %v2345 = vld [vmem:[%s401 + $0x28] sm:$0xff]
  %v2346 = vld [vmem:[%s401 + $0x30] sm:$0xff]
  %v2347 = vld [vmem:[%s401 + $0x38] sm:$0xff]
  %v2348 = vld [vmem:[%s401 + $0x40] sm:$0xff]
  %v2349 = vld [vmem:[%s401 + $0x48] sm:$0xff]
  %v2350 = vld [vmem:[%s401 + $0x50] sm:$0xff]
  %v2351 = vld [vmem:[%s401 + $0x58] sm:$0xff]
  %v2352 = vld [vmem:[%s401 + $0x60] sm:$0xff]
  %v2353 = vld [vmem:[%s401 + $0x68] sm:$0xff]
  %v2354 = vld [vmem:[%s401 + $0x70] sm:$0xff]
  %v2355 = vld [vmem:[%s401 + $0x78] sm:$0xff]
  %v2356 = vld [vmem:[%s401 + $0x80] sm:$0xff]
  %v2357 = vld [vmem:[%s401 + $0x88] sm:$0xff]
  %v2358 = vld [vmem:[%s401 + $0x90] sm:$0xff]
  %v2359 = vld [vmem:[%s401 + $0x98] sm:$0xff]
  %v2360 = vld [vmem:[%s401 + $0xa0] sm:$0xff]
  %v2361 = vld [vmem:[%s401 + $0xa8] sm:$0xff]
  %v2362 = vld [vmem:[%s401 + $0xb0] sm:$0xff]
  %v2363 = vld [vmem:[%s401 + $0xb8] sm:$0xff]
  %v2364 = vld [vmem:[%s401 + $0xc0] sm:$0xff]
  %v2365 = vld [vmem:[%s401 + $0xc8] sm:$0xff]
  %v2366 = vld [vmem:[%s401 + $0xd0] sm:$0xff]
  %v2367 = vld [vmem:[%s401 + $0xd8] sm:$0xff]
  %v2368 = vld [vmem:[%s401 + $0xe0] sm:$0xff]
  %v2369 = vld [vmem:[%s401 + $0xe8] sm:$0xff]
  %v2370 = vld [vmem:[%s401 + $0xf0] sm:$0xff]
  %v2371 = vld [vmem:[%s401 + $0xf8] sm:$0xff]
  %v2404 = vunpack.c.l.b16 %v2340
  %v2405 = vunpack.c.h.b16 %v2340
  %v2406 = vunpack.c.l.b16 %v2341
  %v2407 = vunpack.c.h.b16 %v2341
  %v2408 = vunpack.c.l.b16 %v2342
  %v2409 = vunpack.c.h.b16 %v2342
  %v2410 = vunpack.c.l.b16 %v2343
  %v2411 = vunpack.c.h.b16 %v2343
  %v2412 = vunpack.c.l.b16 %v2344
  %v2413 = vunpack.c.h.b16 %v2344
  %v2414 = vunpack.c.l.b16 %v2345
  %v2415 = vunpack.c.h.b16 %v2345
  %v2416 = vunpack.c.l.b16 %v2346
  %v2417 = vunpack.c.h.b16 %v2346
  %v2418 = vunpack.c.l.b16 %v2347
  %v2419 = vunpack.c.h.b16 %v2347
  %v2420 = vunpack.c.l.b16 %v2348
  %v2421 = vunpack.c.h.b16 %v2348
  %v2422 = vunpack.c.l.b16 %v2349
  %v2423 = vunpack.c.h.b16 %v2349
  %v2424 = vunpack.c.l.b16 %v2350
  %v2425 = vunpack.c.h.b16 %v2350
  %v2426 = vunpack.c.l.b16 %v2351
  %v2427 = vunpack.c.h.b16 %v2351
  %v2428 = vunpack.c.l.b16 %v2352
  %v2429 = vunpack.c.h.b16 %v2352
  %v2430 = vunpack.c.l.b16 %v2353
  %v2431 = vunpack.c.h.b16 %v2353
  %v2432 = vunpack.c.l.b16 %v2354
  %v2433 = vunpack.c.h.b16 %v2354
  %v2434 = vunpack.c.l.b16 %v2355
  %v2435 = vunpack.c.h.b16 %v2355
  %v2436 = vunpack.c.l.b16 %v2356
  %v2437 = vunpack.c.h.b16 %v2356
  %v2438 = vunpack.c.l.b16 %v2357
  %v2439 = vunpack.c.h.b16 %v2357
  %v2440 = vunpack.c.l.b16 %v2358
  %v2441 = vunpack.c.h.b16 %v2358
  %v2442 = vunpack.c.l.b16 %v2359
  %v2443 = vunpack.c.h.b16 %v2359
  %v2444 = vunpack.c.l.b16 %v2360
  %v2445 = vunpack.c.h.b16 %v2360
  %v2446 = vunpack.c.l.b16 %v2361
  %v2447 = vunpack.c.h.b16 %v2361
  %v2448 = vunpack.c.l.b16 %v2362
  %v2449 = vunpack.c.h.b16 %v2362
  %v2450 = vunpack.c.l.b16 %v2363
  %v2451 = vunpack.c.h.b16 %v2363
  %v2452 = vunpack.c.l.b16 %v2364
  %v2453 = vunpack.c.h.b16 %v2364
  %v2454 = vunpack.c.l.b16 %v2365
  %v2455 = vunpack.c.h.b16 %v2365
  %v2456 = vunpack.c.l.b16 %v2366
  %v2457 = vunpack.c.h.b16 %v2366
  %v2458 = vunpack.c.l.b16 %v2367
  %v2459 = vunpack.c.h.b16 %v2367
  %v2460 = vunpack.c.l.b16 %v2368
  %v2461 = vunpack.c.h.b16 %v2368
  %v2462 = vunpack.c.l.b16 %v2369
  %v2463 = vunpack.c.h.b16 %v2369
  %v2464 = vunpack.c.l.b16 %v2370
  %v2465 = vunpack.c.h.b16 %v2370
  %v2466 = vunpack.c.l.b16 %v2371
  %v2467 = vunpack.c.h.b16 %v2371
  %v2468 = vpack.c.b16 %v2408, %v2404
  %v2469 = vpack.c.b16 %v2409, %v2405
  %v2470 = vpack.c.b16 %v2410, %v2406
  %v2471 = vpack.c.b16 %v2411, %v2407
  %v2472 = vpack.c.b16 %v2416, %v2412
  %v2473 = vpack.c.b16 %v2417, %v2413
  %v2474 = vpack.c.b16 %v2418, %v2414
  %v2475 = vpack.c.b16 %v2419, %v2415
  %v2476 = vpack.c.b16 %v2424, %v2420
  %v2477 = vpack.c.b16 %v2425, %v2421
  %v2478 = vpack.c.b16 %v2426, %v2422
  %v2479 = vpack.c.b16 %v2427, %v2423
  %v2480 = vpack.c.b16 %v2432, %v2428
  %v2481 = vpack.c.b16 %v2433, %v2429
  %v2482 = vpack.c.b16 %v2434, %v2430
  %v2483 = vpack.c.b16 %v2435, %v2431
  %v2484 = vpack.c.b16 %v2440, %v2436
  %v2485 = vpack.c.b16 %v2441, %v2437
  %v2486 = vpack.c.b16 %v2442, %v2438
  %v2487 = vpack.c.b16 %v2443, %v2439
  %v2488 = vpack.c.b16 %v2448, %v2444
  %v2489 = vpack.c.b16 %v2449, %v2445
  %v2490 = vpack.c.b16 %v2450, %v2446
  %v2491 = vpack.c.b16 %v2451, %v2447
  %v2492 = vpack.c.b16 %v2456, %v2452
  %v2493 = vpack.c.b16 %v2457, %v2453
  %v2494 = vpack.c.b16 %v2458, %v2454
  %v2495 = vpack.c.b16 %v2459, %v2455
  %v2496 = vpack.c.b16 %v2464, %v2460
  %v2497 = vpack.c.b16 %v2465, %v2461
  %v2498 = vpack.c.b16 %v2466, %v2462
  %v2499 = vpack.c.b16 %v2467, %v2463
  %2532 = vmatprep.subr.bf16.mxu0 %v2497
  %2533 = vmatpush1.bf16.msra.mxu0 %v2496
  %2534 = vmatprep.subr.bf16.mxu0 %v2493
  %2535 = vmatpush1.bf16.msra.mxu0 %v2492
  %2536 = vmatprep.subr.bf16.mxu0 %v2489
  %2537 = vmatpush1.bf16.msra.mxu0 %v2488
  %2538 = vmatprep.subr.bf16.mxu0 %v2485
  %2539 = vmatpush1.bf16.msra.mxu0 %v2484
  %2540 = vmatprep.subr.bf16.mxu0 %v2481
  %2541 = vmatpush1.bf16.msra.mxu0 %v2480
  %2542 = vmatprep.subr.bf16.mxu0 %v2477
  %2543 = vmatpush1.bf16.msra.mxu0 %v2476
  %2544 = vmatprep.subr.bf16.mxu0 %v2473
  %2545 = vmatpush1.bf16.msra.mxu0 %v2472
  %2546 = vmatprep.subr.bf16.mxu0 %v2469
  %2547 = vmatpush1.bf16.msra.mxu0 %v2468
  %2548 = vmatprep.subr.bf16.mxu0 0
  %2549 = vmatpush2.bf16.msra.mxu0 0
  %2550 = vmatprep.subr.bf16.mxu0 0
  %2551 = vmatpush2.bf16.msra.mxu0 0
  %2552 = vmatprep.subr.bf16.mxu0 0
  %2553 = vmatpush2.bf16.msra.mxu0 0
  %2554 = vmatprep.subr.bf16.mxu0 0
  %2555 = vmatpush2.bf16.msra.mxu0 0
  %2556 = vmatprep.subr.bf16.mxu0 0
  %2557 = vmatpush2.bf16.msra.mxu0 0
  %2558 = vmatprep.subr.bf16.mxu0 0
  %2559 = vmatpush2.bf16.msra.mxu0 0
  %2560 = vmatprep.subr.bf16.mxu0 0
  %2561 = vmatpush2.bf16.msra.mxu0 0
  %2562 = vmatprep.subr.bf16.mxu0 0
  %2563 = vmatpush2.bf16.msra.mxu0 0
  %2564 = vmatprep.mubr.bf16.mxu0 0
  %2565 = vmatmul.mubr.bf16.gmra.mxu0 %v2339
  %v2566 = vpop.f32.mrf.mxu0
  %v2567 = vadd.f32 0.0, %v2566
  %v2568 = vpop.f32.mrf.mxu0
  %v2569 = vadd.f32 0.0, %v2568
  %v2570 = vpop.f32.mrf.mxu0
  %v2571 = vpop.f32.mrf.mxu0
  %2572 = vdwg.mxu0
  %2573 = vmatprep.subr.bf16.mxu0 %v2499
  %2574 = vmatpush1.bf16.msra.mxu0 %v2498
  %2575 = vmatprep.subr.bf16.mxu0 %v2495
  %2576 = vmatpush1.bf16.msra.mxu0 %v2494
  %2577 = vmatprep.subr.bf16.mxu0 %v2491
  %2578 = vmatpush1.bf16.msra.mxu0 %v2490
  %2579 = vmatprep.subr.bf16.mxu0 %v2487
  %2580 = vmatpush1.bf16.msra.mxu0 %v2486
  %2581 = vmatprep.subr.bf16.mxu0 %v2483
  %2582 = vmatpush1.bf16.msra.mxu0 %v2482
  %2583 = vmatprep.subr.bf16.mxu0 %v2479
  %2584 = vmatpush1.bf16.msra.mxu0 %v2478
  %2585 = vmatprep.subr.bf16.mxu0 %v2475
  %2586 = vmatpush1.bf16.msra.mxu0 %v2474
  %2587 = vmatprep.subr.bf16.mxu0 %v2471
  %2588 = vmatpush1.bf16.msra.mxu0 %v2470
  %2589 = vmatprep.subr.bf16.mxu0 0
  %2590 = vmatpush2.bf16.msra.mxu0 0
  %2591 = vmatprep.subr.bf16.mxu0 0
  %2592 = vmatpush2.bf16.msra.mxu0 0
  %2593 = vmatprep.subr.bf16.mxu0 0
  %2594 = vmatpush2.bf16.msra.mxu0 0
  %2595 = vmatprep.subr.bf16.mxu0 0
  %2596 = vmatpush2.bf16.msra.mxu0 0
  %2597 = vmatprep.subr.bf16.mxu0 0
  %2598 = vmatpush2.bf16.msra.mxu0 0
  %2599 = vmatprep.subr.bf16.mxu0 0
  %2600 = vmatpush2.bf16.msra.mxu0 0
  %2601 = vmatprep.subr.bf16.mxu0 0
  %2602 = vmatpush2.bf16.msra.mxu0 0
  %2603 = vmatprep.subr.bf16.mxu0 0
  %2604 = vmatpush2.bf16.msra.mxu0 0
  %2605 = vmatprep.mubr.bf16.mxu0 0
  %2606 = vmatmul.mubr.bf16.gmra.mxu0 %v2339
  %v2607 = vpop.f32.mrf.mxu0
  %v2608 = vadd.f32 0.0, %v2607
  %v2609 = vpop.f32.mrf.mxu0
  %v2610 = vadd.f32 0.0, %v2609
  %v2611 = vpop.f32.mrf.mxu0
  %v2612 = vpop.f32.mrf.mxu0
  %2613 = vdwg.mxu0
  %v2614 = vadd.f32 %v2334, %v2567
  %v2615 = vadd.f32 %v2335, %v2569
  %v2616 = vadd.f32 %v2336, %v2608
  %v2617 = vadd.f32 %v2337, %v2610
  %v2618 = vxor.u32 %v2614, 2147483648
  %v2619 = vmul.f32 %v2618, 1.442695
  %v2620 = vpow.pop %v2619
  %v2621 = vadd.f32 %v2620, 1.0
  %v2622 = vrcp.pop %v2621
  %v2623 = vmul.f32 1.0, %v2622
  %v2624 = vxor.u32 %v2615, 2147483648
  %v2625 = vmul.f32 %v2624, 1.442695
  %v2626 = vpow.pop %v2625
  %v2627 = vadd.f32 %v2626, 1.0
  %v2628 = vrcp.pop %v2627
  %v2629 = vmul.f32 1.0, %v2628
  %v2630 = vtanh.pop %v2616
  %v2631 = vxor.u32 %v2617, 2147483648
  %v2632 = vmul.f32 %v2631, 1.442695
  %v2633 = vpow.pop %v2632
  %v2634 = vadd.f32 %v2633, 1.0
  %v2635 = vrcp.pop %v2634
  %v2636 = vmul.f32 1.0, %v2635
  %v2637 = vld [vmem:[#allocation5] sm:$0xff]
  %v2638 = vmul.f32 %v2629, %v2637
  %v2639 = vmul.f32 %v2623, %v2630
  %v2640 = vadd.f32 %v2638, %v2639
  %v2641 = vtanh.pop %v2640
  %v2642 = vmul.f32 %v2636, %v2641
  %v2643 = vstv %s2330
  %vm2644 = vcmp.gt.s32.totalorder %v70, %v2643
  %v2645 = vsel %vm2644, %v2640, %v2637
  %2646 = vst [vmem:[#allocation5] sm:$0xff] %v2645
  %v2647 = vld [vmem:[#allocation4] sm:$0xff]
  %v2648 = vsel %vm2644, %v2642, %v2647
  %2649 = vst [vmem:[#allocation4] sm:$0xff] %v2648
  %v2650 = vsel %vm2644, %v2642, 0.0
  %s2651 = scalar_lea.vmem %s55, 32
  %2652 = vst [vmem:[%s2651] sm:$0xff] %v2650
  %s2653 = sadd.s32 %s67, 4
  %s2654 = scalar_lea.vmem %s1, 64
  %v2655 = vld [vmem:[%s2654] sm:$0xff]
  %v2656 = vld [vmem:[%s2654 + $0x8] sm:$0xff]
  %v2657 = vunpack.c.l.bf16 %v2655
  %v2658 = vunpack.c.h.bf16 %v2655
  %v2659 = vunpack.c.l.bf16 %v2656
  %v2660 = vunpack.c.h.bf16 %v2656
  %v2661 = vld [vmem:[#allocation2] sm:$0xff]
  %v2662 = vpack.c.bf16 %v2661, %v2661
  %v2663 = vld [vmem:[%s3] sm:$0xff]
  %v2664 = vld [vmem:[%s3 + $0x8] sm:$0xff]
  %v2665 = vld [vmem:[%s3 + $0x10] sm:$0xff]
  %v2666 = vld [vmem:[%s3 + $0x18] sm:$0xff]
  %v2667 = vld [vmem:[%s3 + $0x20] sm:$0xff]
  %v2668 = vld [vmem:[%s3 + $0x28] sm:$0xff]
  %v2669 = vld [vmem:[%s3 + $0x30] sm:$0xff]
  %v2670 = vld [vmem:[%s3 + $0x38] sm:$0xff]
  %v2671 = vld [vmem:[%s3 + $0x40] sm:$0xff]
  %v2672 = vld [vmem:[%s3 + $0x48] sm:$0xff]
  %v2673 = vld [vmem:[%s3 + $0x50] sm:$0xff]
  %v2674 = vld [vmem:[%s3 + $0x58] sm:$0xff]
  %v2675 = vld [vmem:[%s3 + $0x60] sm:$0xff]
  %v2676 = vld [vmem:[%s3 + $0x68] sm:$0xff]
  %v2677 = vld [vmem:[%s3 + $0x70] sm:$0xff]
  %v2678 = vld [vmem:[%s3 + $0x78] sm:$0xff]
  %v2679 = vld [vmem:[%s3 + $0x80] sm:$0xff]
  %v2680 = vld [vmem:[%s3 + $0x88] sm:$0xff]
  %v2681 = vld [vmem:[%s3 + $0x90] sm:$0xff]
  %v2682 = vld [vmem:[%s3 + $0x98] sm:$0xff]
  %v2683 = vld [vmem:[%s3 + $0xa0] sm:$0xff]
  %v2684 = vld [vmem:[%s3 + $0xa8] sm:$0xff]
  %v2685 = vld [vmem:[%s3 + $0xb0] sm:$0xff]
  %v2686 = vld [vmem:[%s3 + $0xb8] sm:$0xff]
  %v2687 = vld [vmem:[%s3 + $0xc0] sm:$0xff]
  %v2688 = vld [vmem:[%s3 + $0xc8] sm:$0xff]
  %v2689 = vld [vmem:[%s3 + $0xd0] sm:$0xff]
  %v2690 = vld [vmem:[%s3 + $0xd8] sm:$0xff]
  %v2691 = vld [vmem:[%s3 + $0xe0] sm:$0xff]
  %v2692 = vld [vmem:[%s3 + $0xe8] sm:$0xff]
  %v2693 = vld [vmem:[%s3 + $0xf0] sm:$0xff]
  %v2694 = vld [vmem:[%s3 + $0xf8] sm:$0xff]
  %v2727 = vunpack.c.l.b16 %v2663
  %v2728 = vunpack.c.h.b16 %v2663
  %v2729 = vunpack.c.l.b16 %v2664
  %v2730 = vunpack.c.h.b16 %v2664
  %v2731 = vunpack.c.l.b16 %v2665
  %v2732 = vunpack.c.h.b16 %v2665
  %v2733 = vunpack.c.l.b16 %v2666
  %v2734 = vunpack.c.h.b16 %v2666
  %v2735 = vunpack.c.l.b16 %v2667
  %v2736 = vunpack.c.h.b16 %v2667
  %v2737 = vunpack.c.l.b16 %v2668
  %v2738 = vunpack.c.h.b16 %v2668
  %v2739 = vunpack.c.l.b16 %v2669
  %v2740 = vunpack.c.h.b16 %v2669
  %v2741 = vunpack.c.l.b16 %v2670
  %v2742 = vunpack.c.h.b16 %v2670
  %v2743 = vunpack.c.l.b16 %v2671
  %v2744 = vunpack.c.h.b16 %v2671
  %v2745 = vunpack.c.l.b16 %v2672
  %v2746 = vunpack.c.h.b16 %v2672
  %v2747 = vunpack.c.l.b16 %v2673
  %v2748 = vunpack.c.h.b16 %v2673
  %v2749 = vunpack.c.l.b16 %v2674
  %v2750 = vunpack.c.h.b16 %v2674
  %v2751 = vunpack.c.l.b16 %v2675
  %v2752 = vunpack.c.h.b16 %v2675
  %v2753 = vunpack.c.l.b16 %v2676
  %v2754 = vunpack.c.h.b16 %v2676
  %v2755 = vunpack.c.l.b16 %v2677
  %v2756 = vunpack.c.h.b16 %v2677
  %v2757 = vunpack.c.l.b16 %v2678
  %v2758 = vunpack.c.h.b16 %v2678
  %v2759 = vunpack.c.l.b16 %v2679
  %v2760 = vunpack.c.h.b16 %v2679
  %v2761 = vunpack.c.l.b16 %v2680
  %v2762 = vunpack.c.h.b16 %v2680
  %v2763 = vunpack.c.l.b16 %v2681
  %v2764 = vunpack.c.h.b16 %v2681
  %v2765 = vunpack.c.l.b16 %v2682
  %v2766 = vunpack.c.h.b16 %v2682
  %v2767 = vunpack.c.l.b16 %v2683
  %v2768 = vunpack.c.h.b16 %v2683
  %v2769 = vunpack.c.l.b16 %v2684
  %v2770 = vunpack.c.h.b16 %v2684
  %v2771 = vunpack.c.l.b16 %v2685
  %v2772 = vunpack.c.h.b16 %v2685
  %v2773 = vunpack.c.l.b16 %v2686
  %v2774 = vunpack.c.h.b16 %v2686
  %v2775 = vunpack.c.l.b16 %v2687
  %v2776 = vunpack.c.h.b16 %v2687
  %v2777 = vunpack.c.l.b16 %v2688
  %v2778 = vunpack.c.h.b16 %v2688
  %v2779 = vunpack.c.l.b16 %v2689
  %v2780 = vunpack.c.h.b16 %v2689
  %v2781 = vunpack.c.l.b16 %v2690
  %v2782 = vunpack.c.h.b16 %v2690
  %v2783 = vunpack.c.l.b16 %v2691
  %v2784 = vunpack.c.h.b16 %v2691
  %v2785 = vunpack.c.l.b16 %v2692
  %v2786 = vunpack.c.h.b16 %v2692
  %v2787 = vunpack.c.l.b16 %v2693
  %v2788 = vunpack.c.h.b16 %v2693
  %v2789 = vunpack.c.l.b16 %v2694
  %v2790 = vunpack.c.h.b16 %v2694
  %v2791 = vpack.c.b16 %v2731, %v2727
  %v2792 = vpack.c.b16 %v2732, %v2728
  %v2793 = vpack.c.b16 %v2733, %v2729
  %v2794 = vpack.c.b16 %v2734, %v2730
  %v2795 = vpack.c.b16 %v2739, %v2735
  %v2796 = vpack.c.b16 %v2740, %v2736
  %v2797 = vpack.c.b16 %v2741, %v2737
  %v2798 = vpack.c.b16 %v2742, %v2738
  %v2799 = vpack.c.b16 %v2747, %v2743
  %v2800 = vpack.c.b16 %v2748, %v2744
  %v2801 = vpack.c.b16 %v2749, %v2745
  %v2802 = vpack.c.b16 %v2750, %v2746
  %v2803 = vpack.c.b16 %v2755, %v2751
  %v2804 = vpack.c.b16 %v2756, %v2752
  %v2805 = vpack.c.b16 %v2757, %v2753
  %v2806 = vpack.c.b16 %v2758, %v2754
  %v2807 = vpack.c.b16 %v2763, %v2759
  %v2808 = vpack.c.b16 %v2764, %v2760
  %v2809 = vpack.c.b16 %v2765, %v2761
  %v2810 = vpack.c.b16 %v2766, %v2762
  %v2811 = vpack.c.b16 %v2771, %v2767
  %v2812 = vpack.c.b16 %v2772, %v2768
  %v2813 = vpack.c.b16 %v2773, %v2769
  %v2814 = vpack.c.b16 %v2774, %v2770
  %v2815 = vpack.c.b16 %v2779, %v2775
  %v2816 = vpack.c.b16 %v2780, %v2776
  %v2817 = vpack.c.b16 %v2781, %v2777
  %v2818 = vpack.c.b16 %v2782, %v2778
  %v2819 = vpack.c.b16 %v2787, %v2783
  %v2820 = vpack.c.b16 %v2788, %v2784
  %v2821 = vpack.c.b16 %v2789, %v2785
  %v2822 = vpack.c.b16 %v2790, %v2786
  %2855 = vmatprep.subr.bf16.mxu0 %v2820
  %2856 = vmatpush1.bf16.msra.mxu0 %v2819
  %2857 = vmatprep.subr.bf16.mxu0 %v2816
  %2858 = vmatpush1.bf16.msra.mxu0 %v2815
  %2859 = vmatprep.subr.bf16.mxu0 %v2812
  %2860 = vmatpush1.bf16.msra.mxu0 %v2811
  %2861 = vmatprep.subr.bf16.mxu0 %v2808
  %2862 = vmatpush1.bf16.msra.mxu0 %v2807
  %2863 = vmatprep.subr.bf16.mxu0 %v2804
  %2864 = vmatpush1.bf16.msra.mxu0 %v2803
  %2865 = vmatprep.subr.bf16.mxu0 %v2800
  %2866 = vmatpush1.bf16.msra.mxu0 %v2799
  %2867 = vmatprep.subr.bf16.mxu0 %v2796
  %2868 = vmatpush1.bf16.msra.mxu0 %v2795
  %2869 = vmatprep.subr.bf16.mxu0 %v2792
  %2870 = vmatpush1.bf16.msra.mxu0 %v2791
  %2871 = vmatprep.subr.bf16.mxu0 0
  %2872 = vmatpush2.bf16.msra.mxu0 0
  %2873 = vmatprep.subr.bf16.mxu0 0
  %2874 = vmatpush2.bf16.msra.mxu0 0
  %2875 = vmatprep.subr.bf16.mxu0 0
  %2876 = vmatpush2.bf16.msra.mxu0 0
  %2877 = vmatprep.subr.bf16.mxu0 0
  %2878 = vmatpush2.bf16.msra.mxu0 0
  %2879 = vmatprep.subr.bf16.mxu0 0
  %2880 = vmatpush2.bf16.msra.mxu0 0
  %2881 = vmatprep.subr.bf16.mxu0 0
  %2882 = vmatpush2.bf16.msra.mxu0 0
  %2883 = vmatprep.subr.bf16.mxu0 0
  %2884 = vmatpush2.bf16.msra.mxu0 0
  %2885 = vmatprep.subr.bf16.mxu0 0
  %2886 = vmatpush2.bf16.msra.mxu0 0
  %2887 = vmatprep.mubr.bf16.mxu0 0
  %2888 = vmatmul.mubr.bf16.gmra.mxu0 %v2662
  %v2889 = vpop.f32.mrf.mxu0
  %v2890 = vadd.f32 0.0, %v2889
  %v2891 = vpop.f32.mrf.mxu0
  %v2892 = vadd.f32 0.0, %v2891
  %v2893 = vpop.f32.mrf.mxu0
  %v2894 = vpop.f32.mrf.mxu0
  %2895 = vdwg.mxu0
  %2896 = vmatprep.subr.bf16.mxu0 %v2822
  %2897 = vmatpush1.bf16.msra.mxu0 %v2821
  %2898 = vmatprep.subr.bf16.mxu0 %v2818
  %2899 = vmatpush1.bf16.msra.mxu0 %v2817
  %2900 = vmatprep.subr.bf16.mxu0 %v2814
  %2901 = vmatpush1.bf16.msra.mxu0 %v2813
  %2902 = vmatprep.subr.bf16.mxu0 %v2810
  %2903 = vmatpush1.bf16.msra.mxu0 %v2809
  %2904 = vmatprep.subr.bf16.mxu0 %v2806
  %2905 = vmatpush1.bf16.msra.mxu0 %v2805
  %2906 = vmatprep.subr.bf16.mxu0 %v2802
  %2907 = vmatpush1.bf16.msra.mxu0 %v2801
  %2908 = vmatprep.subr.bf16.mxu0 %v2798
  %2909 = vmatpush1.bf16.msra.mxu0 %v2797
  %2910 = vmatprep.subr.bf16.mxu0 %v2794
  %2911 = vmatpush1.bf16.msra.mxu0 %v2793
  %2912 = vmatprep.subr.bf16.mxu0 0
  %2913 = vmatpush2.bf16.msra.mxu0 0
  %2914 = vmatprep.subr.bf16.mxu0 0
  %2915 = vmatpush2.bf16.msra.mxu0 0
  %2916 = vmatprep.subr.bf16.mxu0 0
  %2917 = vmatpush2.bf16.msra.mxu0 0
  %2918 = vmatprep.subr.bf16.mxu0 0
  %2919 = vmatpush2.bf16.msra.mxu0 0
  %2920 = vmatprep.subr.bf16.mxu0 0
  %2921 = vmatpush2.bf16.msra.mxu0 0
  %2922 = vmatprep.subr.bf16.mxu0 0
  %2923 = vmatpush2.bf16.msra.mxu0 0
  %2924 = vmatprep.subr.bf16.mxu0 0
  %2925 = vmatpush2.bf16.msra.mxu0 0
  %2926 = vmatprep.subr.bf16.mxu0 0
  %2927 = vmatpush2.bf16.msra.mxu0 0
  %2928 = vmatprep.mubr.bf16.mxu0 0
  %2929 = vmatmul.mubr.bf16.gmra.mxu0 %v2662
  %v2930 = vpop.f32.mrf.mxu0
  %v2931 = vadd.f32 0.0, %v2930
  %v2932 = vpop.f32.mrf.mxu0
  %v2933 = vadd.f32 0.0, %v2932
  %v2934 = vpop.f32.mrf.mxu0
  %v2935 = vpop.f32.mrf.mxu0
  %2936 = vdwg.mxu0
  %v2937 = vadd.f32 %v2657, %v2890
  %v2938 = vadd.f32 %v2658, %v2892
  %v2939 = vadd.f32 %v2659, %v2931
  %v2940 = vadd.f32 %v2660, %v2933
  %v2941 = vxor.u32 %v2937, 2147483648
  %v2942 = vmul.f32 %v2941, 1.442695
  %v2943 = vpow.pop %v2942
  %v2944 = vadd.f32 %v2943, 1.0
  %v2945 = vrcp.pop %v2944
  %v2946 = vmul.f32 1.0, %v2945
  %v2947 = vxor.u32 %v2938, 2147483648
  %v2948 = vmul.f32 %v2947, 1.442695
  %v2949 = vpow.pop %v2948
  %v2950 = vadd.f32 %v2949, 1.0
  %v2951 = vrcp.pop %v2950
  %v2952 = vmul.f32 1.0, %v2951
  %v2953 = vtanh.pop %v2939
  %v2954 = vxor.u32 %v2940, 2147483648
  %v2955 = vmul.f32 %v2954, 1.442695
  %v2956 = vpow.pop %v2955
  %v2957 = vadd.f32 %v2956, 1.0
  %v2958 = vrcp.pop %v2957
  %v2959 = vmul.f32 1.0, %v2958
  %v2960 = vld [vmem:[#allocation3] sm:$0xff]
  %v2961 = vmul.f32 %v2952, %v2960
  %v2962 = vmul.f32 %v2946, %v2953
  %v2963 = vadd.f32 %v2961, %v2962
  %v2964 = vtanh.pop %v2963
  %v2965 = vmul.f32 %v2959, %v2964
  %v2966 = vstv %s2653
  %vm2967 = vcmp.gt.s32.totalorder %v70, %v2966
  %v2968 = vsel %vm2967, %v2963, %v2960
  %2969 = vst [vmem:[#allocation3] sm:$0xff] %v2968
  %v2970 = vld [vmem:[#allocation2] sm:$0xff]
  %v2971 = vsel %vm2967, %v2965, %v2970
  %2972 = vst [vmem:[#allocation2] sm:$0xff] %v2971
  %v2973 = vsel %vm2967, %v2965, 0.0
  %s2974 = scalar_lea.vmem %s4, 32
  %2975 = vst [vmem:[%s2974] sm:$0xff] %v2973
  %s2976 = sadd.s32 %s69, 3
  %s2977 = scalar_lea.vmem %s47, 48
  %v2978 = vld [vmem:[%s2977] sm:$0xff]
  %v2979 = vld [vmem:[%s2977 + $0x8] sm:$0xff]
  %v2980 = vunpack.c.l.bf16 %v2978
  %v2981 = vunpack.c.h.bf16 %v2978
  %v2982 = vunpack.c.l.bf16 %v2979
  %v2983 = vunpack.c.h.bf16 %v2979
  %v2984 = vld [vmem:[#allocation4] sm:$0xff]
  %v2985 = vpack.c.bf16 %v2984, %v2984
  %v2986 = vld [vmem:[%s401] sm:$0xff]
  %v2987 = vld [vmem:[%s401 + $0x8] sm:$0xff]
  %v2988 = vld [vmem:[%s401 + $0x10] sm:$0xff]
  %v2989 = vld [vmem:[%s401 + $0x18] sm:$0xff]
  %v2990 = vld [vmem:[%s401 + $0x20] sm:$0xff]
  %v2991 = vld [vmem:[%s401 + $0x28] sm:$0xff]
  %v2992 = vld [vmem:[%s401 + $0x30] sm:$0xff]
  %v2993 = vld [vmem:[%s401 + $0x38] sm:$0xff]
  %v2994 = vld [vmem:[%s401 + $0x40] sm:$0xff]
  %v2995 = vld [vmem:[%s401 + $0x48] sm:$0xff]
  %v2996 = vld [vmem:[%s401 + $0x50] sm:$0xff]
  %v2997 = vld [vmem:[%s401 + $0x58] sm:$0xff]
  %v2998 = vld [vmem:[%s401 + $0x60] sm:$0xff]
  %v2999 = vld [vmem:[%s401 + $0x68] sm:$0xff]
  %v3000 = vld [vmem:[%s401 + $0x70] sm:$0xff]
  %v3001 = vld [vmem:[%s401 + $0x78] sm:$0xff]
  %v3002 = vld [vmem:[%s401 + $0x80] sm:$0xff]
  %v3003 = vld [vmem:[%s401 + $0x88] sm:$0xff]
  %v3004 = vld [vmem:[%s401 + $0x90] sm:$0xff]
  %v3005 = vld [vmem:[%s401 + $0x98] sm:$0xff]
  %v3006 = vld [vmem:[%s401 + $0xa0] sm:$0xff]
  %v3007 = vld [vmem:[%s401 + $0xa8] sm:$0xff]
  %v3008 = vld [vmem:[%s401 + $0xb0] sm:$0xff]
  %v3009 = vld [vmem:[%s401 + $0xb8] sm:$0xff]
  %v3010 = vld [vmem:[%s401 + $0xc0] sm:$0xff]
  %v3011 = vld [vmem:[%s401 + $0xc8] sm:$0xff]
  %v3012 = vld [vmem:[%s401 + $0xd0] sm:$0xff]
  %v3013 = vld [vmem:[%s401 + $0xd8] sm:$0xff]
  %v3014 = vld [vmem:[%s401 + $0xe0] sm:$0xff]
  %v3015 = vld [vmem:[%s401 + $0xe8] sm:$0xff]
  %v3016 = vld [vmem:[%s401 + $0xf0] sm:$0xff]
  %v3017 = vld [vmem:[%s401 + $0xf8] sm:$0xff]
  %v3050 = vunpack.c.l.b16 %v2986
  %v3051 = vunpack.c.h.b16 %v2986
  %v3052 = vunpack.c.l.b16 %v2987
  %v3053 = vunpack.c.h.b16 %v2987
  %v3054 = vunpack.c.l.b16 %v2988
  %v3055 = vunpack.c.h.b16 %v2988
  %v3056 = vunpack.c.l.b16 %v2989
  %v3057 = vunpack.c.h.b16 %v2989
  %v3058 = vunpack.c.l.b16 %v2990
  %v3059 = vunpack.c.h.b16 %v2990
  %v3060 = vunpack.c.l.b16 %v2991
  %v3061 = vunpack.c.h.b16 %v2991
  %v3062 = vunpack.c.l.b16 %v2992
  %v3063 = vunpack.c.h.b16 %v2992
  %v3064 = vunpack.c.l.b16 %v2993
  %v3065 = vunpack.c.h.b16 %v2993
  %v3066 = vunpack.c.l.b16 %v2994
  %v3067 = vunpack.c.h.b16 %v2994
  %v3068 = vunpack.c.l.b16 %v2995
  %v3069 = vunpack.c.h.b16 %v2995
  %v3070 = vunpack.c.l.b16 %v2996
  %v3071 = vunpack.c.h.b16 %v2996
  %v3072 = vunpack.c.l.b16 %v2997
  %v3073 = vunpack.c.h.b16 %v2997
  %v3074 = vunpack.c.l.b16 %v2998
  %v3075 = vunpack.c.h.b16 %v2998
  %v3076 = vunpack.c.l.b16 %v2999
  %v3077 = vunpack.c.h.b16 %v2999
  %v3078 = vunpack.c.l.b16 %v3000
  %v3079 = vunpack.c.h.b16 %v3000
  %v3080 = vunpack.c.l.b16 %v3001
  %v3081 = vunpack.c.h.b16 %v3001
  %v3082 = vunpack.c.l.b16 %v3002
  %v3083 = vunpack.c.h.b16 %v3002
  %v3084 = vunpack.c.l.b16 %v3003
  %v3085 = vunpack.c.h.b16 %v3003
  %v3086 = vunpack.c.l.b16 %v3004
  %v3087 = vunpack.c.h.b16 %v3004
  %v3088 = vunpack.c.l.b16 %v3005
  %v3089 = vunpack.c.h.b16 %v3005
  %v3090 = vunpack.c.l.b16 %v3006
  %v3091 = vunpack.c.h.b16 %v3006
  %v3092 = vunpack.c.l.b16 %v3007
  %v3093 = vunpack.c.h.b16 %v3007
  %v3094 = vunpack.c.l.b16 %v3008
  %v3095 = vunpack.c.h.b16 %v3008
  %v3096 = vunpack.c.l.b16 %v3009
  %v3097 = vunpack.c.h.b16 %v3009
  %v3098 = vunpack.c.l.b16 %v3010
  %v3099 = vunpack.c.h.b16 %v3010
  %v3100 = vunpack.c.l.b16 %v3011
  %v3101 = vunpack.c.h.b16 %v3011
  %v3102 = vunpack.c.l.b16 %v3012
  %v3103 = vunpack.c.h.b16 %v3012
  %v3104 = vunpack.c.l.b16 %v3013
  %v3105 = vunpack.c.h.b16 %v3013
  %v3106 = vunpack.c.l.b16 %v3014
  %v3107 = vunpack.c.h.b16 %v3014
  %v3108 = vunpack.c.l.b16 %v3015
  %v3109 = vunpack.c.h.b16 %v3015
  %v3110 = vunpack.c.l.b16 %v3016
  %v3111 = vunpack.c.h.b16 %v3016
  %v3112 = vunpack.c.l.b16 %v3017
  %v3113 = vunpack.c.h.b16 %v3017
  %v3114 = vpack.c.b16 %v3054, %v3050
  %v3115 = vpack.c.b16 %v3055, %v3051
  %v3116 = vpack.c.b16 %v3056, %v3052
  %v3117 = vpack.c.b16 %v3057, %v3053
  %v3118 = vpack.c.b16 %v3062, %v3058
  %v3119 = vpack.c.b16 %v3063, %v3059
  %v3120 = vpack.c.b16 %v3064, %v3060
  %v3121 = vpack.c.b16 %v3065, %v3061
  %v3122 = vpack.c.b16 %v3070, %v3066
  %v3123 = vpack.c.b16 %v3071, %v3067
  %v3124 = vpack.c.b16 %v3072, %v3068
  %v3125 = vpack.c.b16 %v3073, %v3069
  %v3126 = vpack.c.b16 %v3078, %v3074
  %v3127 = vpack.c.b16 %v3079, %v3075
  %v3128 = vpack.c.b16 %v3080, %v3076
  %v3129 = vpack.c.b16 %v3081, %v3077
  %v3130 = vpack.c.b16 %v3086, %v3082
  %v3131 = vpack.c.b16 %v3087, %v3083
  %v3132 = vpack.c.b16 %v3088, %v3084
  %v3133 = vpack.c.b16 %v3089, %v3085
  %v3134 = vpack.c.b16 %v3094, %v3090
  %v3135 = vpack.c.b16 %v3095, %v3091
  %v3136 = vpack.c.b16 %v3096, %v3092
  %v3137 = vpack.c.b16 %v3097, %v3093
  %v3138 = vpack.c.b16 %v3102, %v3098
  %v3139 = vpack.c.b16 %v3103, %v3099
  %v3140 = vpack.c.b16 %v3104, %v3100
  %v3141 = vpack.c.b16 %v3105, %v3101
  %v3142 = vpack.c.b16 %v3110, %v3106
  %v3143 = vpack.c.b16 %v3111, %v3107
  %v3144 = vpack.c.b16 %v3112, %v3108
  %v3145 = vpack.c.b16 %v3113, %v3109
  %3178 = vmatprep.subr.bf16.mxu0 %v3143
  %3179 = vmatpush1.bf16.msra.mxu0 %v3142
  %3180 = vmatprep.subr.bf16.mxu0 %v3139
  %3181 = vmatpush1.bf16.msra.mxu0 %v3138
  %3182 = vmatprep.subr.bf16.mxu0 %v3135
  %3183 = vmatpush1.bf16.msra.mxu0 %v3134
  %3184 = vmatprep.subr.bf16.mxu0 %v3131
  %3185 = vmatpush1.bf16.msra.mxu0 %v3130
  %3186 = vmatprep.subr.bf16.mxu0 %v3127
  %3187 = vmatpush1.bf16.msra.mxu0 %v3126
  %3188 = vmatprep.subr.bf16.mxu0 %v3123
  %3189 = vmatpush1.bf16.msra.mxu0 %v3122
  %3190 = vmatprep.subr.bf16.mxu0 %v3119
  %3191 = vmatpush1.bf16.msra.mxu0 %v3118
  %3192 = vmatprep.subr.bf16.mxu0 %v3115
  %3193 = vmatpush1.bf16.msra.mxu0 %v3114
  %3194 = vmatprep.subr.bf16.mxu0 0
  %3195 = vmatpush2.bf16.msra.mxu0 0
  %3196 = vmatprep.subr.bf16.mxu0 0
  %3197 = vmatpush2.bf16.msra.mxu0 0
  %3198 = vmatprep.subr.bf16.mxu0 0
  %3199 = vmatpush2.bf16.msra.mxu0 0
  %3200 = vmatprep.subr.bf16.mxu0 0
  %3201 = vmatpush2.bf16.msra.mxu0 0
  %3202 = vmatprep.subr.bf16.mxu0 0
  %3203 = vmatpush2.bf16.msra.mxu0 0
  %3204 = vmatprep.subr.bf16.mxu0 0
  %3205 = vmatpush2.bf16.msra.mxu0 0
  %3206 = vmatprep.subr.bf16.mxu0 0
  %3207 = vmatpush2.bf16.msra.mxu0 0
  %3208 = vmatprep.subr.bf16.mxu0 0
  %3209 = vmatpush2.bf16.msra.mxu0 0
  %3210 = vmatprep.mubr.bf16.mxu0 0
  %3211 = vmatmul.mubr.bf16.gmra.mxu0 %v2985
  %v3212 = vpop.f32.mrf.mxu0
  %v3213 = vadd.f32 0.0, %v3212
  %v3214 = vpop.f32.mrf.mxu0
  %v3215 = vadd.f32 0.0, %v3214
  %v3216 = vpop.f32.mrf.mxu0
  %v3217 = vpop.f32.mrf.mxu0
  %3218 = vdwg.mxu0
  %3219 = vmatprep.subr.bf16.mxu0 %v3145
  %3220 = vmatpush1.bf16.msra.mxu0 %v3144
  %3221 = vmatprep.subr.bf16.mxu0 %v3141
  %3222 = vmatpush1.bf16.msra.mxu0 %v3140
  %3223 = vmatprep.subr.bf16.mxu0 %v3137
  %3224 = vmatpush1.bf16.msra.mxu0 %v3136
  %3225 = vmatprep.subr.bf16.mxu0 %v3133
  %3226 = vmatpush1.bf16.msra.mxu0 %v3132
  %3227 = vmatprep.subr.bf16.mxu0 %v3129
  %3228 = vmatpush1.bf16.msra.mxu0 %v3128
  %3229 = vmatprep.subr.bf16.mxu0 %v3125
  %3230 = vmatpush1.bf16.msra.mxu0 %v3124
  %3231 = vmatprep.subr.bf16.mxu0 %v3121
  %3232 = vmatpush1.bf16.msra.mxu0 %v3120
  %3233 = vmatprep.subr.bf16.mxu0 %v3117
  %3234 = vmatpush1.bf16.msra.mxu0 %v3116
  %3235 = vmatprep.subr.bf16.mxu0 0
  %3236 = vmatpush2.bf16.msra.mxu0 0
  %3237 = vmatprep.subr.bf16.mxu0 0
  %3238 = vmatpush2.bf16.msra.mxu0 0
  %3239 = vmatprep.subr.bf16.mxu0 0
  %3240 = vmatpush2.bf16.msra.mxu0 0
  %3241 = vmatprep.subr.bf16.mxu0 0
  %3242 = vmatpush2.bf16.msra.mxu0 0
  %3243 = vmatprep.subr.bf16.mxu0 0
  %3244 = vmatpush2.bf16.msra.mxu0 0
  %3245 = vmatprep.subr.bf16.mxu0 0
  %3246 = vmatpush2.bf16.msra.mxu0 0
  %3247 = vmatprep.subr.bf16.mxu0 0
  %3248 = vmatpush2.bf16.msra.mxu0 0
  %3249 = vmatprep.subr.bf16.mxu0 0
  %3250 = vmatpush2.bf16.msra.mxu0 0
  %3251 = vmatprep.mubr.bf16.mxu0 0
  %3252 = vmatmul.mubr.bf16.gmra.mxu0 %v2985
  %v3253 = vpop.f32.mrf.mxu0
  %v3254 = vadd.f32 0.0, %v3253
  %v3255 = vpop.f32.mrf.mxu0
  %v3256 = vadd.f32 0.0, %v3255
  %v3257 = vpop.f32.mrf.mxu0
  %v3258 = vpop.f32.mrf.mxu0
  %3259 = vdwg.mxu0
  %v3260 = vadd.f32 %v2980, %v3213
  %v3261 = vadd.f32 %v2981, %v3215
  %v3262 = vadd.f32 %v2982, %v3254
  %v3263 = vadd.f32 %v2983, %v3256
  %v3264 = vxor.u32 %v3260, 2147483648
  %v3265 = vmul.f32 %v3264, 1.442695
  %v3266 = vpow.pop %v3265
  %v3267 = vadd.f32 %v3266, 1.0
  %v3268 = vrcp.pop %v3267
  %v3269 = vmul.f32 1.0, %v3268
  %v3270 = vxor.u32 %v3261, 2147483648
  %v3271 = vmul.f32 %v3270, 1.442695
  %v3272 = vpow.pop %v3271
  %v3273 = vadd.f32 %v3272, 1.0
  %v3274 = vrcp.pop %v3273
  %v3275 = vmul.f32 1.0, %v3274
  %v3276 = vtanh.pop %v3262
  %v3277 = vxor.u32 %v3263, 2147483648
  %v3278 = vmul.f32 %v3277, 1.442695
  %v3279 = vpow.pop %v3278
  %v3280 = vadd.f32 %v3279, 1.0
  %v3281 = vrcp.pop %v3280
  %v3282 = vmul.f32 1.0, %v3281
  %v3283 = vld [vmem:[#allocation5] sm:$0xff]
  %v3284 = vmul.f32 %v3275, %v3283
  %v3285 = vmul.f32 %v3269, %v3276
  %v3286 = vadd.f32 %v3284, %v3285
  %v3287 = vtanh.pop %v3286
  %v3288 = vmul.f32 %v3282, %v3287
  %v3289 = vstv %s2976
  %vm3290 = vcmp.gt.s32.totalorder %v70, %v3289
  %v3291 = vsel %vm3290, %v3286, %v3283
  %3292 = vst [vmem:[#allocation5] sm:$0xff] %v3291
  %v3293 = vld [vmem:[#allocation4] sm:$0xff]
  %v3294 = vsel %vm3290, %v3288, %v3293
  %3295 = vst [vmem:[#allocation4] sm:$0xff] %v3294
  %v3296 = vsel %vm3290, %v3288, 0.0
  %s3297 = scalar_lea.vmem %s55, 24
  %3298 = vst [vmem:[%s3297] sm:$0xff] %v3296
  %s3299 = sadd.s32 %s67, 5
  %s3300 = scalar_lea.vmem %s1, 80
  %v3301 = vld [vmem:[%s3300] sm:$0xff]
  %v3302 = vld [vmem:[%s3300 + $0x8] sm:$0xff]
  %v3303 = vunpack.c.l.bf16 %v3301
  %v3304 = vunpack.c.h.bf16 %v3301
  %v3305 = vunpack.c.l.bf16 %v3302
  %v3306 = vunpack.c.h.bf16 %v3302
  %v3307 = vld [vmem:[#allocation2] sm:$0xff]
  %v3308 = vpack.c.bf16 %v3307, %v3307
  %v3309 = vld [vmem:[%s3] sm:$0xff]
  %v3310 = vld [vmem:[%s3 + $0x8] sm:$0xff]
  %v3311 = vld [vmem:[%s3 + $0x10] sm:$0xff]
  %v3312 = vld [vmem:[%s3 + $0x18] sm:$0xff]
  %v3313 = vld [vmem:[%s3 + $0x20] sm:$0xff]
  %v3314 = vld [vmem:[%s3 + $0x28] sm:$0xff]
  %v3315 = vld [vmem:[%s3 + $0x30] sm:$0xff]
  %v3316 = vld [vmem:[%s3 + $0x38] sm:$0xff]
  %v3317 = vld [vmem:[%s3 + $0x40] sm:$0xff]
  %v3318 = vld [vmem:[%s3 + $0x48] sm:$0xff]
  %v3319 = vld [vmem:[%s3 + $0x50] sm:$0xff]
  %v3320 = vld [vmem:[%s3 + $0x58] sm:$0xff]
  %v3321 = vld [vmem:[%s3 + $0x60] sm:$0xff]
  %v3322 = vld [vmem:[%s3 + $0x68] sm:$0xff]
  %v3323 = vld [vmem:[%s3 + $0x70] sm:$0xff]
  %v3324 = vld [vmem:[%s3 + $0x78] sm:$0xff]
  %v3325 = vld [vmem:[%s3 + $0x80] sm:$0xff]
  %v3326 = vld [vmem:[%s3 + $0x88] sm:$0xff]
  %v3327 = vld [vmem:[%s3 + $0x90] sm:$0xff]
  %v3328 = vld [vmem:[%s3 + $0x98] sm:$0xff]
  %v3329 = vld [vmem:[%s3 + $0xa0] sm:$0xff]
  %v3330 = vld [vmem:[%s3 + $0xa8] sm:$0xff]
  %v3331 = vld [vmem:[%s3 + $0xb0] sm:$0xff]
  %v3332 = vld [vmem:[%s3 + $0xb8] sm:$0xff]
  %v3333 = vld [vmem:[%s3 + $0xc0] sm:$0xff]
  %v3334 = vld [vmem:[%s3 + $0xc8] sm:$0xff]
  %v3335 = vld [vmem:[%s3 + $0xd0] sm:$0xff]
  %v3336 = vld [vmem:[%s3 + $0xd8] sm:$0xff]
  %v3337 = vld [vmem:[%s3 + $0xe0] sm:$0xff]
  %v3338 = vld [vmem:[%s3 + $0xe8] sm:$0xff]
  %v3339 = vld [vmem:[%s3 + $0xf0] sm:$0xff]
  %v3340 = vld [vmem:[%s3 + $0xf8] sm:$0xff]
  %v3373 = vunpack.c.l.b16 %v3309
  %v3374 = vunpack.c.h.b16 %v3309
  %v3375 = vunpack.c.l.b16 %v3310
  %v3376 = vunpack.c.h.b16 %v3310
  %v3377 = vunpack.c.l.b16 %v3311
  %v3378 = vunpack.c.h.b16 %v3311
  %v3379 = vunpack.c.l.b16 %v3312
  %v3380 = vunpack.c.h.b16 %v3312
  %v3381 = vunpack.c.l.b16 %v3313
  %v3382 = vunpack.c.h.b16 %v3313
  %v3383 = vunpack.c.l.b16 %v3314
  %v3384 = vunpack.c.h.b16 %v3314
  %v3385 = vunpack.c.l.b16 %v3315
  %v3386 = vunpack.c.h.b16 %v3315
  %v3387 = vunpack.c.l.b16 %v3316
  %v3388 = vunpack.c.h.b16 %v3316
  %v3389 = vunpack.c.l.b16 %v3317
  %v3390 = vunpack.c.h.b16 %v3317
  %v3391 = vunpack.c.l.b16 %v3318
  %v3392 = vunpack.c.h.b16 %v3318
  %v3393 = vunpack.c.l.b16 %v3319
  %v3394 = vunpack.c.h.b16 %v3319
  %v3395 = vunpack.c.l.b16 %v3320
  %v3396 = vunpack.c.h.b16 %v3320
  %v3397 = vunpack.c.l.b16 %v3321
  %v3398 = vunpack.c.h.b16 %v3321
  %v3399 = vunpack.c.l.b16 %v3322
  %v3400 = vunpack.c.h.b16 %v3322
  %v3401 = vunpack.c.l.b16 %v3323
  %v3402 = vunpack.c.h.b16 %v3323
  %v3403 = vunpack.c.l.b16 %v3324
  %v3404 = vunpack.c.h.b16 %v3324
  %v3405 = vunpack.c.l.b16 %v3325
  %v3406 = vunpack.c.h.b16 %v3325
  %v3407 = vunpack.c.l.b16 %v3326
  %v3408 = vunpack.c.h.b16 %v3326
  %v3409 = vunpack.c.l.b16 %v3327
  %v3410 = vunpack.c.h.b16 %v3327
  %v3411 = vunpack.c.l.b16 %v3328
  %v3412 = vunpack.c.h.b16 %v3328
  %v3413 = vunpack.c.l.b16 %v3329
  %v3414 = vunpack.c.h.b16 %v3329
  %v3415 = vunpack.c.l.b16 %v3330
  %v3416 = vunpack.c.h.b16 %v3330
  %v3417 = vunpack.c.l.b16 %v3331
  %v3418 = vunpack.c.h.b16 %v3331
  %v3419 = vunpack.c.l.b16 %v3332
  %v3420 = vunpack.c.h.b16 %v3332
  %v3421 = vunpack.c.l.b16 %v3333
  %v3422 = vunpack.c.h.b16 %v3333
  %v3423 = vunpack.c.l.b16 %v3334
  %v3424 = vunpack.c.h.b16 %v3334
  %v3425 = vunpack.c.l.b16 %v3335
  %v3426 = vunpack.c.h.b16 %v3335
  %v3427 = vunpack.c.l.b16 %v3336
  %v3428 = vunpack.c.h.b16 %v3336
  %v3429 = vunpack.c.l.b16 %v3337
  %v3430 = vunpack.c.h.b16 %v3337
  %v3431 = vunpack.c.l.b16 %v3338
  %v3432 = vunpack.c.h.b16 %v3338
  %v3433 = vunpack.c.l.b16 %v3339
  %v3434 = vunpack.c.h.b16 %v3339
  %v3435 = vunpack.c.l.b16 %v3340
  %v3436 = vunpack.c.h.b16 %v3340
  %v3437 = vpack.c.b16 %v3377, %v3373
  %v3438 = vpack.c.b16 %v3378, %v3374
  %v3439 = vpack.c.b16 %v3379, %v3375
  %v3440 = vpack.c.b16 %v3380, %v3376
  %v3441 = vpack.c.b16 %v3385, %v3381
  %v3442 = vpack.c.b16 %v3386, %v3382
  %v3443 = vpack.c.b16 %v3387, %v3383
  %v3444 = vpack.c.b16 %v3388, %v3384
  %v3445 = vpack.c.b16 %v3393, %v3389
  %v3446 = vpack.c.b16 %v3394, %v3390
  %v3447 = vpack.c.b16 %v3395, %v3391
  %v3448 = vpack.c.b16 %v3396, %v3392
  %v3449 = vpack.c.b16 %v3401, %v3397
  %v3450 = vpack.c.b16 %v3402, %v3398
  %v3451 = vpack.c.b16 %v3403, %v3399
  %v3452 = vpack.c.b16 %v3404, %v3400
  %v3453 = vpack.c.b16 %v3409, %v3405
  %v3454 = vpack.c.b16 %v3410, %v3406
  %v3455 = vpack.c.b16 %v3411, %v3407
  %v3456 = vpack.c.b16 %v3412, %v3408
  %v3457 = vpack.c.b16 %v3417, %v3413
  %v3458 = vpack.c.b16 %v3418, %v3414
  %v3459 = vpack.c.b16 %v3419, %v3415
  %v3460 = vpack.c.b16 %v3420, %v3416
  %v3461 = vpack.c.b16 %v3425, %v3421
  %v3462 = vpack.c.b16 %v3426, %v3422
  %v3463 = vpack.c.b16 %v3427, %v3423
  %v3464 = vpack.c.b16 %v3428, %v3424
  %v3465 = vpack.c.b16 %v3433, %v3429
  %v3466 = vpack.c.b16 %v3434, %v3430
  %v3467 = vpack.c.b16 %v3435, %v3431
  %v3468 = vpack.c.b16 %v3436, %v3432
  %3501 = vmatprep.subr.bf16.mxu0 %v3466
  %3502 = vmatpush1.bf16.msra.mxu0 %v3465
  %3503 = vmatprep.subr.bf16.mxu0 %v3462
  %3504 = vmatpush1.bf16.msra.mxu0 %v3461
  %3505 = vmatprep.subr.bf16.mxu0 %v3458
  %3506 = vmatpush1.bf16.msra.mxu0 %v3457
  %3507 = vmatprep.subr.bf16.mxu0 %v3454
  %3508 = vmatpush1.bf16.msra.mxu0 %v3453
  %3509 = vmatprep.subr.bf16.mxu0 %v3450
  %3510 = vmatpush1.bf16.msra.mxu0 %v3449
  %3511 = vmatprep.subr.bf16.mxu0 %v3446
  %3512 = vmatpush1.bf16.msra.mxu0 %v3445
  %3513 = vmatprep.subr.bf16.mxu0 %v3442
  %3514 = vmatpush1.bf16.msra.mxu0 %v3441
  %3515 = vmatprep.subr.bf16.mxu0 %v3438
  %3516 = vmatpush1.bf16.msra.mxu0 %v3437
  %3517 = vmatprep.subr.bf16.mxu0 0
  %3518 = vmatpush2.bf16.msra.mxu0 0
  %3519 = vmatprep.subr.bf16.mxu0 0
  %3520 = vmatpush2.bf16.msra.mxu0 0
  %3521 = vmatprep.subr.bf16.mxu0 0
  %3522 = vmatpush2.bf16.msra.mxu0 0
  %3523 = vmatprep.subr.bf16.mxu0 0
  %3524 = vmatpush2.bf16.msra.mxu0 0
  %3525 = vmatprep.subr.bf16.mxu0 0
  %3526 = vmatpush2.bf16.msra.mxu0 0
  %3527 = vmatprep.subr.bf16.mxu0 0
  %3528 = vmatpush2.bf16.msra.mxu0 0
  %3529 = vmatprep.subr.bf16.mxu0 0
  %3530 = vmatpush2.bf16.msra.mxu0 0
  %3531 = vmatprep.subr.bf16.mxu0 0
  %3532 = vmatpush2.bf16.msra.mxu0 0
  %3533 = vmatprep.mubr.bf16.mxu0 0
  %3534 = vmatmul.mubr.bf16.gmra.mxu0 %v3308
  %v3535 = vpop.f32.mrf.mxu0
  %v3536 = vadd.f32 0.0, %v3535
  %v3537 = vpop.f32.mrf.mxu0
  %v3538 = vadd.f32 0.0, %v3537
  %v3539 = vpop.f32.mrf.mxu0
  %v3540 = vpop.f32.mrf.mxu0
  %3541 = vdwg.mxu0
  %3542 = vmatprep.subr.bf16.mxu0 %v3468
  %3543 = vmatpush1.bf16.msra.mxu0 %v3467
  %3544 = vmatprep.subr.bf16.mxu0 %v3464
  %3545 = vmatpush1.bf16.msra.mxu0 %v3463
  %3546 = vmatprep.subr.bf16.mxu0 %v3460
  %3547 = vmatpush1.bf16.msra.mxu0 %v3459
  %3548 = vmatprep.subr.bf16.mxu0 %v3456
  %3549 = vmatpush1.bf16.msra.mxu0 %v3455
  %3550 = vmatprep.subr.bf16.mxu0 %v3452
  %3551 = vmatpush1.bf16.msra.mxu0 %v3451
  %3552 = vmatprep.subr.bf16.mxu0 %v3448
  %3553 = vmatpush1.bf16.msra.mxu0 %v3447
  %3554 = vmatprep.subr.bf16.mxu0 %v3444
  %3555 = vmatpush1.bf16.msra.mxu0 %v3443
  %3556 = vmatprep.subr.bf16.mxu0 %v3440
  %3557 = vmatpush1.bf16.msra.mxu0 %v3439
  %3558 = vmatprep.subr.bf16.mxu0 0
  %3559 = vmatpush2.bf16.msra.mxu0 0
  %3560 = vmatprep.subr.bf16.mxu0 0
  %3561 = vmatpush2.bf16.msra.mxu0 0
  %3562 = vmatprep.subr.bf16.mxu0 0
  %3563 = vmatpush2.bf16.msra.mxu0 0
  %3564 = vmatprep.subr.bf16.mxu0 0
  %3565 = vmatpush2.bf16.msra.mxu0 0
  %3566 = vmatprep.subr.bf16.mxu0 0
  %3567 = vmatpush2.bf16.msra.mxu0 0
  %3568 = vmatprep.subr.bf16.mxu0 0
  %3569 = vmatpush2.bf16.msra.mxu0 0
  %3570 = vmatprep.subr.bf16.mxu0 0
  %3571 = vmatpush2.bf16.msra.mxu0 0
  %3572 = vmatprep.subr.bf16.mxu0 0
  %3573 = vmatpush2.bf16.msra.mxu0 0
  %3574 = vmatprep.mubr.bf16.mxu0 0
  %3575 = vmatmul.mubr.bf16.gmra.mxu0 %v3308
  %v3576 = vpop.f32.mrf.mxu0
  %v3577 = vadd.f32 0.0, %v3576
  %v3578 = vpop.f32.mrf.mxu0
  %v3579 = vadd.f32 0.0, %v3578
  %v3580 = vpop.f32.mrf.mxu0
  %v3581 = vpop.f32.mrf.mxu0
  %3582 = vdwg.mxu0
  %v3583 = vadd.f32 %v3303, %v3536
  %v3584 = vadd.f32 %v3304, %v3538
  %v3585 = vadd.f32 %v3305, %v3577
  %v3586 = vadd.f32 %v3306, %v3579
  %v3587 = vxor.u32 %v3583, 2147483648
  %v3588 = vmul.f32 %v3587, 1.442695
  %v3589 = vpow.pop %v3588
  %v3590 = vadd.f32 %v3589, 1.0
  %v3591 = vrcp.pop %v3590
  %v3592 = vmul.f32 1.0, %v3591
  %v3593 = vxor.u32 %v3584, 2147483648
  %v3594 = vmul.f32 %v3593, 1.442695
  %v3595 = vpow.pop %v3594
  %v3596 = vadd.f32 %v3595, 1.0
  %v3597 = vrcp.pop %v3596
  %v3598 = vmul.f32 1.0, %v3597
  %v3599 = vtanh.pop %v3585
  %v3600 = vxor.u32 %v3586, 2147483648
  %v3601 = vmul.f32 %v3600, 1.442695
  %v3602 = vpow.pop %v3601
  %v3603 = vadd.f32 %v3602, 1.0
  %v3604 = vrcp.pop %v3603
  %v3605 = vmul.f32 1.0, %v3604
  %v3606 = vld [vmem:[#allocation3] sm:$0xff]
  %v3607 = vmul.f32 %v3598, %v3606
  %v3608 = vmul.f32 %v3592, %v3599
  %v3609 = vadd.f32 %v3607, %v3608
  %v3610 = vtanh.pop %v3609
  %v3611 = vmul.f32 %v3605, %v3610
  %v3612 = vstv %s3299
  %vm3613 = vcmp.gt.s32.totalorder %v70, %v3612
  %v3614 = vsel %vm3613, %v3609, %v3606
  %3615 = vst [vmem:[#allocation3] sm:$0xff] %v3614
  %v3616 = vld [vmem:[#allocation2] sm:$0xff]
  %v3617 = vsel %vm3613, %v3611, %v3616
  %3618 = vst [vmem:[#allocation2] sm:$0xff] %v3617
  %v3619 = vsel %vm3613, %v3611, 0.0
  %s3620 = scalar_lea.vmem %s4, 40
  %3621 = vst [vmem:[%s3620] sm:$0xff] %v3619
  %s3622 = sadd.s32 %s69, 2
  %s3623 = scalar_lea.vmem %s47, 32
  %v3624 = vld [vmem:[%s3623] sm:$0xff]
  %v3625 = vld [vmem:[%s3623 + $0x8] sm:$0xff]
  %v3626 = vunpack.c.l.bf16 %v3624
  %v3627 = vunpack.c.h.bf16 %v3624
  %v3628 = vunpack.c.l.bf16 %v3625
  %v3629 = vunpack.c.h.bf16 %v3625
  %v3630 = vld [vmem:[#allocation4] sm:$0xff]
  %v3631 = vpack.c.bf16 %v3630, %v3630
  %v3632 = vld [vmem:[%s401] sm:$0xff]
  %v3633 = vld [vmem:[%s401 + $0x8] sm:$0xff]
  %v3634 = vld [vmem:[%s401 + $0x10] sm:$0xff]
  %v3635 = vld [vmem:[%s401 + $0x18] sm:$0xff]
  %v3636 = vld [vmem:[%s401 + $0x20] sm:$0xff]
  %v3637 = vld [vmem:[%s401 + $0x28] sm:$0xff]
  %v3638 = vld [vmem:[%s401 + $0x30] sm:$0xff]
  %v3639 = vld [vmem:[%s401 + $0x38] sm:$0xff]
  %v3640 = vld [vmem:[%s401 + $0x40] sm:$0xff]
  %v3641 = vld [vmem:[%s401 + $0x48] sm:$0xff]
  %v3642 = vld [vmem:[%s401 + $0x50] sm:$0xff]
  %v3643 = vld [vmem:[%s401 + $0x58] sm:$0xff]
  %v3644 = vld [vmem:[%s401 + $0x60] sm:$0xff]
  %v3645 = vld [vmem:[%s401 + $0x68] sm:$0xff]
  %v3646 = vld [vmem:[%s401 + $0x70] sm:$0xff]
  %v3647 = vld [vmem:[%s401 + $0x78] sm:$0xff]
  %v3648 = vld [vmem:[%s401 + $0x80] sm:$0xff]
  %v3649 = vld [vmem:[%s401 + $0x88] sm:$0xff]
  %v3650 = vld [vmem:[%s401 + $0x90] sm:$0xff]
  %v3651 = vld [vmem:[%s401 + $0x98] sm:$0xff]
  %v3652 = vld [vmem:[%s401 + $0xa0] sm:$0xff]
  %v3653 = vld [vmem:[%s401 + $0xa8] sm:$0xff]
  %v3654 = vld [vmem:[%s401 + $0xb0] sm:$0xff]
  %v3655 = vld [vmem:[%s401 + $0xb8] sm:$0xff]
  %v3656 = vld [vmem:[%s401 + $0xc0] sm:$0xff]
  %v3657 = vld [vmem:[%s401 + $0xc8] sm:$0xff]
  %v3658 = vld [vmem:[%s401 + $0xd0] sm:$0xff]
  %v3659 = vld [vmem:[%s401 + $0xd8] sm:$0xff]
  %v3660 = vld [vmem:[%s401 + $0xe0] sm:$0xff]
  %v3661 = vld [vmem:[%s401 + $0xe8] sm:$0xff]
  %v3662 = vld [vmem:[%s401 + $0xf0] sm:$0xff]
  %v3663 = vld [vmem:[%s401 + $0xf8] sm:$0xff]
  %v3696 = vunpack.c.l.b16 %v3632
  %v3697 = vunpack.c.h.b16 %v3632
  %v3698 = vunpack.c.l.b16 %v3633
  %v3699 = vunpack.c.h.b16 %v3633
  %v3700 = vunpack.c.l.b16 %v3634
  %v3701 = vunpack.c.h.b16 %v3634
  %v3702 = vunpack.c.l.b16 %v3635
  %v3703 = vunpack.c.h.b16 %v3635
  %v3704 = vunpack.c.l.b16 %v3636
  %v3705 = vunpack.c.h.b16 %v3636
  %v3706 = vunpack.c.l.b16 %v3637
  %v3707 = vunpack.c.h.b16 %v3637
  %v3708 = vunpack.c.l.b16 %v3638
  %v3709 = vunpack.c.h.b16 %v3638
  %v3710 = vunpack.c.l.b16 %v3639
  %v3711 = vunpack.c.h.b16 %v3639
  %v3712 = vunpack.c.l.b16 %v3640
  %v3713 = vunpack.c.h.b16 %v3640
  %v3714 = vunpack.c.l.b16 %v3641
  %v3715 = vunpack.c.h.b16 %v3641
  %v3716 = vunpack.c.l.b16 %v3642
  %v3717 = vunpack.c.h.b16 %v3642
  %v3718 = vunpack.c.l.b16 %v3643
  %v3719 = vunpack.c.h.b16 %v3643
  %v3720 = vunpack.c.l.b16 %v3644
  %v3721 = vunpack.c.h.b16 %v3644
  %v3722 = vunpack.c.l.b16 %v3645
  %v3723 = vunpack.c.h.b16 %v3645
  %v3724 = vunpack.c.l.b16 %v3646
  %v3725 = vunpack.c.h.b16 %v3646
  %v3726 = vunpack.c.l.b16 %v3647
  %v3727 = vunpack.c.h.b16 %v3647
  %v3728 = vunpack.c.l.b16 %v3648
  %v3729 = vunpack.c.h.b16 %v3648
  %v3730 = vunpack.c.l.b16 %v3649
  %v3731 = vunpack.c.h.b16 %v3649
  %v3732 = vunpack.c.l.b16 %v3650
  %v3733 = vunpack.c.h.b16 %v3650
  %v3734 = vunpack.c.l.b16 %v3651
  %v3735 = vunpack.c.h.b16 %v3651
  %v3736 = vunpack.c.l.b16 %v3652
  %v3737 = vunpack.c.h.b16 %v3652
  %v3738 = vunpack.c.l.b16 %v3653
  %v3739 = vunpack.c.h.b16 %v3653
  %v3740 = vunpack.c.l.b16 %v3654
  %v3741 = vunpack.c.h.b16 %v3654
  %v3742 = vunpack.c.l.b16 %v3655
  %v3743 = vunpack.c.h.b16 %v3655
  %v3744 = vunpack.c.l.b16 %v3656
  %v3745 = vunpack.c.h.b16 %v3656
  %v3746 = vunpack.c.l.b16 %v3657
  %v3747 = vunpack.c.h.b16 %v3657
  %v3748 = vunpack.c.l.b16 %v3658
  %v3749 = vunpack.c.h.b16 %v3658
  %v3750 = vunpack.c.l.b16 %v3659
  %v3751 = vunpack.c.h.b16 %v3659
  %v3752 = vunpack.c.l.b16 %v3660
  %v3753 = vunpack.c.h.b16 %v3660
  %v3754 = vunpack.c.l.b16 %v3661
  %v3755 = vunpack.c.h.b16 %v3661
  %v3756 = vunpack.c.l.b16 %v3662
  %v3757 = vunpack.c.h.b16 %v3662
  %v3758 = vunpack.c.l.b16 %v3663
  %v3759 = vunpack.c.h.b16 %v3663
  %v3760 = vpack.c.b16 %v3700, %v3696
  %v3761 = vpack.c.b16 %v3701, %v3697
  %v3762 = vpack.c.b16 %v3702, %v3698
  %v3763 = vpack.c.b16 %v3703, %v3699
  %v3764 = vpack.c.b16 %v3708, %v3704
  %v3765 = vpack.c.b16 %v3709, %v3705
  %v3766 = vpack.c.b16 %v3710, %v3706
  %v3767 = vpack.c.b16 %v3711, %v3707
  %v3768 = vpack.c.b16 %v3716, %v3712
  %v3769 = vpack.c.b16 %v3717, %v3713
  %v3770 = vpack.c.b16 %v3718, %v3714
  %v3771 = vpack.c.b16 %v3719, %v3715
  %v3772 = vpack.c.b16 %v3724, %v3720
  %v3773 = vpack.c.b16 %v3725, %v3721
  %v3774 = vpack.c.b16 %v3726, %v3722
  %v3775 = vpack.c.b16 %v3727, %v3723
  %v3776 = vpack.c.b16 %v3732, %v3728
  %v3777 = vpack.c.b16 %v3733, %v3729
  %v3778 = vpack.c.b16 %v3734, %v3730
  %v3779 = vpack.c.b16 %v3735, %v3731
  %v3780 = vpack.c.b16 %v3740, %v3736
  %v3781 = vpack.c.b16 %v3741, %v3737
  %v3782 = vpack.c.b16 %v3742, %v3738
  %v3783 = vpack.c.b16 %v3743, %v3739
  %v3784 = vpack.c.b16 %v3748, %v3744
  %v3785 = vpack.c.b16 %v3749, %v3745
  %v3786 = vpack.c.b16 %v3750, %v3746
  %v3787 = vpack.c.b16 %v3751, %v3747
  %v3788 = vpack.c.b16 %v3756, %v3752
  %v3789 = vpack.c.b16 %v3757, %v3753
  %v3790 = vpack.c.b16 %v3758, %v3754
  %v3791 = vpack.c.b16 %v3759, %v3755
  %3824 = vmatprep.subr.bf16.mxu0 %v3789
  %3825 = vmatpush1.bf16.msra.mxu0 %v3788
  %3826 = vmatprep.subr.bf16.mxu0 %v3785
  %3827 = vmatpush1.bf16.msra.mxu0 %v3784
  %3828 = vmatprep.subr.bf16.mxu0 %v3781
  %3829 = vmatpush1.bf16.msra.mxu0 %v3780
  %3830 = vmatprep.subr.bf16.mxu0 %v3777
  %3831 = vmatpush1.bf16.msra.mxu0 %v3776
  %3832 = vmatprep.subr.bf16.mxu0 %v3773
  %3833 = vmatpush1.bf16.msra.mxu0 %v3772
  %3834 = vmatprep.subr.bf16.mxu0 %v3769
  %3835 = vmatpush1.bf16.msra.mxu0 %v3768
  %3836 = vmatprep.subr.bf16.mxu0 %v3765
  %3837 = vmatpush1.bf16.msra.mxu0 %v3764
  %3838 = vmatprep.subr.bf16.mxu0 %v3761
  %3839 = vmatpush1.bf16.msra.mxu0 %v3760
  %3840 = vmatprep.subr.bf16.mxu0 0
  %3841 = vmatpush2.bf16.msra.mxu0 0
  %3842 = vmatprep.subr.bf16.mxu0 0
  %3843 = vmatpush2.bf16.msra.mxu0 0
  %3844 = vmatprep.subr.bf16.mxu0 0
  %3845 = vmatpush2.bf16.msra.mxu0 0
  %3846 = vmatprep.subr.bf16.mxu0 0
  %3847 = vmatpush2.bf16.msra.mxu0 0
  %3848 = vmatprep.subr.bf16.mxu0 0
  %3849 = vmatpush2.bf16.msra.mxu0 0
  %3850 = vmatprep.subr.bf16.mxu0 0
  %3851 = vmatpush2.bf16.msra.mxu0 0
  %3852 = vmatprep.subr.bf16.mxu0 0
  %3853 = vmatpush2.bf16.msra.mxu0 0
  %3854 = vmatprep.subr.bf16.mxu0 0
  %3855 = vmatpush2.bf16.msra.mxu0 0
  %3856 = vmatprep.mubr.bf16.mxu0 0
  %3857 = vmatmul.mubr.bf16.gmra.mxu0 %v3631
  %v3858 = vpop.f32.mrf.mxu0
  %v3859 = vadd.f32 0.0, %v3858
  %v3860 = vpop.f32.mrf.mxu0
  %v3861 = vadd.f32 0.0, %v3860
  %v3862 = vpop.f32.mrf.mxu0
  %v3863 = vpop.f32.mrf.mxu0
  %3864 = vdwg.mxu0
  %3865 = vmatprep.subr.bf16.mxu0 %v3791
  %3866 = vmatpush1.bf16.msra.mxu0 %v3790
  %3867 = vmatprep.subr.bf16.mxu0 %v3787
  %3868 = vmatpush1.bf16.msra.mxu0 %v3786
  %3869 = vmatprep.subr.bf16.mxu0 %v3783
  %3870 = vmatpush1.bf16.msra.mxu0 %v3782
  %3871 = vmatprep.subr.bf16.mxu0 %v3779
  %3872 = vmatpush1.bf16.msra.mxu0 %v3778
  %3873 = vmatprep.subr.bf16.mxu0 %v3775
  %3874 = vmatpush1.bf16.msra.mxu0 %v3774
  %3875 = vmatprep.subr.bf16.mxu0 %v3771
  %3876 = vmatpush1.bf16.msra.mxu0 %v3770
  %3877 = vmatprep.subr.bf16.mxu0 %v3767
  %3878 = vmatpush1.bf16.msra.mxu0 %v3766
  %3879 = vmatprep.subr.bf16.mxu0 %v3763
  %3880 = vmatpush1.bf16.msra.mxu0 %v3762
  %3881 = vmatprep.subr.bf16.mxu0 0
  %3882 = vmatpush2.bf16.msra.mxu0 0
  %3883 = vmatprep.subr.bf16.mxu0 0
  %3884 = vmatpush2.bf16.msra.mxu0 0
  %3885 = vmatprep.subr.bf16.mxu0 0
  %3886 = vmatpush2.bf16.msra.mxu0 0
  %3887 = vmatprep.subr.bf16.mxu0 0
  %3888 = vmatpush2.bf16.msra.mxu0 0
  %3889 = vmatprep.subr.bf16.mxu0 0
  %3890 = vmatpush2.bf16.msra.mxu0 0
  %3891 = vmatprep.subr.bf16.mxu0 0
  %3892 = vmatpush2.bf16.msra.mxu0 0
  %3893 = vmatprep.subr.bf16.mxu0 0
  %3894 = vmatpush2.bf16.msra.mxu0 0
  %3895 = vmatprep.subr.bf16.mxu0 0
  %3896 = vmatpush2.bf16.msra.mxu0 0
  %3897 = vmatprep.mubr.bf16.mxu0 0
  %3898 = vmatmul.mubr.bf16.gmra.mxu0 %v3631
  %v3899 = vpop.f32.mrf.mxu0
  %v3900 = vadd.f32 0.0, %v3899
  %v3901 = vpop.f32.mrf.mxu0
  %v3902 = vadd.f32 0.0, %v3901
  %v3903 = vpop.f32.mrf.mxu0
  %v3904 = vpop.f32.mrf.mxu0
  %3905 = vdwg.mxu0
  %v3906 = vadd.f32 %v3626, %v3859
  %v3907 = vadd.f32 %v3627, %v3861
  %v3908 = vadd.f32 %v3628, %v3900
  %v3909 = vadd.f32 %v3629, %v3902
  %v3910 = vxor.u32 %v3906, 2147483648
  %v3911 = vmul.f32 %v3910, 1.442695
  %v3912 = vpow.pop %v3911
  %v3913 = vadd.f32 %v3912, 1.0
  %v3914 = vrcp.pop %v3913
  %v3915 = vmul.f32 1.0, %v3914
  %v3916 = vxor.u32 %v3907, 2147483648
  %v3917 = vmul.f32 %v3916, 1.442695
  %v3918 = vpow.pop %v3917
  %v3919 = vadd.f32 %v3918, 1.0
  %v3920 = vrcp.pop %v3919
  %v3921 = vmul.f32 1.0, %v3920
  %v3922 = vtanh.pop %v3908
  %v3923 = vxor.u32 %v3909, 2147483648
  %v3924 = vmul.f32 %v3923, 1.442695
  %v3925 = vpow.pop %v3924
  %v3926 = vadd.f32 %v3925, 1.0
  %v3927 = vrcp.pop %v3926
  %v3928 = vmul.f32 1.0, %v3927
  %v3929 = vld [vmem:[#allocation5] sm:$0xff]
  %v3930 = vmul.f32 %v3921, %v3929
  %v3931 = vmul.f32 %v3915, %v3922
  %v3932 = vadd.f32 %v3930, %v3931
  %v3933 = vtanh.pop %v3932
  %v3934 = vmul.f32 %v3928, %v3933
  %v3935 = vstv %s3622
  %vm3936 = vcmp.gt.s32.totalorder %v70, %v3935
  %v3937 = vsel %vm3936, %v3932, %v3929
  %3938 = vst [vmem:[#allocation5] sm:$0xff] %v3937
  %v3939 = vld [vmem:[#allocation4] sm:$0xff]
  %v3940 = vsel %vm3936, %v3934, %v3939
  %3941 = vst [vmem:[#allocation4] sm:$0xff] %v3940
  %v3942 = vsel %vm3936, %v3934, 0.0
  %s3943 = scalar_lea.vmem %s55, 16
  %3944 = vst [vmem:[%s3943] sm:$0xff] %v3942
  %s3945 = sadd.s32 %s67, 6
  %s3946 = scalar_lea.vmem %s1, 96
  %v3947 = vld [vmem:[%s3946] sm:$0xff]
  %v3948 = vld [vmem:[%s3946 + $0x8] sm:$0xff]
  %v3949 = vunpack.c.l.bf16 %v3947
  %v3950 = vunpack.c.h.bf16 %v3947
  %v3951 = vunpack.c.l.bf16 %v3948
  %v3952 = vunpack.c.h.bf16 %v3948
  %v3953 = vld [vmem:[#allocation2] sm:$0xff]
  %v3954 = vpack.c.bf16 %v3953, %v3953
  %v3955 = vld [vmem:[%s3] sm:$0xff]
  %v3956 = vld [vmem:[%s3 + $0x8] sm:$0xff]
  %v3957 = vld [vmem:[%s3 + $0x10] sm:$0xff]
  %v3958 = vld [vmem:[%s3 + $0x18] sm:$0xff]
  %v3959 = vld [vmem:[%s3 + $0x20] sm:$0xff]
  %v3960 = vld [vmem:[%s3 + $0x28] sm:$0xff]
  %v3961 = vld [vmem:[%s3 + $0x30] sm:$0xff]
  %v3962 = vld [vmem:[%s3 + $0x38] sm:$0xff]
  %v3963 = vld [vmem:[%s3 + $0x40] sm:$0xff]
  %v3964 = vld [vmem:[%s3 + $0x48] sm:$0xff]
  %v3965 = vld [vmem:[%s3 + $0x50] sm:$0xff]
  %v3966 = vld [vmem:[%s3 + $0x58] sm:$0xff]
  %v3967 = vld [vmem:[%s3 + $0x60] sm:$0xff]
  %v3968 = vld [vmem:[%s3 + $0x68] sm:$0xff]
  %v3969 = vld [vmem:[%s3 + $0x70] sm:$0xff]
  %v3970 = vld [vmem:[%s3 + $0x78] sm:$0xff]
  %v3971 = vld [vmem:[%s3 + $0x80] sm:$0xff]
  %v3972 = vld [vmem:[%s3 + $0x88] sm:$0xff]
  %v3973 = vld [vmem:[%s3 + $0x90] sm:$0xff]
  %v3974 = vld [vmem:[%s3 + $0x98] sm:$0xff]
  %v3975 = vld [vmem:[%s3 + $0xa0] sm:$0xff]
  %v3976 = vld [vmem:[%s3 + $0xa8] sm:$0xff]
  %v3977 = vld [vmem:[%s3 + $0xb0] sm:$0xff]
  %v3978 = vld [vmem:[%s3 + $0xb8] sm:$0xff]
  %v3979 = vld [vmem:[%s3 + $0xc0] sm:$0xff]
  %v3980 = vld [vmem:[%s3 + $0xc8] sm:$0xff]
  %v3981 = vld [vmem:[%s3 + $0xd0] sm:$0xff]
  %v3982 = vld [vmem:[%s3 + $0xd8] sm:$0xff]
  %v3983 = vld [vmem:[%s3 + $0xe0] sm:$0xff]
  %v3984 = vld [vmem:[%s3 + $0xe8] sm:$0xff]
  %v3985 = vld [vmem:[%s3 + $0xf0] sm:$0xff]
  %v3986 = vld [vmem:[%s3 + $0xf8] sm:$0xff]
  %v4019 = vunpack.c.l.b16 %v3955
  %v4020 = vunpack.c.h.b16 %v3955
  %v4021 = vunpack.c.l.b16 %v3956
  %v4022 = vunpack.c.h.b16 %v3956
  %v4023 = vunpack.c.l.b16 %v3957
  %v4024 = vunpack.c.h.b16 %v3957
  %v4025 = vunpack.c.l.b16 %v3958
  %v4026 = vunpack.c.h.b16 %v3958
  %v4027 = vunpack.c.l.b16 %v3959
  %v4028 = vunpack.c.h.b16 %v3959
  %v4029 = vunpack.c.l.b16 %v3960
  %v4030 = vunpack.c.h.b16 %v3960
  %v4031 = vunpack.c.l.b16 %v3961
  %v4032 = vunpack.c.h.b16 %v3961
  %v4033 = vunpack.c.l.b16 %v3962
  %v4034 = vunpack.c.h.b16 %v3962
  %v4035 = vunpack.c.l.b16 %v3963
  %v4036 = vunpack.c.h.b16 %v3963
  %v4037 = vunpack.c.l.b16 %v3964
  %v4038 = vunpack.c.h.b16 %v3964
  %v4039 = vunpack.c.l.b16 %v3965
  %v4040 = vunpack.c.h.b16 %v3965
  %v4041 = vunpack.c.l.b16 %v3966
  %v4042 = vunpack.c.h.b16 %v3966
  %v4043 = vunpack.c.l.b16 %v3967
  %v4044 = vunpack.c.h.b16 %v3967
  %v4045 = vunpack.c.l.b16 %v3968
  %v4046 = vunpack.c.h.b16 %v3968
  %v4047 = vunpack.c.l.b16 %v3969
  %v4048 = vunpack.c.h.b16 %v3969
  %v4049 = vunpack.c.l.b16 %v3970
  %v4050 = vunpack.c.h.b16 %v3970
  %v4051 = vunpack.c.l.b16 %v3971
  %v4052 = vunpack.c.h.b16 %v3971
  %v4053 = vunpack.c.l.b16 %v3972
  %v4054 = vunpack.c.h.b16 %v3972
  %v4055 = vunpack.c.l.b16 %v3973
  %v4056 = vunpack.c.h.b16 %v3973
  %v4057 = vunpack.c.l.b16 %v3974
  %v4058 = vunpack.c.h.b16 %v3974
  %v4059 = vunpack.c.l.b16 %v3975
  %v4060 = vunpack.c.h.b16 %v3975
  %v4061 = vunpack.c.l.b16 %v3976
  %v4062 = vunpack.c.h.b16 %v3976
  %v4063 = vunpack.c.l.b16 %v3977
  %v4064 = vunpack.c.h.b16 %v3977
  %v4065 = vunpack.c.l.b16 %v3978
  %v4066 = vunpack.c.h.b16 %v3978
  %v4067 = vunpack.c.l.b16 %v3979
  %v4068 = vunpack.c.h.b16 %v3979
  %v4069 = vunpack.c.l.b16 %v3980
  %v4070 = vunpack.c.h.b16 %v3980
  %v4071 = vunpack.c.l.b16 %v3981
  %v4072 = vunpack.c.h.b16 %v3981
  %v4073 = vunpack.c.l.b16 %v3982
  %v4074 = vunpack.c.h.b16 %v3982
  %v4075 = vunpack.c.l.b16 %v3983
  %v4076 = vunpack.c.h.b16 %v3983
  %v4077 = vunpack.c.l.b16 %v3984
  %v4078 = vunpack.c.h.b16 %v3984
  %v4079 = vunpack.c.l.b16 %v3985
  %v4080 = vunpack.c.h.b16 %v3985
  %v4081 = vunpack.c.l.b16 %v3986
  %v4082 = vunpack.c.h.b16 %v3986
  %v4083 = vpack.c.b16 %v4023, %v4019
  %v4084 = vpack.c.b16 %v4024, %v4020
  %v4085 = vpack.c.b16 %v4025, %v4021
  %v4086 = vpack.c.b16 %v4026, %v4022
  %v4087 = vpack.c.b16 %v4031, %v4027
  %v4088 = vpack.c.b16 %v4032, %v4028
  %v4089 = vpack.c.b16 %v4033, %v4029
  %v4090 = vpack.c.b16 %v4034, %v4030
  %v4091 = vpack.c.b16 %v4039, %v4035
  %v4092 = vpack.c.b16 %v4040, %v4036
  %v4093 = vpack.c.b16 %v4041, %v4037
  %v4094 = vpack.c.b16 %v4042, %v4038
  %v4095 = vpack.c.b16 %v4047, %v4043
  %v4096 = vpack.c.b16 %v4048, %v4044
  %v4097 = vpack.c.b16 %v4049, %v4045
  %v4098 = vpack.c.b16 %v4050, %v4046
  %v4099 = vpack.c.b16 %v4055, %v4051
  %v4100 = vpack.c.b16 %v4056, %v4052
  %v4101 = vpack.c.b16 %v4057, %v4053
  %v4102 = vpack.c.b16 %v4058, %v4054
  %v4103 = vpack.c.b16 %v4063, %v4059
  %v4104 = vpack.c.b16 %v4064, %v4060
  %v4105 = vpack.c.b16 %v4065, %v4061
  %v4106 = vpack.c.b16 %v4066, %v4062
  %v4107 = vpack.c.b16 %v4071, %v4067
  %v4108 = vpack.c.b16 %v4072, %v4068
  %v4109 = vpack.c.b16 %v4073, %v4069
  %v4110 = vpack.c.b16 %v4074, %v4070
  %v4111 = vpack.c.b16 %v4079, %v4075
  %v4112 = vpack.c.b16 %v4080, %v4076
  %v4113 = vpack.c.b16 %v4081, %v4077
  %v4114 = vpack.c.b16 %v4082, %v4078
  %4147 = vmatprep.subr.bf16.mxu0 %v4112
  %4148 = vmatpush1.bf16.msra.mxu0 %v4111
  %4149 = vmatprep.subr.bf16.mxu0 %v4108
  %4150 = vmatpush1.bf16.msra.mxu0 %v4107
  %4151 = vmatprep.subr.bf16.mxu0 %v4104
  %4152 = vmatpush1.bf16.msra.mxu0 %v4103
  %4153 = vmatprep.subr.bf16.mxu0 %v4100
  %4154 = vmatpush1.bf16.msra.mxu0 %v4099
  %4155 = vmatprep.subr.bf16.mxu0 %v4096
  %4156 = vmatpush1.bf16.msra.mxu0 %v4095
  %4157 = vmatprep.subr.bf16.mxu0 %v4092
  %4158 = vmatpush1.bf16.msra.mxu0 %v4091
  %4159 = vmatprep.subr.bf16.mxu0 %v4088
  %4160 = vmatpush1.bf16.msra.mxu0 %v4087
  %4161 = vmatprep.subr.bf16.mxu0 %v4084
  %4162 = vmatpush1.bf16.msra.mxu0 %v4083
  %4163 = vmatprep.subr.bf16.mxu0 0
  %4164 = vmatpush2.bf16.msra.mxu0 0
  %4165 = vmatprep.subr.bf16.mxu0 0
  %4166 = vmatpush2.bf16.msra.mxu0 0
  %4167 = vmatprep.subr.bf16.mxu0 0
  %4168 = vmatpush2.bf16.msra.mxu0 0
  %4169 = vmatprep.subr.bf16.mxu0 0
  %4170 = vmatpush2.bf16.msra.mxu0 0
  %4171 = vmatprep.subr.bf16.mxu0 0
  %4172 = vmatpush2.bf16.msra.mxu0 0
  %4173 = vmatprep.subr.bf16.mxu0 0
  %4174 = vmatpush2.bf16.msra.mxu0 0
  %4175 = vmatprep.subr.bf16.mxu0 0
  %4176 = vmatpush2.bf16.msra.mxu0 0
  %4177 = vmatprep.subr.bf16.mxu0 0
  %4178 = vmatpush2.bf16.msra.mxu0 0
  %4179 = vmatprep.mubr.bf16.mxu0 0
  %4180 = vmatmul.mubr.bf16.gmra.mxu0 %v3954
  %v4181 = vpop.f32.mrf.mxu0
  %v4182 = vadd.f32 0.0, %v4181
  %v4183 = vpop.f32.mrf.mxu0
  %v4184 = vadd.f32 0.0, %v4183
  %v4185 = vpop.f32.mrf.mxu0
  %v4186 = vpop.f32.mrf.mxu0
  %4187 = vdwg.mxu0
  %4188 = vmatprep.subr.bf16.mxu0 %v4114
  %4189 = vmatpush1.bf16.msra.mxu0 %v4113
  %4190 = vmatprep.subr.bf16.mxu0 %v4110
  %4191 = vmatpush1.bf16.msra.mxu0 %v4109
  %4192 = vmatprep.subr.bf16.mxu0 %v4106
  %4193 = vmatpush1.bf16.msra.mxu0 %v4105
  %4194 = vmatprep.subr.bf16.mxu0 %v4102
  %4195 = vmatpush1.bf16.msra.mxu0 %v4101
  %4196 = vmatprep.subr.bf16.mxu0 %v4098
  %4197 = vmatpush1.bf16.msra.mxu0 %v4097
  %4198 = vmatprep.subr.bf16.mxu0 %v4094
  %4199 = vmatpush1.bf16.msra.mxu0 %v4093
  %4200 = vmatprep.subr.bf16.mxu0 %v4090
  %4201 = vmatpush1.bf16.msra.mxu0 %v4089
  %4202 = vmatprep.subr.bf16.mxu0 %v4086
  %4203 = vmatpush1.bf16.msra.mxu0 %v4085
  %4204 = vmatprep.subr.bf16.mxu0 0
  %4205 = vmatpush2.bf16.msra.mxu0 0
  %4206 = vmatprep.subr.bf16.mxu0 0
  %4207 = vmatpush2.bf16.msra.mxu0 0
  %4208 = vmatprep.subr.bf16.mxu0 0
  %4209 = vmatpush2.bf16.msra.mxu0 0
  %4210 = vmatprep.subr.bf16.mxu0 0
  %4211 = vmatpush2.bf16.msra.mxu0 0
  %4212 = vmatprep.subr.bf16.mxu0 0
  %4213 = vmatpush2.bf16.msra.mxu0 0
  %4214 = vmatprep.subr.bf16.mxu0 0
  %4215 = vmatpush2.bf16.msra.mxu0 0
  %4216 = vmatprep.subr.bf16.mxu0 0
  %4217 = vmatpush2.bf16.msra.mxu0 0
  %4218 = vmatprep.subr.bf16.mxu0 0
  %4219 = vmatpush2.bf16.msra.mxu0 0
  %4220 = vmatprep.mubr.bf16.mxu0 0
  %4221 = vmatmul.mubr.bf16.gmra.mxu0 %v3954
  %v4222 = vpop.f32.mrf.mxu0
  %v4223 = vadd.f32 0.0, %v4222
  %v4224 = vpop.f32.mrf.mxu0
  %v4225 = vadd.f32 0.0, %v4224
  %v4226 = vpop.f32.mrf.mxu0
  %v4227 = vpop.f32.mrf.mxu0
  %4228 = vdwg.mxu0
  %v4229 = vadd.f32 %v3949, %v4182
  %v4230 = vadd.f32 %v3950, %v4184
  %v4231 = vadd.f32 %v3951, %v4223
  %v4232 = vadd.f32 %v3952, %v4225
  %v4233 = vxor.u32 %v4229, 2147483648
  %v4234 = vmul.f32 %v4233, 1.442695
  %v4235 = vpow.pop %v4234
  %v4236 = vadd.f32 %v4235, 1.0
  %v4237 = vrcp.pop %v4236
  %v4238 = vmul.f32 1.0, %v4237
  %v4239 = vxor.u32 %v4230, 2147483648
  %v4240 = vmul.f32 %v4239, 1.442695
  %v4241 = vpow.pop %v4240
  %v4242 = vadd.f32 %v4241, 1.0
  %v4243 = vrcp.pop %v4242
  %v4244 = vmul.f32 1.0, %v4243
  %v4245 = vtanh.pop %v4231
  %v4246 = vxor.u32 %v4232, 2147483648
  %v4247 = vmul.f32 %v4246, 1.442695
  %v4248 = vpow.pop %v4247
  %v4249 = vadd.f32 %v4248, 1.0
  %v4250 = vrcp.pop %v4249
  %v4251 = vmul.f32 1.0, %v4250
  %v4252 = vld [vmem:[#allocation3] sm:$0xff]
  %v4253 = vmul.f32 %v4244, %v4252
  %v4254 = vmul.f32 %v4238, %v4245
  %v4255 = vadd.f32 %v4253, %v4254
  %v4256 = vtanh.pop %v4255
  %v4257 = vmul.f32 %v4251, %v4256
  %v4258 = vstv %s3945
  %vm4259 = vcmp.gt.s32.totalorder %v70, %v4258
  %v4260 = vsel %vm4259, %v4255, %v4252
  %4261 = vst [vmem:[#allocation3] sm:$0xff] %v4260
  %v4262 = vld [vmem:[#allocation2] sm:$0xff]
  %v4263 = vsel %vm4259, %v4257, %v4262
  %4264 = vst [vmem:[#allocation2] sm:$0xff] %v4263
  %v4265 = vsel %vm4259, %v4257, 0.0
  %s4266 = scalar_lea.vmem %s4, 48
  %4267 = vst [vmem:[%s4266] sm:$0xff] %v4265
  %s4268 = sadd.s32 %s69, 1
  %s4269 = scalar_lea.vmem %s47, 16
  %v4270 = vld [vmem:[%s4269] sm:$0xff]
  %v4271 = vld [vmem:[%s4269 + $0x8] sm:$0xff]
  %v4272 = vunpack.c.l.bf16 %v4270
  %v4273 = vunpack.c.h.bf16 %v4270
  %v4274 = vunpack.c.l.bf16 %v4271
  %v4275 = vunpack.c.h.bf16 %v4271
  %v4276 = vld [vmem:[#allocation4] sm:$0xff]
  %v4277 = vpack.c.bf16 %v4276, %v4276
  %v4278 = vld [vmem:[%s401] sm:$0xff]
  %v4279 = vld [vmem:[%s401 + $0x8] sm:$0xff]
  %v4280 = vld [vmem:[%s401 + $0x10] sm:$0xff]
  %v4281 = vld [vmem:[%s401 + $0x18] sm:$0xff]
  %v4282 = vld [vmem:[%s401 + $0x20] sm:$0xff]
  %v4283 = vld [vmem:[%s401 + $0x28] sm:$0xff]
  %v4284 = vld [vmem:[%s401 + $0x30] sm:$0xff]
  %v4285 = vld [vmem:[%s401 + $0x38] sm:$0xff]
  %v4286 = vld [vmem:[%s401 + $0x40] sm:$0xff]
  %v4287 = vld [vmem:[%s401 + $0x48] sm:$0xff]
  %v4288 = vld [vmem:[%s401 + $0x50] sm:$0xff]
  %v4289 = vld [vmem:[%s401 + $0x58] sm:$0xff]
  %v4290 = vld [vmem:[%s401 + $0x60] sm:$0xff]
  %v4291 = vld [vmem:[%s401 + $0x68] sm:$0xff]
  %v4292 = vld [vmem:[%s401 + $0x70] sm:$0xff]
  %v4293 = vld [vmem:[%s401 + $0x78] sm:$0xff]
  %v4294 = vld [vmem:[%s401 + $0x80] sm:$0xff]
  %v4295 = vld [vmem:[%s401 + $0x88] sm:$0xff]
  %v4296 = vld [vmem:[%s401 + $0x90] sm:$0xff]
  %v4297 = vld [vmem:[%s401 + $0x98] sm:$0xff]
  %v4298 = vld [vmem:[%s401 + $0xa0] sm:$0xff]
  %v4299 = vld [vmem:[%s401 + $0xa8] sm:$0xff]
  %v4300 = vld [vmem:[%s401 + $0xb0] sm:$0xff]
  %v4301 = vld [vmem:[%s401 + $0xb8] sm:$0xff]
  %v4302 = vld [vmem:[%s401 + $0xc0] sm:$0xff]
  %v4303 = vld [vmem:[%s401 + $0xc8] sm:$0xff]
  %v4304 = vld [vmem:[%s401 + $0xd0] sm:$0xff]
  %v4305 = vld [vmem:[%s401 + $0xd8] sm:$0xff]
  %v4306 = vld [vmem:[%s401 + $0xe0] sm:$0xff]
  %v4307 = vld [vmem:[%s401 + $0xe8] sm:$0xff]
  %v4308 = vld [vmem:[%s401 + $0xf0] sm:$0xff]
  %v4309 = vld [vmem:[%s401 + $0xf8] sm:$0xff]
  %v4342 = vunpack.c.l.b16 %v4278
  %v4343 = vunpack.c.h.b16 %v4278
  %v4344 = vunpack.c.l.b16 %v4279
  %v4345 = vunpack.c.h.b16 %v4279
  %v4346 = vunpack.c.l.b16 %v4280
  %v4347 = vunpack.c.h.b16 %v4280
  %v4348 = vunpack.c.l.b16 %v4281
  %v4349 = vunpack.c.h.b16 %v4281
  %v4350 = vunpack.c.l.b16 %v4282
  %v4351 = vunpack.c.h.b16 %v4282
  %v4352 = vunpack.c.l.b16 %v4283
  %v4353 = vunpack.c.h.b16 %v4283
  %v4354 = vunpack.c.l.b16 %v4284
  %v4355 = vunpack.c.h.b16 %v4284
  %v4356 = vunpack.c.l.b16 %v4285
  %v4357 = vunpack.c.h.b16 %v4285
  %v4358 = vunpack.c.l.b16 %v4286
  %v4359 = vunpack.c.h.b16 %v4286
  %v4360 = vunpack.c.l.b16 %v4287
  %v4361 = vunpack.c.h.b16 %v4287
  %v4362 = vunpack.c.l.b16 %v4288
  %v4363 = vunpack.c.h.b16 %v4288
  %v4364 = vunpack.c.l.b16 %v4289
  %v4365 = vunpack.c.h.b16 %v4289
  %v4366 = vunpack.c.l.b16 %v4290
  %v4367 = vunpack.c.h.b16 %v4290
  %v4368 = vunpack.c.l.b16 %v4291
  %v4369 = vunpack.c.h.b16 %v4291
  %v4370 = vunpack.c.l.b16 %v4292
  %v4371 = vunpack.c.h.b16 %v4292
  %v4372 = vunpack.c.l.b16 %v4293
  %v4373 = vunpack.c.h.b16 %v4293
  %v4374 = vunpack.c.l.b16 %v4294
  %v4375 = vunpack.c.h.b16 %v4294
  %v4376 = vunpack.c.l.b16 %v4295
  %v4377 = vunpack.c.h.b16 %v4295
  %v4378 = vunpack.c.l.b16 %v4296
  %v4379 = vunpack.c.h.b16 %v4296
  %v4380 = vunpack.c.l.b16 %v4297
  %v4381 = vunpack.c.h.b16 %v4297
  %v4382 = vunpack.c.l.b16 %v4298
  %v4383 = vunpack.c.h.b16 %v4298
  %v4384 = vunpack.c.l.b16 %v4299
  %v4385 = vunpack.c.h.b16 %v4299
  %v4386 = vunpack.c.l.b16 %v4300
  %v4387 = vunpack.c.h.b16 %v4300
  %v4388 = vunpack.c.l.b16 %v4301
  %v4389 = vunpack.c.h.b16 %v4301
  %v4390 = vunpack.c.l.b16 %v4302
  %v4391 = vunpack.c.h.b16 %v4302
  %v4392 = vunpack.c.l.b16 %v4303
  %v4393 = vunpack.c.h.b16 %v4303
  %v4394 = vunpack.c.l.b16 %v4304
  %v4395 = vunpack.c.h.b16 %v4304
  %v4396 = vunpack.c.l.b16 %v4305
  %v4397 = vunpack.c.h.b16 %v4305
  %v4398 = vunpack.c.l.b16 %v4306
  %v4399 = vunpack.c.h.b16 %v4306
  %v4400 = vunpack.c.l.b16 %v4307
  %v4401 = vunpack.c.h.b16 %v4307
  %v4402 = vunpack.c.l.b16 %v4308
  %v4403 = vunpack.c.h.b16 %v4308
  %v4404 = vunpack.c.l.b16 %v4309
  %v4405 = vunpack.c.h.b16 %v4309
  %v4406 = vpack.c.b16 %v4346, %v4342
  %v4407 = vpack.c.b16 %v4347, %v4343
  %v4408 = vpack.c.b16 %v4348, %v4344
  %v4409 = vpack.c.b16 %v4349, %v4345
  %v4410 = vpack.c.b16 %v4354, %v4350
  %v4411 = vpack.c.b16 %v4355, %v4351
  %v4412 = vpack.c.b16 %v4356, %v4352
  %v4413 = vpack.c.b16 %v4357, %v4353
  %v4414 = vpack.c.b16 %v4362, %v4358
  %v4415 = vpack.c.b16 %v4363, %v4359
  %v4416 = vpack.c.b16 %v4364, %v4360
  %v4417 = vpack.c.b16 %v4365, %v4361
  %v4418 = vpack.c.b16 %v4370, %v4366
  %v4419 = vpack.c.b16 %v4371, %v4367
  %v4420 = vpack.c.b16 %v4372, %v4368
  %v4421 = vpack.c.b16 %v4373, %v4369
  %v4422 = vpack.c.b16 %v4378, %v4374
  %v4423 = vpack.c.b16 %v4379, %v4375
  %v4424 = vpack.c.b16 %v4380, %v4376
  %v4425 = vpack.c.b16 %v4381, %v4377
  %v4426 = vpack.c.b16 %v4386, %v4382
  %v4427 = vpack.c.b16 %v4387, %v4383
  %v4428 = vpack.c.b16 %v4388, %v4384
  %v4429 = vpack.c.b16 %v4389, %v4385
  %v4430 = vpack.c.b16 %v4394, %v4390
  %v4431 = vpack.c.b16 %v4395, %v4391
  %v4432 = vpack.c.b16 %v4396, %v4392
  %v4433 = vpack.c.b16 %v4397, %v4393
  %v4434 = vpack.c.b16 %v4402, %v4398
  %v4435 = vpack.c.b16 %v4403, %v4399
  %v4436 = vpack.c.b16 %v4404, %v4400
  %v4437 = vpack.c.b16 %v4405, %v4401
  %4470 = vmatprep.subr.bf16.mxu0 %v4435
  %4471 = vmatpush1.bf16.msra.mxu0 %v4434
  %4472 = vmatprep.subr.bf16.mxu0 %v4431
  %4473 = vmatpush1.bf16.msra.mxu0 %v4430
  %4474 = vmatprep.subr.bf16.mxu0 %v4427
  %4475 = vmatpush1.bf16.msra.mxu0 %v4426
  %4476 = vmatprep.subr.bf16.mxu0 %v4423
  %4477 = vmatpush1.bf16.msra.mxu0 %v4422
  %4478 = vmatprep.subr.bf16.mxu0 %v4419
  %4479 = vmatpush1.bf16.msra.mxu0 %v4418
  %4480 = vmatprep.subr.bf16.mxu0 %v4415
  %4481 = vmatpush1.bf16.msra.mxu0 %v4414
  %4482 = vmatprep.subr.bf16.mxu0 %v4411
  %4483 = vmatpush1.bf16.msra.mxu0 %v4410
  %4484 = vmatprep.subr.bf16.mxu0 %v4407
  %4485 = vmatpush1.bf16.msra.mxu0 %v4406
  %4486 = vmatprep.subr.bf16.mxu0 0
  %4487 = vmatpush2.bf16.msra.mxu0 0
  %4488 = vmatprep.subr.bf16.mxu0 0
  %4489 = vmatpush2.bf16.msra.mxu0 0
  %4490 = vmatprep.subr.bf16.mxu0 0
  %4491 = vmatpush2.bf16.msra.mxu0 0
  %4492 = vmatprep.subr.bf16.mxu0 0
  %4493 = vmatpush2.bf16.msra.mxu0 0
  %4494 = vmatprep.subr.bf16.mxu0 0
  %4495 = vmatpush2.bf16.msra.mxu0 0
  %4496 = vmatprep.subr.bf16.mxu0 0
  %4497 = vmatpush2.bf16.msra.mxu0 0
  %4498 = vmatprep.subr.bf16.mxu0 0
  %4499 = vmatpush2.bf16.msra.mxu0 0
  %4500 = vmatprep.subr.bf16.mxu0 0
  %4501 = vmatpush2.bf16.msra.mxu0 0
  %4502 = vmatprep.mubr.bf16.mxu0 0
  %4503 = vmatmul.mubr.bf16.gmra.mxu0 %v4277
  %v4504 = vpop.f32.mrf.mxu0
  %v4505 = vadd.f32 0.0, %v4504
  %v4506 = vpop.f32.mrf.mxu0
  %v4507 = vadd.f32 0.0, %v4506
  %v4508 = vpop.f32.mrf.mxu0
  %v4509 = vpop.f32.mrf.mxu0
  %4510 = vdwg.mxu0
  %4511 = vmatprep.subr.bf16.mxu0 %v4437
  %4512 = vmatpush1.bf16.msra.mxu0 %v4436
  %4513 = vmatprep.subr.bf16.mxu0 %v4433
  %4514 = vmatpush1.bf16.msra.mxu0 %v4432
  %4515 = vmatprep.subr.bf16.mxu0 %v4429
  %4516 = vmatpush1.bf16.msra.mxu0 %v4428
  %4517 = vmatprep.subr.bf16.mxu0 %v4425
  %4518 = vmatpush1.bf16.msra.mxu0 %v4424
  %4519 = vmatprep.subr.bf16.mxu0 %v4421
  %4520 = vmatpush1.bf16.msra.mxu0 %v4420
  %4521 = vmatprep.subr.bf16.mxu0 %v4417
  %4522 = vmatpush1.bf16.msra.mxu0 %v4416
  %4523 = vmatprep.subr.bf16.mxu0 %v4413
  %4524 = vmatpush1.bf16.msra.mxu0 %v4412
  %4525 = vmatprep.subr.bf16.mxu0 %v4409
  %4526 = vmatpush1.bf16.msra.mxu0 %v4408
  %4527 = vmatprep.subr.bf16.mxu0 0
  %4528 = vmatpush2.bf16.msra.mxu0 0
  %4529 = vmatprep.subr.bf16.mxu0 0
  %4530 = vmatpush2.bf16.msra.mxu0 0
  %4531 = vmatprep.subr.bf16.mxu0 0
  %4532 = vmatpush2.bf16.msra.mxu0 0
  %4533 = vmatprep.subr.bf16.mxu0 0
  %4534 = vmatpush2.bf16.msra.mxu0 0
  %4535 = vmatprep.subr.bf16.mxu0 0
  %4536 = vmatpush2.bf16.msra.mxu0 0
  %4537 = vmatprep.subr.bf16.mxu0 0
  %4538 = vmatpush2.bf16.msra.mxu0 0
  %4539 = vmatprep.subr.bf16.mxu0 0
  %4540 = vmatpush2.bf16.msra.mxu0 0
  %4541 = vmatprep.subr.bf16.mxu0 0
  %4542 = vmatpush2.bf16.msra.mxu0 0
  %4543 = vmatprep.mubr.bf16.mxu0 0
  %4544 = vmatmul.mubr.bf16.gmra.mxu0 %v4277
  %v4545 = vpop.f32.mrf.mxu0
  %v4546 = vadd.f32 0.0, %v4545
  %v4547 = vpop.f32.mrf.mxu0
  %v4548 = vadd.f32 0.0, %v4547
  %v4549 = vpop.f32.mrf.mxu0
  %v4550 = vpop.f32.mrf.mxu0
  %4551 = vdwg.mxu0
  %v4552 = vadd.f32 %v4272, %v4505
  %v4553 = vadd.f32 %v4273, %v4507
  %v4554 = vadd.f32 %v4274, %v4546
  %v4555 = vadd.f32 %v4275, %v4548
  %v4556 = vxor.u32 %v4552, 2147483648
  %v4557 = vmul.f32 %v4556, 1.442695
  %v4558 = vpow.pop %v4557
  %v4559 = vadd.f32 %v4558, 1.0
  %v4560 = vrcp.pop %v4559
  %v4561 = vmul.f32 1.0, %v4560
  %v4562 = vxor.u32 %v4553, 2147483648
  %v4563 = vmul.f32 %v4562, 1.442695
  %v4564 = vpow.pop %v4563
  %v4565 = vadd.f32 %v4564, 1.0
  %v4566 = vrcp.pop %v4565
  %v4567 = vmul.f32 1.0, %v4566
  %v4568 = vtanh.pop %v4554
  %v4569 = vxor.u32 %v4555, 2147483648
  %v4570 = vmul.f32 %v4569, 1.442695
  %v4571 = vpow.pop %v4570
  %v4572 = vadd.f32 %v4571, 1.0
  %v4573 = vrcp.pop %v4572
  %v4574 = vmul.f32 1.0, %v4573
  %v4575 = vld [vmem:[#allocation5] sm:$0xff]
  %v4576 = vmul.f32 %v4567, %v4575
  %v4577 = vmul.f32 %v4561, %v4568
  %v4578 = vadd.f32 %v4576, %v4577
  %v4579 = vtanh.pop %v4578
  %v4580 = vmul.f32 %v4574, %v4579
  %v4581 = vstv %s4268
  %vm4582 = vcmp.gt.s32.totalorder %v70, %v4581
  %v4583 = vsel %vm4582, %v4578, %v4575
  %4584 = vst [vmem:[#allocation5] sm:$0xff] %v4583
  %v4585 = vld [vmem:[#allocation4] sm:$0xff]
  %v4586 = vsel %vm4582, %v4580, %v4585
  %4587 = vst [vmem:[#allocation4] sm:$0xff] %v4586
  %v4588 = vsel %vm4582, %v4580, 0.0
  %s4589 = scalar_lea.vmem %s55, 8
  %4590 = vst [vmem:[%s4589] sm:$0xff] %v4588
  %s4591 = sadd.s32 %s67, 7
  %s4592 = scalar_lea.vmem %s1, 112
  %v4593 = vld [vmem:[%s4592] sm:$0xff]
  %v4594 = vld [vmem:[%s4592 + $0x8] sm:$0xff]
  %v4595 = vunpack.c.l.bf16 %v4593
  %v4596 = vunpack.c.h.bf16 %v4593
  %v4597 = vunpack.c.l.bf16 %v4594
  %v4598 = vunpack.c.h.bf16 %v4594
  %v4599 = vld [vmem:[#allocation2] sm:$0xff]
  %v4600 = vpack.c.bf16 %v4599, %v4599
  %v4601 = vld [vmem:[%s3] sm:$0xff]
  %v4602 = vld [vmem:[%s3 + $0x8] sm:$0xff]
  %v4603 = vld [vmem:[%s3 + $0x10] sm:$0xff]
  %v4604 = vld [vmem:[%s3 + $0x18] sm:$0xff]
  %v4605 = vld [vmem:[%s3 + $0x20] sm:$0xff]
  %v4606 = vld [vmem:[%s3 + $0x28] sm:$0xff]
  %v4607 = vld [vmem:[%s3 + $0x30] sm:$0xff]
  %v4608 = vld [vmem:[%s3 + $0x38] sm:$0xff]
  %v4609 = vld [vmem:[%s3 + $0x40] sm:$0xff]
  %v4610 = vld [vmem:[%s3 + $0x48] sm:$0xff]
  %v4611 = vld [vmem:[%s3 + $0x50] sm:$0xff]
  %v4612 = vld [vmem:[%s3 + $0x58] sm:$0xff]
  %v4613 = vld [vmem:[%s3 + $0x60] sm:$0xff]
  %v4614 = vld [vmem:[%s3 + $0x68] sm:$0xff]
  %v4615 = vld [vmem:[%s3 + $0x70] sm:$0xff]
  %v4616 = vld [vmem:[%s3 + $0x78] sm:$0xff]
  %v4617 = vld [vmem:[%s3 + $0x80] sm:$0xff]
  %v4618 = vld [vmem:[%s3 + $0x88] sm:$0xff]
  %v4619 = vld [vmem:[%s3 + $0x90] sm:$0xff]
  %v4620 = vld [vmem:[%s3 + $0x98] sm:$0xff]
  %v4621 = vld [vmem:[%s3 + $0xa0] sm:$0xff]
  %v4622 = vld [vmem:[%s3 + $0xa8] sm:$0xff]
  %v4623 = vld [vmem:[%s3 + $0xb0] sm:$0xff]
  %v4624 = vld [vmem:[%s3 + $0xb8] sm:$0xff]
  %v4625 = vld [vmem:[%s3 + $0xc0] sm:$0xff]
  %v4626 = vld [vmem:[%s3 + $0xc8] sm:$0xff]
  %v4627 = vld [vmem:[%s3 + $0xd0] sm:$0xff]
  %v4628 = vld [vmem:[%s3 + $0xd8] sm:$0xff]
  %v4629 = vld [vmem:[%s3 + $0xe0] sm:$0xff]
  %v4630 = vld [vmem:[%s3 + $0xe8] sm:$0xff]
  %v4631 = vld [vmem:[%s3 + $0xf0] sm:$0xff]
  %v4632 = vld [vmem:[%s3 + $0xf8] sm:$0xff]
  %v4665 = vunpack.c.l.b16 %v4601
  %v4666 = vunpack.c.h.b16 %v4601
  %v4667 = vunpack.c.l.b16 %v4602
  %v4668 = vunpack.c.h.b16 %v4602
  %v4669 = vunpack.c.l.b16 %v4603
  %v4670 = vunpack.c.h.b16 %v4603
  %v4671 = vunpack.c.l.b16 %v4604
  %v4672 = vunpack.c.h.b16 %v4604
  %v4673 = vunpack.c.l.b16 %v4605
  %v4674 = vunpack.c.h.b16 %v4605
  %v4675 = vunpack.c.l.b16 %v4606
  %v4676 = vunpack.c.h.b16 %v4606
  %v4677 = vunpack.c.l.b16 %v4607
  %v4678 = vunpack.c.h.b16 %v4607
  %v4679 = vunpack.c.l.b16 %v4608
  %v4680 = vunpack.c.h.b16 %v4608
  %v4681 = vunpack.c.l.b16 %v4609
  %v4682 = vunpack.c.h.b16 %v4609
  %v4683 = vunpack.c.l.b16 %v4610
  %v4684 = vunpack.c.h.b16 %v4610
  %v4685 = vunpack.c.l.b16 %v4611
  %v4686 = vunpack.c.h.b16 %v4611
  %v4687 = vunpack.c.l.b16 %v4612
  %v4688 = vunpack.c.h.b16 %v4612
  %v4689 = vunpack.c.l.b16 %v4613
  %v4690 = vunpack.c.h.b16 %v4613
  %v4691 = vunpack.c.l.b16 %v4614
  %v4692 = vunpack.c.h.b16 %v4614
  %v4693 = vunpack.c.l.b16 %v4615
  %v4694 = vunpack.c.h.b16 %v4615
  %v4695 = vunpack.c.l.b16 %v4616
  %v4696 = vunpack.c.h.b16 %v4616
  %v4697 = vunpack.c.l.b16 %v4617
  %v4698 = vunpack.c.h.b16 %v4617
  %v4699 = vunpack.c.l.b16 %v4618
  %v4700 = vunpack.c.h.b16 %v4618
  %v4701 = vunpack.c.l.b16 %v4619
  %v4702 = vunpack.c.h.b16 %v4619
  %v4703 = vunpack.c.l.b16 %v4620
  %v4704 = vunpack.c.h.b16 %v4620
  %v4705 = vunpack.c.l.b16 %v4621
  %v4706 = vunpack.c.h.b16 %v4621
  %v4707 = vunpack.c.l.b16 %v4622
  %v4708 = vunpack.c.h.b16 %v4622
  %v4709 = vunpack.c.l.b16 %v4623
  %v4710 = vunpack.c.h.b16 %v4623
  %v4711 = vunpack.c.l.b16 %v4624
  %v4712 = vunpack.c.h.b16 %v4624
  %v4713 = vunpack.c.l.b16 %v4625
  %v4714 = vunpack.c.h.b16 %v4625
  %v4715 = vunpack.c.l.b16 %v4626
  %v4716 = vunpack.c.h.b16 %v4626
  %v4717 = vunpack.c.l.b16 %v4627
  %v4718 = vunpack.c.h.b16 %v4627
  %v4719 = vunpack.c.l.b16 %v4628
  %v4720 = vunpack.c.h.b16 %v4628
  %v4721 = vunpack.c.l.b16 %v4629
  %v4722 = vunpack.c.h.b16 %v4629
  %v4723 = vunpack.c.l.b16 %v4630
  %v4724 = vunpack.c.h.b16 %v4630
  %v4725 = vunpack.c.l.b16 %v4631
  %v4726 = vunpack.c.h.b16 %v4631
  %v4727 = vunpack.c.l.b16 %v4632
  %v4728 = vunpack.c.h.b16 %v4632
  %v4729 = vpack.c.b16 %v4669, %v4665
  %v4730 = vpack.c.b16 %v4670, %v4666
  %v4731 = vpack.c.b16 %v4671, %v4667
  %v4732 = vpack.c.b16 %v4672, %v4668
  %v4733 = vpack.c.b16 %v4677, %v4673
  %v4734 = vpack.c.b16 %v4678, %v4674
  %v4735 = vpack.c.b16 %v4679, %v4675
  %v4736 = vpack.c.b16 %v4680, %v4676
  %v4737 = vpack.c.b16 %v4685, %v4681
  %v4738 = vpack.c.b16 %v4686, %v4682
  %v4739 = vpack.c.b16 %v4687, %v4683
  %v4740 = vpack.c.b16 %v4688, %v4684
  %v4741 = vpack.c.b16 %v4693, %v4689
  %v4742 = vpack.c.b16 %v4694, %v4690
  %v4743 = vpack.c.b16 %v4695, %v4691
  %v4744 = vpack.c.b16 %v4696, %v4692
  %v4745 = vpack.c.b16 %v4701, %v4697
  %v4746 = vpack.c.b16 %v4702, %v4698
  %v4747 = vpack.c.b16 %v4703, %v4699
  %v4748 = vpack.c.b16 %v4704, %v4700
  %v4749 = vpack.c.b16 %v4709, %v4705
  %v4750 = vpack.c.b16 %v4710, %v4706
  %v4751 = vpack.c.b16 %v4711, %v4707
  %v4752 = vpack.c.b16 %v4712, %v4708
  %v4753 = vpack.c.b16 %v4717, %v4713
  %v4754 = vpack.c.b16 %v4718, %v4714
  %v4755 = vpack.c.b16 %v4719, %v4715
  %v4756 = vpack.c.b16 %v4720, %v4716
  %v4757 = vpack.c.b16 %v4725, %v4721
  %v4758 = vpack.c.b16 %v4726, %v4722
  %v4759 = vpack.c.b16 %v4727, %v4723
  %v4760 = vpack.c.b16 %v4728, %v4724
  %4793 = vmatprep.subr.bf16.mxu0 %v4758
  %4794 = vmatpush1.bf16.msra.mxu0 %v4757
  %4795 = vmatprep.subr.bf16.mxu0 %v4754
  %4796 = vmatpush1.bf16.msra.mxu0 %v4753
  %4797 = vmatprep.subr.bf16.mxu0 %v4750
  %4798 = vmatpush1.bf16.msra.mxu0 %v4749
  %4799 = vmatprep.subr.bf16.mxu0 %v4746
  %4800 = vmatpush1.bf16.msra.mxu0 %v4745
  %4801 = vmatprep.subr.bf16.mxu0 %v4742
  %4802 = vmatpush1.bf16.msra.mxu0 %v4741
  %4803 = vmatprep.subr.bf16.mxu0 %v4738
  %4804 = vmatpush1.bf16.msra.mxu0 %v4737
  %4805 = vmatprep.subr.bf16.mxu0 %v4734
  %4806 = vmatpush1.bf16.msra.mxu0 %v4733
  %4807 = vmatprep.subr.bf16.mxu0 %v4730
  %4808 = vmatpush1.bf16.msra.mxu0 %v4729
  %4809 = vmatprep.subr.bf16.mxu0 0
  %4810 = vmatpush2.bf16.msra.mxu0 0
  %4811 = vmatprep.subr.bf16.mxu0 0
  %4812 = vmatpush2.bf16.msra.mxu0 0
  %4813 = vmatprep.subr.bf16.mxu0 0
  %4814 = vmatpush2.bf16.msra.mxu0 0
  %4815 = vmatprep.subr.bf16.mxu0 0
  %4816 = vmatpush2.bf16.msra.mxu0 0
  %4817 = vmatprep.subr.bf16.mxu0 0
  %4818 = vmatpush2.bf16.msra.mxu0 0
  %4819 = vmatprep.subr.bf16.mxu0 0
  %4820 = vmatpush2.bf16.msra.mxu0 0
  %4821 = vmatprep.subr.bf16.mxu0 0
  %4822 = vmatpush2.bf16.msra.mxu0 0
  %4823 = vmatprep.subr.bf16.mxu0 0
  %4824 = vmatpush2.bf16.msra.mxu0 0
  %4825 = vmatprep.mubr.bf16.mxu0 0
  %4826 = vmatmul.mubr.bf16.gmra.mxu0 %v4600
  %v4827 = vpop.f32.mrf.mxu0
  %v4828 = vadd.f32 0.0, %v4827
  %v4829 = vpop.f32.mrf.mxu0
  %v4830 = vadd.f32 0.0, %v4829
  %v4831 = vpop.f32.mrf.mxu0
  %v4832 = vpop.f32.mrf.mxu0
  %4833 = vdwg.mxu0
  %4834 = vmatprep.subr.bf16.mxu0 %v4760
  %4835 = vmatpush1.bf16.msra.mxu0 %v4759
  %4836 = vmatprep.subr.bf16.mxu0 %v4756
  %4837 = vmatpush1.bf16.msra.mxu0 %v4755
  %4838 = vmatprep.subr.bf16.mxu0 %v4752
  %4839 = vmatpush1.bf16.msra.mxu0 %v4751
  %4840 = vmatprep.subr.bf16.mxu0 %v4748
  %4841 = vmatpush1.bf16.msra.mxu0 %v4747
  %4842 = vmatprep.subr.bf16.mxu0 %v4744
  %4843 = vmatpush1.bf16.msra.mxu0 %v4743
  %4844 = vmatprep.subr.bf16.mxu0 %v4740
  %4845 = vmatpush1.bf16.msra.mxu0 %v4739
  %4846 = vmatprep.subr.bf16.mxu0 %v4736
  %4847 = vmatpush1.bf16.msra.mxu0 %v4735
  %4848 = vmatprep.subr.bf16.mxu0 %v4732
  %4849 = vmatpush1.bf16.msra.mxu0 %v4731
  %4850 = vmatprep.subr.bf16.mxu0 0
  %4851 = vmatpush2.bf16.msra.mxu0 0
  %4852 = vmatprep.subr.bf16.mxu0 0
  %4853 = vmatpush2.bf16.msra.mxu0 0
  %4854 = vmatprep.subr.bf16.mxu0 0
  %4855 = vmatpush2.bf16.msra.mxu0 0
  %4856 = vmatprep.subr.bf16.mxu0 0
  %4857 = vmatpush2.bf16.msra.mxu0 0
  %4858 = vmatprep.subr.bf16.mxu0 0
  %4859 = vmatpush2.bf16.msra.mxu0 0
  %4860 = vmatprep.subr.bf16.mxu0 0
  %4861 = vmatpush2.bf16.msra.mxu0 0
  %4862 = vmatprep.subr.bf16.mxu0 0
  %4863 = vmatpush2.bf16.msra.mxu0 0
  %4864 = vmatprep.subr.bf16.mxu0 0
  %4865 = vmatpush2.bf16.msra.mxu0 0
  %4866 = vmatprep.mubr.bf16.mxu0 0
  %4867 = vmatmul.mubr.bf16.gmra.mxu0 %v4600
  %v4868 = vpop.f32.mrf.mxu0
  %v4869 = vadd.f32 0.0, %v4868
  %v4870 = vpop.f32.mrf.mxu0
  %v4871 = vadd.f32 0.0, %v4870
  %v4872 = vpop.f32.mrf.mxu0
  %v4873 = vpop.f32.mrf.mxu0
  %4874 = vdwg.mxu0
  %v4875 = vadd.f32 %v4595, %v4828
  %v4876 = vadd.f32 %v4596, %v4830
  %v4877 = vadd.f32 %v4597, %v4869
  %v4878 = vadd.f32 %v4598, %v4871
  %v4879 = vxor.u32 %v4875, 2147483648
  %v4880 = vmul.f32 %v4879, 1.442695
  %v4881 = vpow.pop %v4880
  %v4882 = vadd.f32 %v4881, 1.0
  %v4883 = vrcp.pop %v4882
  %v4884 = vmul.f32 1.0, %v4883
  %v4885 = vxor.u32 %v4876, 2147483648
  %v4886 = vmul.f32 %v4885, 1.442695
  %v4887 = vpow.pop %v4886
  %v4888 = vadd.f32 %v4887, 1.0
  %v4889 = vrcp.pop %v4888
  %v4890 = vmul.f32 1.0, %v4889
  %v4891 = vtanh.pop %v4877
  %v4892 = vxor.u32 %v4878, 2147483648
  %v4893 = vmul.f32 %v4892, 1.442695
  %v4894 = vpow.pop %v4893
  %v4895 = vadd.f32 %v4894, 1.0
  %v4896 = vrcp.pop %v4895
  %v4897 = vmul.f32 1.0, %v4896
  %v4898 = vld [vmem:[#allocation3] sm:$0xff]
  %v4899 = vmul.f32 %v4890, %v4898
  %v4900 = vmul.f32 %v4884, %v4891
  %v4901 = vadd.f32 %v4899, %v4900
  %v4902 = vtanh.pop %v4901
  %v4903 = vmul.f32 %v4897, %v4902
  %v4904 = vstv %s4591
  %vm4905 = vcmp.gt.s32.totalorder %v70, %v4904
  %v4906 = vsel %vm4905, %v4901, %v4898
  %4907 = vst [vmem:[#allocation3] sm:$0xff] %v4906
  %v4908 = vld [vmem:[#allocation2] sm:$0xff]
  %v4909 = vsel %vm4905, %v4903, %v4908
  %4910 = vst [vmem:[#allocation2] sm:$0xff] %v4909
  %v4911 = vsel %vm4905, %v4903, 0.0
  %s4912 = scalar_lea.vmem %s4, 56
  %4913 = vst [vmem:[%s4912] sm:$0xff] %v4911
  %v4914 = vld [vmem:[%s47] sm:$0xff]
  %v4915 = vld [vmem:[%s47 + $0x8] sm:$0xff]
  %v4916 = vunpack.c.l.bf16 %v4914
  %v4917 = vunpack.c.h.bf16 %v4914
  %v4918 = vunpack.c.l.bf16 %v4915
  %v4919 = vunpack.c.h.bf16 %v4915
  %v4920 = vld [vmem:[#allocation4] sm:$0xff]
  %v4921 = vpack.c.bf16 %v4920, %v4920
  %v4922 = vld [vmem:[%s401] sm:$0xff]
  %v4923 = vld [vmem:[%s401 + $0x8] sm:$0xff]
  %v4924 = vld [vmem:[%s401 + $0x10] sm:$0xff]
  %v4925 = vld [vmem:[%s401 + $0x18] sm:$0xff]
  %v4926 = vld [vmem:[%s401 + $0x20] sm:$0xff]
  %v4927 = vld [vmem:[%s401 + $0x28] sm:$0xff]
  %v4928 = vld [vmem:[%s401 + $0x30] sm:$0xff]
  %v4929 = vld [vmem:[%s401 + $0x38] sm:$0xff]
  %v4930 = vld [vmem:[%s401 + $0x40] sm:$0xff]
  %v4931 = vld [vmem:[%s401 + $0x48] sm:$0xff]
  %v4932 = vld [vmem:[%s401 + $0x50] sm:$0xff]
  %v4933 = vld [vmem:[%s401 + $0x58] sm:$0xff]
  %v4934 = vld [vmem:[%s401 + $0x60] sm:$0xff]
  %v4935 = vld [vmem:[%s401 + $0x68] sm:$0xff]
  %v4936 = vld [vmem:[%s401 + $0x70] sm:$0xff]
  %v4937 = vld [vmem:[%s401 + $0x78] sm:$0xff]
  %v4938 = vld [vmem:[%s401 + $0x80] sm:$0xff]
  %v4939 = vld [vmem:[%s401 + $0x88] sm:$0xff]
  %v4940 = vld [vmem:[%s401 + $0x90] sm:$0xff]
  %v4941 = vld [vmem:[%s401 + $0x98] sm:$0xff]
  %v4942 = vld [vmem:[%s401 + $0xa0] sm:$0xff]
  %v4943 = vld [vmem:[%s401 + $0xa8] sm:$0xff]
  %v4944 = vld [vmem:[%s401 + $0xb0] sm:$0xff]
  %v4945 = vld [vmem:[%s401 + $0xb8] sm:$0xff]
  %v4946 = vld [vmem:[%s401 + $0xc0] sm:$0xff]
  %v4947 = vld [vmem:[%s401 + $0xc8] sm:$0xff]
  %v4948 = vld [vmem:[%s401 + $0xd0] sm:$0xff]
  %v4949 = vld [vmem:[%s401 + $0xd8] sm:$0xff]
  %v4950 = vld [vmem:[%s401 + $0xe0] sm:$0xff]
  %v4951 = vld [vmem:[%s401 + $0xe8] sm:$0xff]
  %v4952 = vld [vmem:[%s401 + $0xf0] sm:$0xff]
  %v4953 = vld [vmem:[%s401 + $0xf8] sm:$0xff]
  %v4986 = vunpack.c.l.b16 %v4922
  %v4987 = vunpack.c.h.b16 %v4922
  %v4988 = vunpack.c.l.b16 %v4923
  %v4989 = vunpack.c.h.b16 %v4923
  %v4990 = vunpack.c.l.b16 %v4924
  %v4991 = vunpack.c.h.b16 %v4924
  %v4992 = vunpack.c.l.b16 %v4925
  %v4993 = vunpack.c.h.b16 %v4925
  %v4994 = vunpack.c.l.b16 %v4926
  %v4995 = vunpack.c.h.b16 %v4926
  %v4996 = vunpack.c.l.b16 %v4927
  %v4997 = vunpack.c.h.b16 %v4927
  %v4998 = vunpack.c.l.b16 %v4928
  %v4999 = vunpack.c.h.b16 %v4928
  %v5000 = vunpack.c.l.b16 %v4929
  %v5001 = vunpack.c.h.b16 %v4929
  %v5002 = vunpack.c.l.b16 %v4930
  %v5003 = vunpack.c.h.b16 %v4930
  %v5004 = vunpack.c.l.b16 %v4931
  %v5005 = vunpack.c.h.b16 %v4931
  %v5006 = vunpack.c.l.b16 %v4932
  %v5007 = vunpack.c.h.b16 %v4932
  %v5008 = vunpack.c.l.b16 %v4933
  %v5009 = vunpack.c.h.b16 %v4933
  %v5010 = vunpack.c.l.b16 %v4934
  %v5011 = vunpack.c.h.b16 %v4934
  %v5012 = vunpack.c.l.b16 %v4935
  %v5013 = vunpack.c.h.b16 %v4935
  %v5014 = vunpack.c.l.b16 %v4936
  %v5015 = vunpack.c.h.b16 %v4936
  %v5016 = vunpack.c.l.b16 %v4937
  %v5017 = vunpack.c.h.b16 %v4937
  %v5018 = vunpack.c.l.b16 %v4938
  %v5019 = vunpack.c.h.b16 %v4938
  %v5020 = vunpack.c.l.b16 %v4939
  %v5021 = vunpack.c.h.b16 %v4939
  %v5022 = vunpack.c.l.b16 %v4940
  %v5023 = vunpack.c.h.b16 %v4940
  %v5024 = vunpack.c.l.b16 %v4941
  %v5025 = vunpack.c.h.b16 %v4941
  %v5026 = vunpack.c.l.b16 %v4942
  %v5027 = vunpack.c.h.b16 %v4942
  %v5028 = vunpack.c.l.b16 %v4943
  %v5029 = vunpack.c.h.b16 %v4943
  %v5030 = vunpack.c.l.b16 %v4944
  %v5031 = vunpack.c.h.b16 %v4944
  %v5032 = vunpack.c.l.b16 %v4945
  %v5033 = vunpack.c.h.b16 %v4945
  %v5034 = vunpack.c.l.b16 %v4946
  %v5035 = vunpack.c.h.b16 %v4946
  %v5036 = vunpack.c.l.b16 %v4947
  %v5037 = vunpack.c.h.b16 %v4947
  %v5038 = vunpack.c.l.b16 %v4948
  %v5039 = vunpack.c.h.b16 %v4948
  %v5040 = vunpack.c.l.b16 %v4949
  %v5041 = vunpack.c.h.b16 %v4949
  %v5042 = vunpack.c.l.b16 %v4950
  %v5043 = vunpack.c.h.b16 %v4950
  %v5044 = vunpack.c.l.b16 %v4951
  %v5045 = vunpack.c.h.b16 %v4951
  %v5046 = vunpack.c.l.b16 %v4952
  %v5047 = vunpack.c.h.b16 %v4952
  %v5048 = vunpack.c.l.b16 %v4953
  %v5049 = vunpack.c.h.b16 %v4953
  %v5050 = vpack.c.b16 %v4990, %v4986
  %v5051 = vpack.c.b16 %v4991, %v4987
  %v5052 = vpack.c.b16 %v4992, %v4988
  %v5053 = vpack.c.b16 %v4993, %v4989
  %v5054 = vpack.c.b16 %v4998, %v4994
  %v5055 = vpack.c.b16 %v4999, %v4995
  %v5056 = vpack.c.b16 %v5000, %v4996
  %v5057 = vpack.c.b16 %v5001, %v4997
  %v5058 = vpack.c.b16 %v5006, %v5002
  %v5059 = vpack.c.b16 %v5007, %v5003
  %v5060 = vpack.c.b16 %v5008, %v5004
  %v5061 = vpack.c.b16 %v5009, %v5005
  %v5062 = vpack.c.b16 %v5014, %v5010
  %v5063 = vpack.c.b16 %v5015, %v5011
  %v5064 = vpack.c.b16 %v5016, %v5012
  %v5065 = vpack.c.b16 %v5017, %v5013
  %v5066 = vpack.c.b16 %v5022, %v5018
  %v5067 = vpack.c.b16 %v5023, %v5019
  %v5068 = vpack.c.b16 %v5024, %v5020
  %v5069 = vpack.c.b16 %v5025, %v5021
  %v5070 = vpack.c.b16 %v5030, %v5026
  %v5071 = vpack.c.b16 %v5031, %v5027
  %v5072 = vpack.c.b16 %v5032, %v5028
  %v5073 = vpack.c.b16 %v5033, %v5029
  %v5074 = vpack.c.b16 %v5038, %v5034
  %v5075 = vpack.c.b16 %v5039, %v5035
  %v5076 = vpack.c.b16 %v5040, %v5036
  %v5077 = vpack.c.b16 %v5041, %v5037
  %v5078 = vpack.c.b16 %v5046, %v5042
  %v5079 = vpack.c.b16 %v5047, %v5043
  %v5080 = vpack.c.b16 %v5048, %v5044
  %v5081 = vpack.c.b16 %v5049, %v5045
  %5114 = vmatprep.subr.bf16.mxu0 %v5079
  %5115 = vmatpush1.bf16.msra.mxu0 %v5078
  %5116 = vmatprep.subr.bf16.mxu0 %v5075
  %5117 = vmatpush1.bf16.msra.mxu0 %v5074
  %5118 = vmatprep.subr.bf16.mxu0 %v5071
  %5119 = vmatpush1.bf16.msra.mxu0 %v5070
  %5120 = vmatprep.subr.bf16.mxu0 %v5067
  %5121 = vmatpush1.bf16.msra.mxu0 %v5066
  %5122 = vmatprep.subr.bf16.mxu0 %v5063
  %5123 = vmatpush1.bf16.msra.mxu0 %v5062
  %5124 = vmatprep.subr.bf16.mxu0 %v5059
  %5125 = vmatpush1.bf16.msra.mxu0 %v5058
  %5126 = vmatprep.subr.bf16.mxu0 %v5055
  %5127 = vmatpush1.bf16.msra.mxu0 %v5054
  %5128 = vmatprep.subr.bf16.mxu0 %v5051
  %5129 = vmatpush1.bf16.msra.mxu0 %v5050
  %5130 = vmatprep.subr.bf16.mxu0 0
  %5131 = vmatpush2.bf16.msra.mxu0 0
  %5132 = vmatprep.subr.bf16.mxu0 0
  %5133 = vmatpush2.bf16.msra.mxu0 0
  %5134 = vmatprep.subr.bf16.mxu0 0
  %5135 = vmatpush2.bf16.msra.mxu0 0
  %5136 = vmatprep.subr.bf16.mxu0 0
  %5137 = vmatpush2.bf16.msra.mxu0 0
  %5138 = vmatprep.subr.bf16.mxu0 0
  %5139 = vmatpush2.bf16.msra.mxu0 0
  %5140 = vmatprep.subr.bf16.mxu0 0
  %5141 = vmatpush2.bf16.msra.mxu0 0
  %5142 = vmatprep.subr.bf16.mxu0 0
  %5143 = vmatpush2.bf16.msra.mxu0 0
  %5144 = vmatprep.subr.bf16.mxu0 0
  %5145 = vmatpush2.bf16.msra.mxu0 0
  %5146 = vmatprep.mubr.bf16.mxu0 0
  %5147 = vmatmul.mubr.bf16.gmra.mxu0 %v4921
  %v5148 = vpop.f32.mrf.mxu0
  %v5149 = vadd.f32 0.0, %v5148
  %v5150 = vpop.f32.mrf.mxu0
  %v5151 = vadd.f32 0.0, %v5150
  %v5152 = vpop.f32.mrf.mxu0
  %v5153 = vpop.f32.mrf.mxu0
  %5154 = vdwg.mxu0
  %5155 = vmatprep.subr.bf16.mxu0 %v5081
  %5156 = vmatpush1.bf16.msra.mxu0 %v5080
  %5157 = vmatprep.subr.bf16.mxu0 %v5077
  %5158 = vmatpush1.bf16.msra.mxu0 %v5076
  %5159 = vmatprep.subr.bf16.mxu0 %v5073
  %5160 = vmatpush1.bf16.msra.mxu0 %v5072
  %5161 = vmatprep.subr.bf16.mxu0 %v5069
  %5162 = vmatpush1.bf16.msra.mxu0 %v5068
  %5163 = vmatprep.subr.bf16.mxu0 %v5065
  %5164 = vmatpush1.bf16.msra.mxu0 %v5064
  %5165 = vmatprep.subr.bf16.mxu0 %v5061
  %5166 = vmatpush1.bf16.msra.mxu0 %v5060
  %5167 = vmatprep.subr.bf16.mxu0 %v5057
  %5168 = vmatpush1.bf16.msra.mxu0 %v5056
  %5169 = vmatprep.subr.bf16.mxu0 %v5053
  %5170 = vmatpush1.bf16.msra.mxu0 %v5052
  %5171 = vmatprep.subr.bf16.mxu0 0
  %5172 = vmatpush2.bf16.msra.mxu0 0
  %5173 = vmatprep.subr.bf16.mxu0 0
  %5174 = vmatpush2.bf16.msra.mxu0 0
  %5175 = vmatprep.subr.bf16.mxu0 0
  %5176 = vmatpush2.bf16.msra.mxu0 0
  %5177 = vmatprep.subr.bf16.mxu0 0
  %5178 = vmatpush2.bf16.msra.mxu0 0
  %5179 = vmatprep.subr.bf16.mxu0 0
  %5180 = vmatpush2.bf16.msra.mxu0 0
  %5181 = vmatprep.subr.bf16.mxu0 0
  %5182 = vmatpush2.bf16.msra.mxu0 0
  %5183 = vmatprep.subr.bf16.mxu0 0
  %5184 = vmatpush2.bf16.msra.mxu0 0
  %5185 = vmatprep.subr.bf16.mxu0 0
  %5186 = vmatpush2.bf16.msra.mxu0 0
  %5187 = vmatprep.mubr.bf16.mxu0 0
  %5188 = vmatmul.mubr.bf16.gmra.mxu0 %v4921
  %v5189 = vpop.f32.mrf.mxu0
  %v5190 = vadd.f32 0.0, %v5189
  %v5191 = vpop.f32.mrf.mxu0
  %v5192 = vadd.f32 0.0, %v5191
  %v5193 = vpop.f32.mrf.mxu0
  %v5194 = vpop.f32.mrf.mxu0
  %5195 = vdwg.mxu0
  %v5196 = vadd.f32 %v4916, %v5149
  %v5197 = vadd.f32 %v4917, %v5151
  %v5198 = vadd.f32 %v4918, %v5190
  %v5199 = vadd.f32 %v4919, %v5192
  %v5200 = vxor.u32 %v5196, 2147483648
  %v5201 = vmul.f32 %v5200, 1.442695
  %v5202 = vpow.pop %v5201
  %v5203 = vadd.f32 %v5202, 1.0
  %v5204 = vrcp.pop %v5203
  %v5205 = vmul.f32 1.0, %v5204
  %v5206 = vxor.u32 %v5197, 2147483648
  %v5207 = vmul.f32 %v5206, 1.442695
  %v5208 = vpow.pop %v5207
  %v5209 = vadd.f32 %v5208, 1.0
  %v5210 = vrcp.pop %v5209
  %v5211 = vmul.f32 1.0, %v5210
  %v5212 = vtanh.pop %v5198
  %v5213 = vxor.u32 %v5199, 2147483648
  %v5214 = vmul.f32 %v5213, 1.442695
  %v5215 = vpow.pop %v5214
  %v5216 = vadd.f32 %v5215, 1.0
  %v5217 = vrcp.pop %v5216
  %v5218 = vmul.f32 1.0, %v5217
  %v5219 = vld [vmem:[#allocation5] sm:$0xff]
  %v5220 = vmul.f32 %v5211, %v5219
  %v5221 = vmul.f32 %v5205, %v5212
  %v5222 = vadd.f32 %v5220, %v5221
  %v5223 = vtanh.pop %v5222
  %v5224 = vmul.f32 %v5218, %v5223
  %v5225 = vstv %s69
  %vm5226 = vcmp.gt.s32.totalorder %v70, %v5225
  %v5227 = vsel %vm5226, %v5222, %v5219
  %5228 = vst [vmem:[#allocation5] sm:$0xff] %v5227
  %v5229 = vld [vmem:[#allocation4] sm:$0xff]
  %v5230 = vsel %vm5226, %v5224, %v5229
  %5231 = vst [vmem:[#allocation4] sm:$0xff] %v5230
  %v5232 = vsel %vm5226, %v5224, 0.0
  %5233 = vst [vmem:[%s55] sm:$0xff] %v5232
  %s5234 = ssub.s32 0, 0
  %s5235 = smul.u32 8, %s5234
  %p5236 = scmp.lt.s32.totalorder %s5235, 7
  %s5237 = scalar_select %p5236, %s5235, 7
  %s5238 = smul.addr %s5237, 8
  %s5239 = scalar_lea.vmem %s5, %s5238
  // Predicated region
  $region22: #{mtlstm_forward.2} parent=0 // pred_check
    _
  $region23: #{mtlstm_forward.2} parent=0 // pred_check_branch
    %5241 = sbr.rel (0) target = $region25
  $region24: #{mtlstm_forward.2} parent=0 // pred_region
    _
  $region25: #{mtlstm_forward.2} parent=0 // pred_fallthru
    _
  // Predicated region
  $region26: #{mtlstm_forward.2} parent=0 // pred_check
    _
  $region27: #{mtlstm_forward.2} parent=0 // pred_check_branch
    %5243 = sbr.rel (0) target = $region29
  $region28: #{mtlstm_forward.2} parent=0 // pred_region
    %s5244 = ssub.s32 0, 0
    %s5245 = smul.u32 8, %s5244
  $region29: #{mtlstm_forward.2} parent=0 // pred_fallthru
    _
  // Predicated region
  $region30: #{mtlstm_forward.2} parent=0 // pred_check
    _
  $region31: #{mtlstm_forward.2} parent=0 // pred_check_branch
    %5247 = sbr.rel (0) target = $region33
  $region32: #{mtlstm_forward.2} parent=0 // pred_region
    _
  $region33: #{mtlstm_forward.2} parent=0 // pred_fallthru
    _
  // Predicated region
  $region34: #{mtlstm_forward.2} parent=0 // pred_check
    _
  $region35: #{mtlstm_forward.2} parent=0 // pred_check_branch
    %5249 = sbr.rel (0) target = $region37
  $region36: #{mtlstm_forward.2} parent=0 // pred_region
    %s5250 = ssub.s32 0, 0
    %s5251 = smul.u32 8, %s5250
    %p5252 = scmp.lt.s32.totalorder %s5251, 7
    %s5253 = scalar_select %p5252, %s5251, 7
    %s5254 = smul.addr %s5253, 8
    %s5255 = scalar_lea.vmem %s5, %s5254
  $region37: #{mtlstm_forward.2} parent=0 // pred_fallthru
    _

</llo_original>
